<compile_context>
chip_gen: v6e
topology: v6e:2x2x1
jax: 0.10.0
libtpu: 0.0.40
codegen_flags: <defaults>
</compile_context>

<pallas_src>
import functools

import jax
import jax.numpy as jnp
from jax.experimental import pallas as pl
from jax.experimental.pallas import tpu as pltpu

HIDDEN = 256          # embedding dim == LSTM hidden size (from the module spec)
LATENT = 32           # latent_size
GATES = 4 * HIDDEN    # 1024, PyTorch LSTM gate order: i, f, g, o
LAT_SLAB = 128        # lane-dense slab [mu(32) | logvar(32) | c_lat(32) | pad(32)]
VOCAB = 28            # small vocabulary (letters + SOS/EOS)
SEQ_LEN = 8


def encoder_rnn_kernel(x_ref,          # (T, HIDDEN)            gathered embeddings
                       wih_ref,        # (HIDDEN, GATES)        W_ih.T
                       whh_ref,        # (HIDDEN, GATES)        W_hh.T
                       bg_ref,         # (1, GATES) f32         b_ih + b_hh
                       wlat_ref,       # (2*HIDDEN, LAT_SLAB)   [fc1|fc2] on h-rows, fc_c on c-rows
                       blat_ref,       # (1, LAT_SLAB) f32
                       hc0_ref,        # (2, HIDDEN) f32        row0 = h0, row1 = c0
                       out_ref,        # (T, HIDDEN) f32        LSTM outputs (one dense store)
                       lat_ref,        # (1, LAT_SLAB) f32      [mu | logvar | c_lat | pad]
                       *, hidden, seq_len):
    wdt = whh_ref.dtype  # weight dtype (f32 or bf16); MXU operands cast to this

    # (1) One-shot input projection for ALL timesteps: (T,H)@(H,4H) + fused bias (f32 acc).
    x_proj = (jnp.dot(x_ref[...], wih_ref[...], preferred_element_type=jnp.float32)
              + bg_ref[...])                                           # (T, 4H) f32

    whh = whh_ref[...]                                                 # resident (H, 4H)

    h = hc0_ref[0:1, :].astype(jnp.float32)                            # (1, H)
    c = hc0_ref[1:2, :].astype(jnp.float32)

    outs = []
    for t in range(seq_len):  # T is static -> fully unrolled, static slices, no grid overhead
        # Recurrent matmul only: (1,H)@(H,4H); x-projection already folded in.
        gates = x_proj[t:t + 1, :] + jnp.dot(h.astype(wdt), whh,
                                             preferred_element_type=jnp.float32)
        # Gate slices land on lane offsets 0/256/512/768 (multiples of 128).
        # sigmoid(x) = 0.5*(tanh(0.5*x)+1): a single EUP op per element.
        i_g = 0.5 * (jnp.tanh(0.5 * gates[:, 0 * hidden:1 * hidden]) + 1.0)
        f_g = 0.5 * (jnp.tanh(0.5 * gates[:, 1 * hidden:2 * hidden]) + 1.0)
        g_g = jnp.tanh(gates[:, 2 * hidden:3 * hidden])
        o_g = 0.5 * (jnp.tanh(0.5 * gates[:, 3 * hidden:4 * hidden]) + 1.0)
        c = f_g * c + i_g * g_g                                        # f32 VPU math
        h = o_g * jnp.tanh(c)
        outs.append(h)

    # Single dense (T, H) store instead of T masked single-row stores.
    out_ref[...] = jnp.concatenate(outs, axis=0).astype(out_ref.dtype)

    # (2) Latent projection split over h and c (no [h|c] lane concat):
    #     lanes 0:32 = fc1(h), 32:64 = fc2(h), 64:96 = fc_c(c), 96:128 = pad.
    lat = (jnp.dot(h.astype(wdt), wlat_ref[0:hidden, :],
                   preferred_element_type=jnp.float32)
           + jnp.dot(c.astype(wdt), wlat_ref[hidden:2 * hidden, :],
                     preferred_element_type=jnp.float32)
           + blat_ref[...])
    lat_ref[...] = lat.astype(lat_ref.dtype)


def prepare_params(params, weight_dtype=jnp.float32):
    """One-time weight fusion/transposition (off the hot path).

    weight_dtype=jnp.bfloat16 halves MXU/VMEM weight streaming on v5e/v6e/v7x;
    biases and all elementwise math stay f32 (accumulation is f32 either way).
    """
    w_ih_t = params["w_ih"].T.astype(weight_dtype)                     # (H, 4H)
    w_hh_t = params["w_hh"].T.astype(weight_dtype)                     # (H, 4H)
    b_gate = (params["b_ih"] + params["b_hh"]).reshape(1, GATES).astype(jnp.float32)

    w_lat_t = jnp.zeros((2 * HIDDEN, LAT_SLAB), jnp.float32)
    w_lat_t = w_lat_t.at[:HIDDEN, 0:LATENT].set(params["w_fc1"].T)
    w_lat_t = w_lat_t.at[:HIDDEN, LATENT:2 * LATENT].set(params["w_fc2"].T)
    w_lat_t = w_lat_t.at[HIDDEN:, 2 * LATENT:3 * LATENT].set(params["w_fcc"].T)
    b_lat = jnp.zeros((1, LAT_SLAB), jnp.float32)
    b_lat = b_lat.at[0, 0:LATENT].set(params["b_fc1"])
    b_lat = b_lat.at[0, LATENT:2 * LATENT].set(params["b_fc2"])
    b_lat = b_lat.at[0, 2 * LATENT:3 * LATENT].set(params["b_fcc"])

    return {
        "embedding": params["embedding"].astype(weight_dtype),
        "w_ih_t": w_ih_t,
        "w_hh_t": w_hh_t,
        "b_gate": b_gate,
        "w_lat_t": w_lat_t.astype(weight_dtype),
        "b_lat": b_lat,
    }


def encoder_rnn_forward(token_ids, hidden, prepared, noise_key):
    """EncoderRNN.forward.

    token_ids: int32 (T,) token id sequence
    hidden:    (h0, c0), each (1, 1, HIDDEN) float32
    prepared:  output of prepare_params()
    noise_key: PRNG key for the reparameterization noise
    returns:   output (T,1,HIDDEN), (z, c_0) each (1,1,LATENT), z_mu, z_var (1,1,LATENT)
    """
    T = int(token_ids.shape[0])
    h0 = hidden[0].reshape(1, HIDDEN).astype(jnp.float32)
    c0 = hidden[1].reshape(1, HIDDEN).astype(jnp.float32)
    hc0 = jnp.concatenate([h0, c0], axis=0)                            # (2, HIDDEN)

    # One-shot embedding gather in the wrapper (replaces T per-step dynamic sublane
    # gathers of a non-8-aligned 28-row table inside the kernel).
    x_seq = jnp.take(prepared["embedding"], token_ids.astype(jnp.int32), axis=0)  # (T, H)

    operands = (x_seq, prepared["w_ih_t"], prepared["w_hh_t"], prepared["b_gate"],
                prepared["w_lat_t"], prepared["b_lat"], hc0)

    # Advisory cost for XLA scheduling around this tiny latency-bound call.
    flops = 2 * 2 * T * HIDDEN * GATES + 2 * (2 * HIDDEN) * LAT_SLAB
    transcendentals = 5 * T * HIDDEN
    bytes_accessed = (sum(int(a.size) * a.dtype.itemsize for a in operands)
                      + (T * HIDDEN + LAT_SLAB) * 4)

    in_specs = [
        pl.BlockSpec((T, HIDDEN), lambda i: (0, 0)),                   # gathered embeddings
        pl.BlockSpec((HIDDEN, GATES), lambda i: (0, 0)),               # W_ih.T
        pl.BlockSpec((HIDDEN, GATES), lambda i: (0, 0)),               # W_hh.T
        pl.BlockSpec((1, GATES), lambda i: (0, 0)),                    # fused gate bias
        pl.BlockSpec((2 * HIDDEN, LAT_SLAB), lambda i: (0, 0)),        # fused latent weights
        pl.BlockSpec((1, LAT_SLAB), lambda i: (0, 0)),                 # fused latent bias
        pl.BlockSpec((2, HIDDEN), lambda i: (0, 0)),                   # [h0; c0]
    ]
    out_specs = (
        pl.BlockSpec((T, HIDDEN), lambda i: (0, 0)),                   # LSTM outputs
        pl.BlockSpec((1, LAT_SLAB), lambda i: (0, 0)),                 # latent slab
    )

    lstm_out, lat = pl.pallas_call(
        functools.partial(encoder_rnn_kernel, hidden=HIDDEN, seq_len=T),
        grid=(1,),                                                     # single invocation
        in_specs=in_specs,
        out_specs=out_specs,
        out_shape=(
            jax.ShapeDtypeStruct((T, HIDDEN), jnp.float32),
            jax.ShapeDtypeStruct((1, LAT_SLAB), jnp.float32),
        ),
        compiler_params=pltpu.CompilerParams(dimension_semantics=("arbitrary",)),
        cost_estimate=pl.CostEstimate(flops=flops, transcendentals=transcendentals,
                                      bytes_accessed=bytes_accessed),
    )(*operands)

    z_mu = lat[:, 0:LATENT]
    z_var = lat[:, LATENT:2 * LATENT]
    c_lat = lat[:, 2 * LATENT:3 * LATENT]

    # reparameterize: z = mu + eps * exp(0.5 * logvar)  (noise drawn host-side, like randn_like)
    eps = jax.random.normal(noise_key, (1, LATENT), jnp.float32)
    z = z_mu + eps * jnp.exp(0.5 * z_var)

    output = lstm_out.reshape(T, 1, HIDDEN)
    return (output,
            (z.reshape(1, 1, LATENT), c_lat.reshape(1, 1, LATENT)),
            z_mu.reshape(1, 1, LATENT),
            z_var.reshape(1, 1, LATENT))


def reference_forward(token_ids, hidden, params, eps):
    """Pure-JAX reference mirroring the PyTorch EncoderRNN.forward exactly (f32)."""
    T = token_ids.shape[0]
    x_seq = params["embedding"][token_ids]                             # (T, HIDDEN)
    h = hidden[0].reshape(1, HIDDEN)
    c = hidden[1].reshape(1, HIDDEN)
    outs = []
    for t in range(T):
        gates = (x_seq[t:t + 1] @ params["w_ih"].T + h @ params["w_hh"].T
                 + params["b_ih"] + params["b_hh"])
        i = jax.nn.sigmoid(gates[:, 0 * HIDDEN:1 * HIDDEN])
        f = jax.nn.sigmoid(gates[:, 1 * HIDDEN:2 * HIDDEN])
        g = jnp.tanh(gates[:, 2 * HIDDEN:3 * HIDDEN])
        o = jax.nn.sigmoid(gates[:, 3 * HIDDEN:4 * HIDDEN])
        c = f * c + i * g
        h = o * jnp.tanh(c)
        outs.append(h)
    output = jnp.stack(outs, axis=0)                                   # (T, 1, HIDDEN)
    z_mu = h @ params["w_fc1"].T + params["b_fc1"]
    z_var = h @ params["w_fc2"].T + params["b_fc2"]
    z = z_mu + eps * jnp.exp(0.5 * z_var)
    c_0 = c @ params["w_fcc"].T + params["b_fcc"]
    return output, (z, c_0), z_mu, z_var


def init_params(key):
    ks = jax.random.split(key, 11)
    s = 1.0 / jnp.sqrt(HIDDEN)
    return {
        "embedding": jax.random.normal(ks[0], (VOCAB, HIDDEN), jnp.float32),
        "w_ih": jax.random.uniform(ks[1], (GATES, HIDDEN), jnp.float32, -s, s),
        "w_hh": jax.random.uniform(ks[2], (GATES, HIDDEN), jnp.float32, -s, s),
        "b_ih": jax.random.uniform(ks[3], (GATES,), jnp.float32, -s, s),
        "b_hh": jax.random.uniform(ks[4], (GATES,), jnp.float32, -s, s),
        "w_fc1": jax.random.uniform(ks[5], (LATENT, HIDDEN), jnp.float32, -s, s),
        "b_fc1": jax.random.uniform(ks[6], (LATENT,), jnp.float32, -s, s),
        "w_fc2": jax.random.uniform(ks[7], (LATENT, HIDDEN), jnp.float32, -s, s),
        "b_fc2": jax.random.uniform(ks[8], (LATENT,), jnp.float32, -s, s),
        "w_fcc": jax.random.uniform(ks[9], (LATENT, HIDDEN), jnp.float32, -s, s),
        "b_fcc": jax.random.uniform(ks[10], (LATENT,), jnp.float32, -s, s),
    }


if __name__ == "__main__":
    key = jax.random.PRNGKey(0)
    pkey, ikey, hkey, ckey, nkey = jax.random.split(key, 5)

    params = init_params(pkey)
    token_ids = jax.random.randint(ikey, (SEQ_LEN,), 0, VOCAB, dtype=jnp.int32)
    hidden = (jax.random.normal(hkey, (1, 1, HIDDEN), jnp.float32),
              jax.random.normal(ckey, (1, 1, HIDDEN), jnp.float32))

    eps = jax.random.normal(nkey, (1, LATENT), jnp.float32)            # same noise the wrapper draws
    ref_out, (ref_z, ref_c0), ref_mu, ref_var = reference_forward(token_ids, hidden, params, eps)

    # ---- f32 weights: exact-precision self-check (1e-4) -----------------------------
    prepared = prepare_params(params, jnp.float32)
    output, (z, c_0), z_mu, z_var = encoder_rnn_forward(token_ids, hidden, prepared, nkey)
    jax.block_until_ready((output, z, c_0, z_mu, z_var))

    assert output.shape == (SEQ_LEN, 1, HIDDEN)
    assert z.shape == (1, 1, LATENT) and c_0.shape == (1, 1, LATENT)
    assert jnp.allclose(output, ref_out, atol=1e-4, rtol=1e-4)
    assert jnp.allclose(z_mu.reshape(1, LATENT), ref_mu, atol=1e-4, rtol=1e-4)
    assert jnp.allclose(z_var.reshape(1, LATENT), ref_var, atol=1e-4, rtol=1e-4)
    assert jnp.allclose(z.reshape(1, LATENT), ref_z, atol=1e-4, rtol=1e-4)
    assert jnp.allclose(c_0.reshape(1, LATENT), ref_c0, atol=1e-4, rtol=1e-4)

    # ---- bf16 weights (v5e/v6e/v7x MXU path): loosened tolerance per review ---------
    prepared_bf16 = prepare_params(params, jnp.bfloat16)
    out_b, (z_b, c0_b), mu_b, var_b = encoder_rnn_forward(token_ids, hidden, prepared_bf16, nkey)
    jax.block_until_ready((out_b, z_b, c0_b, mu_b, var_b))
    assert jnp.allclose(out_b, ref_out, atol=1e-1, rtol=1e-1)
    assert jnp.allclose(mu_b.reshape(1, LATENT), ref_mu, atol=1e-1, rtol=1e-1)
    assert jnp.allclose(var_b.reshape(1, LATENT), ref_var, atol=1e-1, rtol=1e-1)
    assert jnp.allclose(c0_b.reshape(1, LATENT), ref_c0, atol=1e-1, rtol=1e-1)

    print("KERNEL_OK")
</pallas_src>

<mosaic_0001>
module attributes {stable_mosaic.version = 11 : i64} {
  func.func @encoder_rnn_kernel(%arg0: i32, %arg1: memref<8x256xf32, #tpu.memory_space<vmem>>, %arg2: memref<256x1024xf32, #tpu.memory_space<vmem>>, %arg3: memref<256x1024xf32, #tpu.memory_space<vmem>>, %arg4: memref<1x1024xf32, #tpu.memory_space<vmem>>, %arg5: memref<512x128xf32, #tpu.memory_space<vmem>>, %arg6: memref<1x128xf32, #tpu.memory_space<vmem>>, %arg7: memref<2x256xf32, #tpu.memory_space<vmem>>, %arg8: memref<8x256xf32, #tpu.memory_space<vmem>>, %arg9: memref<1x128xf32, #tpu.memory_space<vmem>>) attributes {dimension_semantics = [#tpu.dimension_semantics<arbitrary>], iteration_bounds = array<i64: 1>, scalar_prefetch = 0 : i64, scratch_operands = 0 : i64, tpu.core_type = #tpu.core_type<tc>, window_params = [{pipeline_mode = #tpu.pipeline_mode<synchronous>, transform_indices = @transform_0, window_bounds = array<i64: 8, 256>}, {pipeline_mode = #tpu.pipeline_mode<synchronous>, transform_indices = @transform_1, window_bounds = array<i64: 256, 1024>}, {pipeline_mode = #tpu.pipeline_mode<synchronous>, transform_indices = @transform_2, window_bounds = array<i64: 256, 1024>}, {pipeline_mode = #tpu.pipeline_mode<synchronous>, transform_indices = @transform_3, window_bounds = array<i64: 1, 1024>}, {pipeline_mode = #tpu.pipeline_mode<synchronous>, transform_indices = @transform_4, window_bounds = array<i64: 512, 128>}, {pipeline_mode = #tpu.pipeline_mode<synchronous>, transform_indices = @transform_5, window_bounds = array<i64: 1, 128>}, {pipeline_mode = #tpu.pipeline_mode<synchronous>, transform_indices = @transform_6, window_bounds = array<i64: 2, 256>}, {pipeline_mode = #tpu.pipeline_mode<synchronous>, transform_indices = @transform_7, window_bounds = array<i64: 8, 256>}, {pipeline_mode = #tpu.pipeline_mode<synchronous>, transform_indices = @transform_8, window_bounds = array<i64: 1, 128>}]} {
    %c0 = arith.constant 0 : index
    %c0_0 = arith.constant 0 : index
    %0 = vector.load %arg1[%c0, %c0_0] : memref<8x256xf32, #tpu.memory_space<vmem>>, vector<8x256xf32>
    %c0_1 = arith.constant 0 : index
    %c0_2 = arith.constant 0 : index
    %1 = vector.load %arg2[%c0_1, %c0_2] : memref<256x1024xf32, #tpu.memory_space<vmem>>, vector<256x1024xf32>
    %cst = arith.constant dense<0.000000e+00> : vector<8x1024xf32>
    %2 = tpu.matmul %0, %1, %cst {dimension_numbers = #tpu.dot_dimension_numbers<[1], [0], [0], [1], [0, 0, 1, 1], [], []>} : vector<8x256xf32>, vector<256x1024xf32>, vector<8x1024xf32> -> vector<8x1024xf32>
    %c0_3 = arith.constant 0 : index
    %c0_4 = arith.constant 0 : index
    %3 = vector.load %arg4[%c0_3, %c0_4] : memref<1x1024xf32, #tpu.memory_space<vmem>>, vector<1x1024xf32>
    %4 = vector.broadcast %3 : vector<1x1024xf32> to vector<8x1024xf32>
    %5 = arith.addf %2, %4 : vector<8x1024xf32>
    %c0_5 = arith.constant 0 : index
    %c0_6 = arith.constant 0 : index
    %6 = vector.load %arg3[%c0_5, %c0_6] : memref<256x1024xf32, #tpu.memory_space<vmem>>, vector<256x1024xf32>
    %c0_7 = arith.constant 0 : index
    %c0_8 = arith.constant 0 : index
    %7 = vector.load %arg7[%c0_7, %c0_8] : memref<2x256xf32, #tpu.memory_space<vmem>>, vector<1x256xf32>
    %c1 = arith.constant 1 : index
    %c0_9 = arith.constant 0 : index
    %8 = vector.load %arg7[%c1, %c0_9] : memref<2x256xf32, #tpu.memory_space<vmem>>, vector<1x256xf32>
    %9 = vector.extract_strided_slice %5 {offsets = [0, 0], sizes = [1, 1024], strides = [1, 1]} : vector<8x1024xf32> to vector<1x1024xf32>
    %cst_10 = arith.constant dense<0.000000e+00> : vector<1x1024xf32>
    %10 = tpu.matmul %7, %6, %cst_10 {dimension_numbers = #tpu.dot_dimension_numbers<[1], [0], [0], [1], [0, 0, 1, 1], [], []>} : vector<1x256xf32>, vector<256x1024xf32>, vector<1x1024xf32> -> vector<1x1024xf32>
    %11 = arith.addf %9, %10 : vector<1x1024xf32>
    %12 = vector.extract_strided_slice %11 {offsets = [0, 0], sizes = [1, 256], strides = [1, 1]} : vector<1x1024xf32> to vector<1x256xf32>
    %cst_11 = arith.constant 5.000000e-01 : f32
    %13 = vector.broadcast %cst_11 : f32 to vector<1x256xf32>
    %14 = arith.mulf %13, %12 : vector<1x256xf32>
    %15 = math.tanh %14 : vector<1x256xf32>
    %cst_12 = arith.constant 1.000000e+00 : f32
    %16 = vector.broadcast %cst_12 : f32 to vector<1x256xf32>
    %17 = arith.addf %15, %16 : vector<1x256xf32>
    %cst_13 = arith.constant 5.000000e-01 : f32
    %18 = vector.broadcast %cst_13 : f32 to vector<1x256xf32>
    %19 = arith.mulf %18, %17 : vector<1x256xf32>
    %20 = vector.extract_strided_slice %11 {offsets = [0, 256], sizes = [1, 256], strides = [1, 1]} : vector<1x1024xf32> to vector<1x256xf32>
    %cst_14 = arith.constant 5.000000e-01 : f32
    %21 = vector.broadcast %cst_14 : f32 to vector<1x256xf32>
    %22 = arith.mulf %21, %20 : vector<1x256xf32>
    %23 = math.tanh %22 : vector<1x256xf32>
    %cst_15 = arith.constant 1.000000e+00 : f32
    %24 = vector.broadcast %cst_15 : f32 to vector<1x256xf32>
    %25 = arith.addf %23, %24 : vector<1x256xf32>
    %cst_16 = arith.constant 5.000000e-01 : f32
    %26 = vector.broadcast %cst_16 : f32 to vector<1x256xf32>
    %27 = arith.mulf %26, %25 : vector<1x256xf32>
    %28 = vector.extract_strided_slice %11 {offsets = [0, 512], sizes = [1, 256], strides = [1, 1]} : vector<1x1024xf32> to vector<1x256xf32>
    %29 = math.tanh %28 : vector<1x256xf32>
    %30 = vector.extract_strided_slice %11 {offsets = [0, 768], sizes = [1, 256], strides = [1, 1]} : vector<1x1024xf32> to vector<1x256xf32>
    %cst_17 = arith.constant 5.000000e-01 : f32
    %31 = vector.broadcast %cst_17 : f32 to vector<1x256xf32>
    %32 = arith.mulf %31, %30 : vector<1x256xf32>
    %33 = math.tanh %32 : vector<1x256xf32>
    %cst_18 = arith.constant 1.000000e+00 : f32
    %34 = vector.broadcast %cst_18 : f32 to vector<1x256xf32>
    %35 = arith.addf %33, %34 : vector<1x256xf32>
    %cst_19 = arith.constant 5.000000e-01 : f32
    %36 = vector.broadcast %cst_19 : f32 to vector<1x256xf32>
    %37 = arith.mulf %36, %35 : vector<1x256xf32>
    %38 = arith.mulf %27, %8 : vector<1x256xf32>
    %39 = arith.mulf %19, %29 : vector<1x256xf32>
    %40 = arith.addf %38, %39 : vector<1x256xf32>
    %41 = math.tanh %40 : vector<1x256xf32>
    %42 = arith.mulf %37, %41 : vector<1x256xf32>
    %43 = vector.extract_strided_slice %5 {offsets = [1, 0], sizes = [1, 1024], strides = [1, 1]} : vector<8x1024xf32> to vector<1x1024xf32>
    %cst_20 = arith.constant dense<0.000000e+00> : vector<1x1024xf32>
    %44 = tpu.matmul %42, %6, %cst_20 {dimension_numbers = #tpu.dot_dimension_numbers<[1], [0], [0], [1], [0, 0, 1, 1], [], []>} : vector<1x256xf32>, vector<256x1024xf32>, vector<1x1024xf32> -> vector<1x1024xf32>
    %45 = arith.addf %43, %44 : vector<1x1024xf32>
    %46 = vector.extract_strided_slice %45 {offsets = [0, 0], sizes = [1, 256], strides = [1, 1]} : vector<1x1024xf32> to vector<1x256xf32>
    %cst_21 = arith.constant 5.000000e-01 : f32
    %47 = vector.broadcast %cst_21 : f32 to vector<1x256xf32>
    %48 = arith.mulf %47, %46 : vector<1x256xf32>
    %49 = math.tanh %48 : vector<1x256xf32>
    %cst_22 = arith.constant 1.000000e+00 : f32
    %50 = vector.broadcast %cst_22 : f32 to vector<1x256xf32>
    %51 = arith.addf %49, %50 : vector<1x256xf32>
    %cst_23 = arith.constant 5.000000e-01 : f32
    %52 = vector.broadcast %cst_23 : f32 to vector<1x256xf32>
    %53 = arith.mulf %52, %51 : vector<1x256xf32>
    %54 = vector.extract_strided_slice %45 {offsets = [0, 256], sizes = [1, 256], strides = [1, 1]} : vector<1x1024xf32> to vector<1x256xf32>
    %cst_24 = arith.constant 5.000000e-01 : f32
    %55 = vector.broadcast %cst_24 : f32 to vector<1x256xf32>
    %56 = arith.mulf %55, %54 : vector<1x256xf32>
    %57 = math.tanh %56 : vector<1x256xf32>
    %cst_25 = arith.constant 1.000000e+00 : f32
    %58 = vector.broadcast %cst_25 : f32 to vector<1x256xf32>
    %59 = arith.addf %57, %58 : vector<1x256xf32>
    %cst_26 = arith.constant 5.000000e-01 : f32
    %60 = vector.broadcast %cst_26 : f32 to vector<1x256xf32>
    %61 = arith.mulf %60, %59 : vector<1x256xf32>
    %62 = vector.extract_strided_slice %45 {offsets = [0, 512], sizes = [1, 256], strides = [1, 1]} : vector<1x1024xf32> to vector<1x256xf32>
    %63 = math.tanh %62 : vector<1x256xf32>
    %64 = vector.extract_strided_slice %45 {offsets = [0, 768], sizes = [1, 256], strides = [1, 1]} : vector<1x1024xf32> to vector<1x256xf32>
    %cst_27 = arith.constant 5.000000e-01 : f32
    %65 = vector.broadcast %cst_27 : f32 to vector<1x256xf32>
    %66 = arith.mulf %65, %64 : vector<1x256xf32>
    %67 = math.tanh %66 : vector<1x256xf32>
    %cst_28 = arith.constant 1.000000e+00 : f32
    %68 = vector.broadcast %cst_28 : f32 to vector<1x256xf32>
    %69 = arith.addf %67, %68 : vector<1x256xf32>
    %cst_29 = arith.constant 5.000000e-01 : f32
    %70 = vector.broadcast %cst_29 : f32 to vector<1x256xf32>
    %71 = arith.mulf %70, %69 : vector<1x256xf32>
    %72 = arith.mulf %61, %40 : vector<1x256xf32>
    %73 = arith.mulf %53, %63 : vector<1x256xf32>
    %74 = arith.addf %72, %73 : vector<1x256xf32>
    %75 = math.tanh %74 : vector<1x256xf32>
    %76 = arith.mulf %71, %75 : vector<1x256xf32>
    %77 = vector.extract_strided_slice %5 {offsets = [2, 0], sizes = [1, 1024], strides = [1, 1]} : vector<8x1024xf32> to vector<1x1024xf32>
    %cst_30 = arith.constant dense<0.000000e+00> : vector<1x1024xf32>
    %78 = tpu.matmul %76, %6, %cst_30 {dimension_numbers = #tpu.dot_dimension_numbers<[1], [0], [0], [1], [0, 0, 1, 1], [], []>} : vector<1x256xf32>, vector<256x1024xf32>, vector<1x1024xf32> -> vector<1x1024xf32>
    %79 = arith.addf %77, %78 : vector<1x1024xf32>
    %80 = vector.extract_strided_slice %79 {offsets = [0, 0], sizes = [1, 256], strides = [1, 1]} : vector<1x1024xf32> to vector<1x256xf32>
    %cst_31 = arith.constant 5.000000e-01 : f32
    %81 = vector.broadcast %cst_31 : f32 to vector<1x256xf32>
    %82 = arith.mulf %81, %80 : vector<1x256xf32>
    %83 = math.tanh %82 : vector<1x256xf32>
    %cst_32 = arith.constant 1.000000e+00 : f32
    %84 = vector.broadcast %cst_32 : f32 to vector<1x256xf32>
    %85 = arith.addf %83, %84 : vector<1x256xf32>
    %cst_33 = arith.constant 5.000000e-01 : f32
    %86 = vector.broadcast %cst_33 : f32 to vector<1x256xf32>
    %87 = arith.mulf %86, %85 : vector<1x256xf32>
    %88 = vector.extract_strided_slice %79 {offsets = [0, 256], sizes = [1, 256], strides = [1, 1]} : vector<1x1024xf32> to vector<1x256xf32>
    %cst_34 = arith.constant 5.000000e-01 : f32
    %89 = vector.broadcast %cst_34 : f32 to vector<1x256xf32>
    %90 = arith.mulf %89, %88 : vector<1x256xf32>
    %91 = math.tanh %90 : vector<1x256xf32>
    %cst_35 = arith.constant 1.000000e+00 : f32
    %92 = vector.broadcast %cst_35 : f32 to vector<1x256xf32>
    %93 = arith.addf %91, %92 : vector<1x256xf32>
    %cst_36 = arith.constant 5.000000e-01 : f32
    %94 = vector.broadcast %cst_36 : f32 to vector<1x256xf32>
    %95 = arith.mulf %94, %93 : vector<1x256xf32>
    %96 = vector.extract_strided_slice %79 {offsets = [0, 512], sizes = [1, 256], strides = [1, 1]} : vector<1x1024xf32> to vector<1x256xf32>
    %97 = math.tanh %96 : vector<1x256xf32>
    %98 = vector.extract_strided_slice %79 {offsets = [0, 768], sizes = [1, 256], strides = [1, 1]} : vector<1x1024xf32> to vector<1x256xf32>
    %cst_37 = arith.constant 5.000000e-01 : f32
    %99 = vector.broadcast %cst_37 : f32 to vector<1x256xf32>
    %100 = arith.mulf %99, %98 : vector<1x256xf32>
    %101 = math.tanh %100 : vector<1x256xf32>
    %cst_38 = arith.constant 1.000000e+00 : f32
    %102 = vector.broadcast %cst_38 : f32 to vector<1x256xf32>
    %103 = arith.addf %101, %102 : vector<1x256xf32>
    %cst_39 = arith.constant 5.000000e-01 : f32
    %104 = vector.broadcast %cst_39 : f32 to vector<1x256xf32>
    %105 = arith.mulf %104, %103 : vector<1x256xf32>
    %106 = arith.mulf %95, %74 : vector<1x256xf32>
    %107 = arith.mulf %87, %97 : vector<1x256xf32>
    %108 = arith.addf %106, %107 : vector<1x256xf32>
    %109 = math.tanh %108 : vector<1x256xf32>
    %110 = arith.mulf %105, %109 : vector<1x256xf32>
    %111 = vector.extract_strided_slice %5 {offsets = [3, 0], sizes = [1, 1024], strides = [1, 1]} : vector<8x1024xf32> to vector<1x1024xf32>
    %cst_40 = arith.constant dense<0.000000e+00> : vector<1x1024xf32>
    %112 = tpu.matmul %110, %6, %cst_40 {dimension_numbers = #tpu.dot_dimension_numbers<[1], [0], [0], [1], [0, 0, 1, 1], [], []>} : vector<1x256xf32>, vector<256x1024xf32>, vector<1x1024xf32> -> vector<1x1024xf32>
    %113 = arith.addf %111, %112 : vector<1x1024xf32>
    %114 = vector.extract_strided_slice %113 {offsets = [0, 0], sizes = [1, 256], strides = [1, 1]} : vector<1x1024xf32> to vector<1x256xf32>
    %cst_41 = arith.constant 5.000000e-01 : f32
    %115 = vector.broadcast %cst_41 : f32 to vector<1x256xf32>
    %116 = arith.mulf %115, %114 : vector<1x256xf32>
    %117 = math.tanh %116 : vector<1x256xf32>
    %cst_42 = arith.constant 1.000000e+00 : f32
    %118 = vector.broadcast %cst_42 : f32 to vector<1x256xf32>
    %119 = arith.addf %117, %118 : vector<1x256xf32>
    %cst_43 = arith.constant 5.000000e-01 : f32
    %120 = vector.broadcast %cst_43 : f32 to vector<1x256xf32>
    %121 = arith.mulf %120, %119 : vector<1x256xf32>
    %122 = vector.extract_strided_slice %113 {offsets = [0, 256], sizes = [1, 256], strides = [1, 1]} : vector<1x1024xf32> to vector<1x256xf32>
    %cst_44 = arith.constant 5.000000e-01 : f32
    %123 = vector.broadcast %cst_44 : f32 to vector<1x256xf32>
    %124 = arith.mulf %123, %122 : vector<1x256xf32>
    %125 = math.tanh %124 : vector<1x256xf32>
    %cst_45 = arith.constant 1.000000e+00 : f32
    %126 = vector.broadcast %cst_45 : f32 to vector<1x256xf32>
    %127 = arith.addf %125, %126 : vector<1x256xf32>
    %cst_46 = arith.constant 5.000000e-01 : f32
    %128 = vector.broadcast %cst_46 : f32 to vector<1x256xf32>
    %129 = arith.mulf %128, %127 : vector<1x256xf32>
    %130 = vector.extract_strided_slice %113 {offsets = [0, 512], sizes = [1, 256], strides = [1, 1]} : vector<1x1024xf32> to vector<1x256xf32>
    %131 = math.tanh %130 : vector<1x256xf32>
    %132 = vector.extract_strided_slice %113 {offsets = [0, 768], sizes = [1, 256], strides = [1, 1]} : vector<1x1024xf32> to vector<1x256xf32>
    %cst_47 = arith.constant 5.000000e-01 : f32
    %133 = vector.broadcast %cst_47 : f32 to vector<1x256xf32>
    %134 = arith.mulf %133, %132 : vector<1x256xf32>
    %135 = math.tanh %134 : vector<1x256xf32>
    %cst_48 = arith.constant 1.000000e+00 : f32
    %136 = vector.broadcast %cst_48 : f32 to vector<1x256xf32>
    %137 = arith.addf %135, %136 : vector<1x256xf32>
    %cst_49 = arith.constant 5.000000e-01 : f32
    %138 = vector.broadcast %cst_49 : f32 to vector<1x256xf32>
    %139 = arith.mulf %138, %137 : vector<1x256xf32>
    %140 = arith.mulf %129, %108 : vector<1x256xf32>
    %141 = arith.mulf %121, %131 : vector<1x256xf32>
    %142 = arith.addf %140, %141 : vector<1x256xf32>
    %143 = math.tanh %142 : vector<1x256xf32>
    %144 = arith.mulf %139, %143 : vector<1x256xf32>
    %145 = vector.extract_strided_slice %5 {offsets = [4, 0], sizes = [1, 1024], strides = [1, 1]} : vector<8x1024xf32> to vector<1x1024xf32>
    %cst_50 = arith.constant dense<0.000000e+00> : vector<1x1024xf32>
    %146 = tpu.matmul %144, %6, %cst_50 {dimension_numbers = #tpu.dot_dimension_numbers<[1], [0], [0], [1], [0, 0, 1, 1], [], []>} : vector<1x256xf32>, vector<256x1024xf32>, vector<1x1024xf32> -> vector<1x1024xf32>
    %147 = arith.addf %145, %146 : vector<1x1024xf32>
    %148 = vector.extract_strided_slice %147 {offsets = [0, 0], sizes = [1, 256], strides = [1, 1]} : vector<1x1024xf32> to vector<1x256xf32>
    %cst_51 = arith.constant 5.000000e-01 : f32
    %149 = vector.broadcast %cst_51 : f32 to vector<1x256xf32>
    %150 = arith.mulf %149, %148 : vector<1x256xf32>
    %151 = math.tanh %150 : vector<1x256xf32>
    %cst_52 = arith.constant 1.000000e+00 : f32
    %152 = vector.broadcast %cst_52 : f32 to vector<1x256xf32>
    %153 = arith.addf %151, %152 : vector<1x256xf32>
    %cst_53 = arith.constant 5.000000e-01 : f32
    %154 = vector.broadcast %cst_53 : f32 to vector<1x256xf32>
    %155 = arith.mulf %154, %153 : vector<1x256xf32>
    %156 = vector.extract_strided_slice %147 {offsets = [0, 256], sizes = [1, 256], strides = [1, 1]} : vector<1x1024xf32> to vector<1x256xf32>
    %cst_54 = arith.constant 5.000000e-01 : f32
    %157 = vector.broadcast %cst_54 : f32 to vector<1x256xf32>
    %158 = arith.mulf %157, %156 : vector<1x256xf32>
    %159 = math.tanh %158 : vector<1x256xf32>
    %cst_55 = arith.constant 1.000000e+00 : f32
    %160 = vector.broadcast %cst_55 : f32 to vector<1x256xf32>
    %161 = arith.addf %159, %160 : vector<1x256xf32>
    %cst_56 = arith.constant 5.000000e-01 : f32
    %162 = vector.broadcast %cst_56 : f32 to vector<1x256xf32>
    %163 = arith.mulf %162, %161 : vector<1x256xf32>
    %164 = vector.extract_strided_slice %147 {offsets = [0, 512], sizes = [1, 256], strides = [1, 1]} : vector<1x1024xf32> to vector<1x256xf32>
    %165 = math.tanh %164 : vector<1x256xf32>
    %166 = vector.extract_strided_slice %147 {offsets = [0, 768], sizes = [1, 256], strides = [1, 1]} : vector<1x1024xf32> to vector<1x256xf32>
    %cst_57 = arith.constant 5.000000e-01 : f32
    %167 = vector.broadcast %cst_57 : f32 to vector<1x256xf32>
    %168 = arith.mulf %167, %166 : vector<1x256xf32>
    %169 = math.tanh %168 : vector<1x256xf32>
    %cst_58 = arith.constant 1.000000e+00 : f32
    %170 = vector.broadcast %cst_58 : f32 to vector<1x256xf32>
    %171 = arith.addf %169, %170 : vector<1x256xf32>
    %cst_59 = arith.constant 5.000000e-01 : f32
    %172 = vector.broadcast %cst_59 : f32 to vector<1x256xf32>
    %173 = arith.mulf %172, %171 : vector<1x256xf32>
    %174 = arith.mulf %163, %142 : vector<1x256xf32>
    %175 = arith.mulf %155, %165 : vector<1x256xf32>
    %176 = arith.addf %174, %175 : vector<1x256xf32>
    %177 = math.tanh %176 : vector<1x256xf32>
    %178 = arith.mulf %173, %177 : vector<1x256xf32>
    %179 = vector.extract_strided_slice %5 {offsets = [5, 0], sizes = [1, 1024], strides = [1, 1]} : vector<8x1024xf32> to vector<1x1024xf32>
    %cst_60 = arith.constant dense<0.000000e+00> : vector<1x1024xf32>
    %180 = tpu.matmul %178, %6, %cst_60 {dimension_numbers = #tpu.dot_dimension_numbers<[1], [0], [0], [1], [0, 0, 1, 1], [], []>} : vector<1x256xf32>, vector<256x1024xf32>, vector<1x1024xf32> -> vector<1x1024xf32>
    %181 = arith.addf %179, %180 : vector<1x1024xf32>
    %182 = vector.extract_strided_slice %181 {offsets = [0, 0], sizes = [1, 256], strides = [1, 1]} : vector<1x1024xf32> to vector<1x256xf32>
    %cst_61 = arith.constant 5.000000e-01 : f32
    %183 = vector.broadcast %cst_61 : f32 to vector<1x256xf32>
    %184 = arith.mulf %183, %182 : vector<1x256xf32>
    %185 = math.tanh %184 : vector<1x256xf32>
    %cst_62 = arith.constant 1.000000e+00 : f32
    %186 = vector.broadcast %cst_62 : f32 to vector<1x256xf32>
    %187 = arith.addf %185, %186 : vector<1x256xf32>
    %cst_63 = arith.constant 5.000000e-01 : f32
    %188 = vector.broadcast %cst_63 : f32 to vector<1x256xf32>
    %189 = arith.mulf %188, %187 : vector<1x256xf32>
    %190 = vector.extract_strided_slice %181 {offsets = [0, 256], sizes = [1, 256], strides = [1, 1]} : vector<1x1024xf32> to vector<1x256xf32>
    %cst_64 = arith.constant 5.000000e-01 : f32
    %191 = vector.broadcast %cst_64 : f32 to vector<1x256xf32>
    %192 = arith.mulf %191, %190 : vector<1x256xf32>
    %193 = math.tanh %192 : vector<1x256xf32>
    %cst_65 = arith.constant 1.000000e+00 : f32
    %194 = vector.broadcast %cst_65 : f32 to vector<1x256xf32>
    %195 = arith.addf %193, %194 : vector<1x256xf32>
    %cst_66 = arith.constant 5.000000e-01 : f32
    %196 = vector.broadcast %cst_66 : f32 to vector<1x256xf32>
    %197 = arith.mulf %196, %195 : vector<1x256xf32>
    %198 = vector.extract_strided_slice %181 {offsets = [0, 512], sizes = [1, 256], strides = [1, 1]} : vector<1x1024xf32> to vector<1x256xf32>
    %199 = math.tanh %198 : vector<1x256xf32>
    %200 = vector.extract_strided_slice %181 {offsets = [0, 768], sizes = [1, 256], strides = [1, 1]} : vector<1x1024xf32> to vector<1x256xf32>
    %cst_67 = arith.constant 5.000000e-01 : f32
    %201 = vector.broadcast %cst_67 : f32 to vector<1x256xf32>
    %202 = arith.mulf %201, %200 : vector<1x256xf32>
    %203 = math.tanh %202 : vector<1x256xf32>
    %cst_68 = arith.constant 1.000000e+00 : f32
    %204 = vector.broadcast %cst_68 : f32 to vector<1x256xf32>
    %205 = arith.addf %203, %204 : vector<1x256xf32>
    %cst_69 = arith.constant 5.000000e-01 : f32
    %206 = vector.broadcast %cst_69 : f32 to vector<1x256xf32>
    %207 = arith.mulf %206, %205 : vector<1x256xf32>
    %208 = arith.mulf %197, %176 : vector<1x256xf32>
    %209 = arith.mulf %189, %199 : vector<1x256xf32>
    %210 = arith.addf %208, %209 : vector<1x256xf32>
    %211 = math.tanh %210 : vector<1x256xf32>
    %212 = arith.mulf %207, %211 : vector<1x256xf32>
    %213 = vector.extract_strided_slice %5 {offsets = [6, 0], sizes = [1, 1024], strides = [1, 1]} : vector<8x1024xf32> to vector<1x1024xf32>
    %cst_70 = arith.constant dense<0.000000e+00> : vector<1x1024xf32>
    %214 = tpu.matmul %212, %6, %cst_70 {dimension_numbers = #tpu.dot_dimension_numbers<[1], [0], [0], [1], [0, 0, 1, 1], [], []>} : vector<1x256xf32>, vector<256x1024xf32>, vector<1x1024xf32> -> vector<1x1024xf32>
    %215 = arith.addf %213, %214 : vector<1x1024xf32>
    %216 = vector.extract_strided_slice %215 {offsets = [0, 0], sizes = [1, 256], strides = [1, 1]} : vector<1x1024xf32> to vector<1x256xf32>
    %cst_71 = arith.constant 5.000000e-01 : f32
    %217 = vector.broadcast %cst_71 : f32 to vector<1x256xf32>
    %218 = arith.mulf %217, %216 : vector<1x256xf32>
    %219 = math.tanh %218 : vector<1x256xf32>
    %cst_72 = arith.constant 1.000000e+00 : f32
    %220 = vector.broadcast %cst_72 : f32 to vector<1x256xf32>
    %221 = arith.addf %219, %220 : vector<1x256xf32>
    %cst_73 = arith.constant 5.000000e-01 : f32
    %222 = vector.broadcast %cst_73 : f32 to vector<1x256xf32>
    %223 = arith.mulf %222, %221 : vector<1x256xf32>
    %224 = vector.extract_strided_slice %215 {offsets = [0, 256], sizes = [1, 256], strides = [1, 1]} : vector<1x1024xf32> to vector<1x256xf32>
    %cst_74 = arith.constant 5.000000e-01 : f32
    %225 = vector.broadcast %cst_74 : f32 to vector<1x256xf32>
    %226 = arith.mulf %225, %224 : vector<1x256xf32>
    %227 = math.tanh %226 : vector<1x256xf32>
    %cst_75 = arith.constant 1.000000e+00 : f32
    %228 = vector.broadcast %cst_75 : f32 to vector<1x256xf32>
    %229 = arith.addf %227, %228 : vector<1x256xf32>
    %cst_76 = arith.constant 5.000000e-01 : f32
    %230 = vector.broadcast %cst_76 : f32 to vector<1x256xf32>
    %231 = arith.mulf %230, %229 : vector<1x256xf32>
    %232 = vector.extract_strided_slice %215 {offsets = [0, 512], sizes = [1, 256], strides = [1, 1]} : vector<1x1024xf32> to vector<1x256xf32>
    %233 = math.tanh %232 : vector<1x256xf32>
    %234 = vector.extract_strided_slice %215 {offsets = [0, 768], sizes = [1, 256], strides = [1, 1]} : vector<1x1024xf32> to vector<1x256xf32>
    %cst_77 = arith.constant 5.000000e-01 : f32
    %235 = vector.broadcast %cst_77 : f32 to vector<1x256xf32>
    %236 = arith.mulf %235, %234 : vector<1x256xf32>
    %237 = math.tanh %236 : vector<1x256xf32>
    %cst_78 = arith.constant 1.000000e+00 : f32
    %238 = vector.broadcast %cst_78 : f32 to vector<1x256xf32>
    %239 = arith.addf %237, %238 : vector<1x256xf32>
    %cst_79 = arith.constant 5.000000e-01 : f32
    %240 = vector.broadcast %cst_79 : f32 to vector<1x256xf32>
    %241 = arith.mulf %240, %239 : vector<1x256xf32>
    %242 = arith.mulf %231, %210 : vector<1x256xf32>
    %243 = arith.mulf %223, %233 : vector<1x256xf32>
    %244 = arith.addf %242, %243 : vector<1x256xf32>
    %245 = math.tanh %244 : vector<1x256xf32>
    %246 = arith.mulf %241, %245 : vector<1x256xf32>
    %247 = vector.extract_strided_slice %5 {offsets = [7, 0], sizes = [1, 1024], strides = [1, 1]} : vector<8x1024xf32> to vector<1x1024xf32>
    %cst_80 = arith.constant dense<0.000000e+00> : vector<1x1024xf32>
    %248 = tpu.matmul %246, %6, %cst_80 {dimension_numbers = #tpu.dot_dimension_numbers<[1], [0], [0], [1], [0, 0, 1, 1], [], []>} : vector<1x256xf32>, vector<256x1024xf32>, vector<1x1024xf32> -> vector<1x1024xf32>
    %249 = arith.addf %247, %248 : vector<1x1024xf32>
    %250 = vector.extract_strided_slice %249 {offsets = [0, 0], sizes = [1, 256], strides = [1, 1]} : vector<1x1024xf32> to vector<1x256xf32>
    %cst_81 = arith.constant 5.000000e-01 : f32
    %251 = vector.broadcast %cst_81 : f32 to vector<1x256xf32>
    %252 = arith.mulf %251, %250 : vector<1x256xf32>
    %253 = math.tanh %252 : vector<1x256xf32>
    %cst_82 = arith.constant 1.000000e+00 : f32
    %254 = vector.broadcast %cst_82 : f32 to vector<1x256xf32>
    %255 = arith.addf %253, %254 : vector<1x256xf32>
    %cst_83 = arith.constant 5.000000e-01 : f32
    %256 = vector.broadcast %cst_83 : f32 to vector<1x256xf32>
    %257 = arith.mulf %256, %255 : vector<1x256xf32>
    %258 = vector.extract_strided_slice %249 {offsets = [0, 256], sizes = [1, 256], strides = [1, 1]} : vector<1x1024xf32> to vector<1x256xf32>
    %cst_84 = arith.constant 5.000000e-01 : f32
    %259 = vector.broadcast %cst_84 : f32 to vector<1x256xf32>
    %260 = arith.mulf %259, %258 : vector<1x256xf32>
    %261 = math.tanh %260 : vector<1x256xf32>
    %cst_85 = arith.constant 1.000000e+00 : f32
    %262 = vector.broadcast %cst_85 : f32 to vector<1x256xf32>
    %263 = arith.addf %261, %262 : vector<1x256xf32>
    %cst_86 = arith.constant 5.000000e-01 : f32
    %264 = vector.broadcast %cst_86 : f32 to vector<1x256xf32>
    %265 = arith.mulf %264, %263 : vector<1x256xf32>
    %266 = vector.extract_strided_slice %249 {offsets = [0, 512], sizes = [1, 256], strides = [1, 1]} : vector<1x1024xf32> to vector<1x256xf32>
    %267 = math.tanh %266 : vector<1x256xf32>
    %268 = vector.extract_strided_slice %249 {offsets = [0, 768], sizes = [1, 256], strides = [1, 1]} : vector<1x1024xf32> to vector<1x256xf32>
    %cst_87 = arith.constant 5.000000e-01 : f32
    %269 = vector.broadcast %cst_87 : f32 to vector<1x256xf32>
    %270 = arith.mulf %269, %268 : vector<1x256xf32>
    %271 = math.tanh %270 : vector<1x256xf32>
    %cst_88 = arith.constant 1.000000e+00 : f32
    %272 = vector.broadcast %cst_88 : f32 to vector<1x256xf32>
    %273 = arith.addf %271, %272 : vector<1x256xf32>
    %cst_89 = arith.constant 5.000000e-01 : f32
    %274 = vector.broadcast %cst_89 : f32 to vector<1x256xf32>
    %275 = arith.mulf %274, %273 : vector<1x256xf32>
    %276 = arith.mulf %265, %244 : vector<1x256xf32>
    %277 = arith.mulf %257, %267 : vector<1x256xf32>
    %278 = arith.addf %276, %277 : vector<1x256xf32>
    %279 = math.tanh %278 : vector<1x256xf32>
    %280 = arith.mulf %275, %279 : vector<1x256xf32>
    %281 = tpu.concatenate %42, %76, %110, %144, %178, %212, %246, %280 in 0 : vector<1x256xf32>, vector<1x256xf32>, vector<1x256xf32>, vector<1x256xf32>, vector<1x256xf32>, vector<1x256xf32>, vector<1x256xf32>, vector<1x256xf32> -> vector<8x256xf32>
    %c0_90 = arith.constant 0 : index
    %c0_91 = arith.constant 0 : index
    %282 = vector.load %arg8[%c0_90, %c0_91] : memref<8x256xf32, #tpu.memory_space<vmem>>, vector<8x256xf32>
    tpu.vector_store %arg8[%c0_90, %c0_91], %281 {strides = array<i32>} : memref<8x256xf32, #tpu.memory_space<vmem>>, vector<8x256xf32>,
    %c0_92 = arith.constant 0 : index
    %c0_93 = arith.constant 0 : index
    %283 = vector.load %arg5[%c0_92, %c0_93] : memref<512x128xf32, #tpu.memory_space<vmem>>, vector<256x128xf32>
    %cst_94 = arith.constant dense<0.000000e+00> : vector<1x128xf32>
    %284 = tpu.matmul %280, %283, %cst_94 {dimension_numbers = #tpu.dot_dimension_numbers<[1], [0], [0], [1], [0, 0, 1, 1], [], []>} : vector<1x256xf32>, vector<256x128xf32>, vector<1x128xf32> -> vector<1x128xf32>
    %c256 = arith.constant 256 : index
    %c0_95 = arith.constant 0 : index
    %285 = vector.load %arg5[%c256, %c0_95] : memref<512x128xf32, #tpu.memory_space<vmem>>, vector<256x128xf32>
    %cst_96 = arith.constant dense<0.000000e+00> : vector<1x128xf32>
    %286 = tpu.matmul %278, %285, %cst_96 {dimension_numbers = #tpu.dot_dimension_numbers<[1], [0], [0], [1], [0, 0, 1, 1], [], []>} : vector<1x256xf32>, vector<256x128xf32>, vector<1x128xf32> -> vector<1x128xf32>
    %287 = arith.addf %284, %286 : vector<1x128xf32>
    %c0_97 = arith.constant 0 : index
    %c0_98 = arith.constant 0 : index
    %288 = vector.load %arg6[%c0_97, %c0_98] : memref<1x128xf32, #tpu.memory_space<vmem>>, vector<1x128xf32>
    %289 = arith.addf %287, %288 : vector<1x128xf32>
    %c0_99 = arith.constant 0 : index
    %c0_100 = arith.constant 0 : index
    %290 = vector.load %arg9[%c0_99, %c0_100] : memref<1x128xf32, #tpu.memory_space<vmem>>, vector<1x128xf32>
    tpu.vector_store %arg9[%c0_99, %c0_100], %289 {strides = array<i32>} : memref<1x128xf32, #tpu.memory_space<vmem>>, vector<1x128xf32>,
    return
  }
  func.func @transform_0(%arg0: i32) -> (i32, i32) {
    %c0_i32 = arith.constant 0 : i32
    %c0_i32_0 = arith.constant 0 : i32
    %c0_i32_1 = arith.constant 0 : i32
    return %c0_i32, %c0_i32_0 : i32, i32
  }
  func.func @transform_1(%arg0: i32) -> (i32, i32) {
    %c0_i32 = arith.constant 0 : i32
    %c0_i32_0 = arith.constant 0 : i32
    %c0_i32_1 = arith.constant 0 : i32
    return %c0_i32, %c0_i32_0 : i32, i32
  }
  func.func @transform_2(%arg0: i32) -> (i32, i32) {
    %c0_i32 = arith.constant 0 : i32
    %c0_i32_0 = arith.constant 0 : i32
    %c0_i32_1 = arith.constant 0 : i32
    return %c0_i32, %c0_i32_0 : i32, i32
  }
  func.func @transform_3(%arg0: i32) -> (i32, i32) {
    %c0_i32 = arith.constant 0 : i32
    %c0_i32_0 = arith.constant 0 : i32
    %c0_i32_1 = arith.constant 0 : i32
    return %c0_i32, %c0_i32_0 : i32, i32
  }
  func.func @transform_4(%arg0: i32) -> (i32, i32) {
    %c0_i32 = arith.constant 0 : i32
    %c0_i32_0 = arith.constant 0 : i32
    %c0_i32_1 = arith.constant 0 : i32
    return %c0_i32, %c0_i32_0 : i32, i32
  }
  func.func @transform_5(%arg0: i32) -> (i32, i32) {
    %c0_i32 = arith.constant 0 : i32
    %c0_i32_0 = arith.constant 0 : i32
    %c0_i32_1 = arith.constant 0 : i32
    return %c0_i32, %c0_i32_0 : i32, i32
  }
  func.func @transform_6(%arg0: i32) -> (i32, i32) {
    %c0_i32 = arith.constant 0 : i32
    %c0_i32_0 = arith.constant 0 : i32
    %c0_i32_1 = arith.constant 0 : i32
    return %c0_i32, %c0_i32_0 : i32, i32
  }
  func.func @transform_7(%arg0: i32) -> (i32, i32) {
    %c0_i32 = arith.constant 0 : i32
    %c0_i32_0 = arith.constant 0 : i32
    %c0_i32_1 = arith.constant 0 : i32
    return %c0_i32, %c0_i32_0 : i32, i32
  }
  func.func @transform_8(%arg0: i32) -> (i32, i32) {
    %c0_i32 = arith.constant 0 : i32
    %c0_i32_0 = arith.constant 0 : i32
    %c0_i32_1 = arith.constant 0 : i32
    return %c0_i32, %c0_i32_0 : i32, i32
  }
}

</mosaic_0001>

<llo_original>
// kernel: tpu_custom_call.1
$region0: #{tpu_custom_call.1}
  #allocation0 [shape = 'u32[]', space=smem, size = 0x4, offset = 0x4, fixed_abs, tag = 'smem constant byte address 0x4 - core index']
  #allocation1 [shape = 'u32[144,128]{1,0:T(1,128)}', space=vmem, size = 0x12000, scoped, tag = 'internal scratch']
  %s0 = inlined_call_operand.hbm [shape: f32[8,256], index: 0, kind: input, shape index: {}]
  %s1 = inlined_call_operand.hbm [shape: f32[256,1024], index: 1, kind: input, shape index: {}]
  %s2 = inlined_call_operand.hbm [shape: f32[256,1024], index: 2, kind: input, shape index: {}]
  %s3 = inlined_call_operand.hbm [shape: f32[1,1024], index: 3, kind: input, shape index: {}]
  %s4 = inlined_call_operand.hbm [shape: f32[512,128], index: 4, kind: input, shape index: {}]
  %s5 = inlined_call_operand.vmem [shape: f32[1,128], index: 5, kind: input, shape index: {}]
  %s6 = inlined_call_operand.vmem [shape: f32[2,256], index: 6, kind: input, shape index: {}]
  %s7 = inlined_call_operand.hbm [shape: f32[8,256], index: 7, kind: output, shape index: {0}]
  %s8 = inlined_call_operand.hbm [shape: f32[1,128], index: 8, kind: output, shape index: {1}]
  %9 = xla_tuple %s7, %s8
  %s10 = sld [smem:[#allocation0]]
  $region66: #{tpu_custom_call.1} parent=0
    _
  %s12 = ssub.s32 1, %s10
  %s13 = scalar_select 0, %s12, %s10
  $region1: #{tpu_custom_call.1} parent=0
    #allocation2 [shape = 'u8[8192]{0}', space=vmem, size = 0x2000, scoped, tag = 'input window, operand 0, single buffered']
    #allocation3 [shape = 's32[1]{0}', space=sflag, size = 0x4, scoped, tag = 'scoped memory for tpu_custom_call.1']
    #allocation4 [shape = 's32[1]{0}', space=sflag, size = 0x4, scoped, tag = 'scoped memory for tpu_custom_call.1']
    #allocation5 [shape = 'u8[1048576]{0}', space=vmem, size = 0x100000, scoped, tag = 'input window, operand 1, single buffered']
    #allocation6 [shape = 's32[1]{0}', space=sflag, size = 0x4, scoped, tag = 'scoped memory for tpu_custom_call.1']
    #allocation7 [shape = 'u8[1048576]{0}', space=vmem, size = 0x100000, scoped, tag = 'input window, operand 2, single buffered']
    #allocation8 [shape = 'u8[4096]{0}', space=vmem, size = 0x1000, scoped, tag = 'input window, operand 3, single buffered']
    #allocation9 [shape = 's32[1]{0}', space=sflag, size = 0x4, scoped, tag = 'scoped memory for tpu_custom_call.1']
    #allocation10 [shape = 'u8[262144]{0}', space=vmem, size = 0x40000, scoped, tag = 'input window, operand 4, single buffered']
    #allocation11 [shape = 'u8[8192]{0}', space=vmem, size = 0x2000, scoped, tag = 'output window, operand 0, single buffered']
    #allocation12 [shape = 'u8[512]{0}', space=vmem, size = 0x400, scoped, tag = 'output window, operand 1, single buffered']
    #allocation13 [shape = 's32[1]{0}', space=sflag, size = 0x4, scoped, tag = 'scoped memory for tpu_custom_call.1']
    %14 = vsyncpa [#allocation3], 0
    %15 = vsyncpa [#allocation6], 0
    %16 = vsyncpa [#allocation9], 0
    %17 = vsyncpa [#allocation4], 0
    %18 = vsyncpa [#allocation13], 0
    // Predicated region
    $region2: #{tpu_custom_call.1} parent=1 // pred_check
      _
    $region3: #{tpu_custom_call.1} parent=1 // pred_check_branch
      %20 = sbr.rel (0) target = $region5
    $region4: #{tpu_custom_call.1} parent=1 // pred_region
      %s22 = ssub.s32 256, 256
      %23 = vsyncadd [#allocation3], %s22
      %s25 = sshll.u32 [#allocation2], 4
      %s26 = int_to_ptr.vmem [resolvable:$true] %s25
      %28 = dma.hbm_to_vmem [thread:$0]  %s0, 256, %s26, [#allocation3]
    $region5: #{tpu_custom_call.1} parent=1 // pred_fallthru
      _
    // Predicated region
    $region6: #{tpu_custom_call.1} parent=1 // pred_check
      _
    $region7: #{tpu_custom_call.1} parent=1 // pred_check_branch
      %30 = sbr.rel (0) target = $region9
    $region8: #{tpu_custom_call.1} parent=1 // pred_region
      %s32 = ssub.s32 32768, 32768
      %33 = vsyncadd [#allocation6], %s32
      %s34 = sshll.u32 [#allocation5], 4
      %s35 = int_to_ptr.vmem [resolvable:$true] %s34
      %40 = dma.hbm_to_vmem [thread:$0]  %s1, 32768, %s35, [#allocation6], 1024, 1024, 64
    $region9: #{tpu_custom_call.1} parent=1 // pred_fallthru
      _
    // Predicated region
    $region10: #{tpu_custom_call.1} parent=1 // pred_check
      _
    $region11: #{tpu_custom_call.1} parent=1 // pred_check_branch
      %42 = sbr.rel (0) target = $region13
    $region12: #{tpu_custom_call.1} parent=1 // pred_region
      %s44 = ssub.s32 32768, 32768
      %45 = vsyncadd [#allocation6], %s44
      %s46 = sshll.u32 [#allocation7], 4
      %s47 = int_to_ptr.vmem [resolvable:$true] %s46
      %52 = dma.hbm_to_vmem [thread:$0]  %s2, 32768, %s47, [#allocation6], 1024, 1024, 64
    $region13: #{tpu_custom_call.1} parent=1 // pred_fallthru
      _
    // Predicated region
    $region14: #{tpu_custom_call.1} parent=1 // pred_check
      _
    $region15: #{tpu_custom_call.1} parent=1 // pred_check_branch
      %54 = sbr.rel (0) target = $region17
    $region16: #{tpu_custom_call.1} parent=1 // pred_region
      %s56 = ssub.s32 128, 128
      %57 = vsyncadd [#allocation9], %s56
      %s59 = sshll.u32 [#allocation8], 4
      %s60 = int_to_ptr.vmem [resolvable:$true] %s59
      %62 = dma.hbm_to_vmem [thread:$0]  %s3, 128, %s60, [#allocation9]
    $region17: #{tpu_custom_call.1} parent=1 // pred_fallthru
      _
    // Predicated region
    $region18: #{tpu_custom_call.1} parent=1 // pred_check
      _
    $region19: #{tpu_custom_call.1} parent=1 // pred_check_branch
      %64 = sbr.rel (0) target = $region21
    $region20: #{tpu_custom_call.1} parent=1 // pred_region
      %s66 = ssub.s32 8192, 8192
      %67 = vsyncadd [#allocation9], %s66
      %s68 = sshll.u32 [#allocation10], 4
      %s69 = int_to_ptr.vmem [resolvable:$true] %s68
      %74 = dma.hbm_to_vmem [thread:$0]  %s4, 8192, %s69, [#allocation9], 128, 128, 8
    $region21: #{tpu_custom_call.1} parent=1 // pred_fallthru
      _
    // Predicated region
    $region22: #{tpu_custom_call.1} parent=1 // pred_check
      _
    $region23: #{tpu_custom_call.1} parent=1 // pred_check_branch
      %76 = sbr.rel (0) target = $region25
    $region24: #{tpu_custom_call.1} parent=1 // pred_region
      _
    $region25: #{tpu_custom_call.1} parent=1 // pred_fallthru
      _
    // Predicated region
    $region26: #{tpu_custom_call.1} parent=1 // pred_check
      _
    $region27: #{tpu_custom_call.1} parent=1 // pred_check_branch
      %78 = sbr.rel (0) target = $region29
    $region28: #{tpu_custom_call.1} parent=1 // pred_region
      _
    $region29: #{tpu_custom_call.1} parent=1 // pred_fallthru
      _
    // Predicated region
    $region30: #{tpu_custom_call.1} parent=1 // pred_check
      _
    $region31: #{tpu_custom_call.1} parent=1 // pred_check_branch
      %80 = sbr.rel (0) target = $region33
    $region32: #{tpu_custom_call.1} parent=1 // pred_region
      %81 = dma.done [#allocation3], 256
    $region33: #{tpu_custom_call.1} parent=1 // pred_fallthru
      _
    // Predicated region
    $region34: #{tpu_custom_call.1} parent=1 // pred_check
      _
    $region35: #{tpu_custom_call.1} parent=1 // pred_check_branch
      %83 = sbr.rel (0) target = $region37
    $region36: #{tpu_custom_call.1} parent=1 // pred_region
      %84 = dma.done [#allocation6], 32768
    $region37: #{tpu_custom_call.1} parent=1 // pred_fallthru
      _
    // Predicated region
    $region38: #{tpu_custom_call.1} parent=1 // pred_check
      _
    $region39: #{tpu_custom_call.1} parent=1 // pred_check_branch
      %86 = sbr.rel (0) target = $region41
    $region40: #{tpu_custom_call.1} parent=1 // pred_region
      %87 = dma.done [#allocation6], 32768
    $region41: #{tpu_custom_call.1} parent=1 // pred_fallthru
      _
    // Predicated region
    $region42: #{tpu_custom_call.1} parent=1 // pred_check
      _
    $region43: #{tpu_custom_call.1} parent=1 // pred_check_branch
      %89 = sbr.rel (0) target = $region45
    $region44: #{tpu_custom_call.1} parent=1 // pred_region
      %90 = dma.done [#allocation9], 128
    $region45: #{tpu_custom_call.1} parent=1 // pred_fallthru
      _
    // Predicated region
    $region46: #{tpu_custom_call.1} parent=1 // pred_check
      _
    $region47: #{tpu_custom_call.1} parent=1 // pred_check_branch
      %92 = sbr.rel (0) target = $region49
    $region48: #{tpu_custom_call.1} parent=1 // pred_region
      %93 = dma.done [#allocation9], 8192
    $region49: #{tpu_custom_call.1} parent=1 // pred_fallthru
      _
    %v94 = vld [vmem:[#allocation2] sm:$0xff]
    %v95 = vld [vmem:[#allocation2 + $0x8] sm:$0xff]
    %v96 = vld [vmem:[#allocation5] sm:$0xff]
    %v97 = vld [vmem:[#allocation5 + $0x8] sm:$0xff]
    %v98 = vld [vmem:[#allocation5 + $0x10] sm:$0xff]
    %v99 = vld [vmem:[#allocation5 + $0x18] sm:$0xff]
    %v100 = vld [vmem:[#allocation5 + $0x20] sm:$0xff]
    %v101 = vld [vmem:[#allocation5 + $0x28] sm:$0xff]
    %v102 = vld [vmem:[#allocation5 + $0x30] sm:$0xff]
    %v103 = vld [vmem:[#allocation5 + $0x38] sm:$0xff]
    %v104 = vld [vmem:[#allocation5 + $0x40] sm:$0xff]
    %v105 = vld [vmem:[#allocation5 + $0x48] sm:$0xff]
    %v106 = vld [vmem:[#allocation5 + $0x50] sm:$0xff]
    %v107 = vld [vmem:[#allocation5 + $0x58] sm:$0xff]
    %v108 = vld [vmem:[#allocation5 + $0x60] sm:$0xff]
    %v109 = vld [vmem:[#allocation5 + $0x68] sm:$0xff]
    %v110 = vld [vmem:[#allocation5 + $0x70] sm:$0xff]
    %v111 = vld [vmem:[#allocation5 + $0x78] sm:$0xff]
    %v112 = vld [vmem:[#allocation5 + $0x80] sm:$0xff]
    %v113 = vld [vmem:[#allocation5 + $0x88] sm:$0xff]
    %v114 = vld [vmem:[#allocation5 + $0x90] sm:$0xff]
    %v115 = vld [vmem:[#allocation5 + $0x98] sm:$0xff]
    %v116 = vld [vmem:[#allocation5 + $0xa0] sm:$0xff]
    %v117 = vld [vmem:[#allocation5 + $0xa8] sm:$0xff]
    %v118 = vld [vmem:[#allocation5 + $0xb0] sm:$0xff]
    %v119 = vld [vmem:[#allocation5 + $0xb8] sm:$0xff]
    %v120 = vld [vmem:[#allocation5 + $0xc0] sm:$0xff]
    %v121 = vld [vmem:[#allocation5 + $0xc8] sm:$0xff]
    %v122 = vld [vmem:[#allocation5 + $0xd0] sm:$0xff]
    %v123 = vld [vmem:[#allocation5 + $0xd8] sm:$0xff]
    %v124 = vld [vmem:[#allocation5 + $0xe0] sm:$0xff]
    %v125 = vld [vmem:[#allocation5 + $0xe8] sm:$0xff]
    %v126 = vld [vmem:[#allocation5 + $0xf0] sm:$0xff]
    %v127 = vld [vmem:[#allocation5 + $0xf8] sm:$0xff]
    %v128 = vld [vmem:[#allocation5 + $0x100] sm:$0xff]
    %v129 = vld [vmem:[#allocation5 + $0x108] sm:$0xff]
    %v130 = vld [vmem:[#allocation5 + $0x110] sm:$0xff]
    %v131 = vld [vmem:[#allocation5 + $0x118] sm:$0xff]
    %v132 = vld [vmem:[#allocation5 + $0x120] sm:$0xff]
    %v133 = vld [vmem:[#allocation5 + $0x128] sm:$0xff]
    %v134 = vld [vmem:[#allocation5 + $0x130] sm:$0xff]
    %v135 = vld [vmem:[#allocation5 + $0x138] sm:$0xff]
    %v136 = vld [vmem:[#allocation5 + $0x140] sm:$0xff]
    %v137 = vld [vmem:[#allocation5 + $0x148] sm:$0xff]
    %v138 = vld [vmem:[#allocation5 + $0x150] sm:$0xff]
    %v139 = vld [vmem:[#allocation5 + $0x158] sm:$0xff]
    %v140 = vld [vmem:[#allocation5 + $0x160] sm:$0xff]
    %v141 = vld [vmem:[#allocation5 + $0x168] sm:$0xff]
    %v142 = vld [vmem:[#allocation5 + $0x170] sm:$0xff]
    %v143 = vld [vmem:[#allocation5 + $0x178] sm:$0xff]
    %v144 = vld [vmem:[#allocation5 + $0x180] sm:$0xff]
    %v145 = vld [vmem:[#allocation5 + $0x188] sm:$0xff]
    %v146 = vld [vmem:[#allocation5 + $0x190] sm:$0xff]
    %v147 = vld [vmem:[#allocation5 + $0x198] sm:$0xff]
    %v148 = vld [vmem:[#allocation5 + $0x1a0] sm:$0xff]
    %v149 = vld [vmem:[#allocation5 + $0x1a8] sm:$0xff]
    %v150 = vld [vmem:[#allocation5 + $0x1b0] sm:$0xff]
    %v151 = vld [vmem:[#allocation5 + $0x1b8] sm:$0xff]
    %v152 = vld [vmem:[#allocation5 + $0x1c0] sm:$0xff]
    %v153 = vld [vmem:[#allocation5 + $0x1c8] sm:$0xff]
    %v154 = vld [vmem:[#allocation5 + $0x1d0] sm:$0xff]
    %v155 = vld [vmem:[#allocation5 + $0x1d8] sm:$0xff]
    %v156 = vld [vmem:[#allocation5 + $0x1e0] sm:$0xff]
    %v157 = vld [vmem:[#allocation5 + $0x1e8] sm:$0xff]
    %v158 = vld [vmem:[#allocation5 + $0x1f0] sm:$0xff]
    %v159 = vld [vmem:[#allocation5 + $0x1f8] sm:$0xff]
    %v160 = vld [vmem:[#allocation5 + $0x200] sm:$0xff]
    %v161 = vld [vmem:[#allocation5 + $0x208] sm:$0xff]
    %v162 = vld [vmem:[#allocation5 + $0x210] sm:$0xff]
    %v163 = vld [vmem:[#allocation5 + $0x218] sm:$0xff]
    %v164 = vld [vmem:[#allocation5 + $0x220] sm:$0xff]
    %v165 = vld [vmem:[#allocation5 + $0x228] sm:$0xff]
    %v166 = vld [vmem:[#allocation5 + $0x230] sm:$0xff]
    %v167 = vld [vmem:[#allocation5 + $0x238] sm:$0xff]
    %v168 = vld [vmem:[#allocation5 + $0x240] sm:$0xff]
    %v169 = vld [vmem:[#allocation5 + $0x248] sm:$0xff]
    %v170 = vld [vmem:[#allocation5 + $0x250] sm:$0xff]
    %v171 = vld [vmem:[#allocation5 + $0x258] sm:$0xff]
    %v172 = vld [vmem:[#allocation5 + $0x260] sm:$0xff]
    %v173 = vld [vmem:[#allocation5 + $0x268] sm:$0xff]
    %v174 = vld [vmem:[#allocation5 + $0x270] sm:$0xff]
    %v175 = vld [vmem:[#allocation5 + $0x278] sm:$0xff]
    %v176 = vld [vmem:[#allocation5 + $0x280] sm:$0xff]
    %v177 = vld [vmem:[#allocation5 + $0x288] sm:$0xff]
    %v178 = vld [vmem:[#allocation5 + $0x290] sm:$0xff]
    %v179 = vld [vmem:[#allocation5 + $0x298] sm:$0xff]
    %v180 = vld [vmem:[#allocation5 + $0x2a0] sm:$0xff]
    %v181 = vld [vmem:[#allocation5 + $0x2a8] sm:$0xff]
    %v182 = vld [vmem:[#allocation5 + $0x2b0] sm:$0xff]
    %v183 = vld [vmem:[#allocation5 + $0x2b8] sm:$0xff]
    %v184 = vld [vmem:[#allocation5 + $0x2c0] sm:$0xff]
    %v185 = vld [vmem:[#allocation5 + $0x2c8] sm:$0xff]
    %v186 = vld [vmem:[#allocation5 + $0x2d0] sm:$0xff]
    %v187 = vld [vmem:[#allocation5 + $0x2d8] sm:$0xff]
    %v188 = vld [vmem:[#allocation5 + $0x2e0] sm:$0xff]
    %v189 = vld [vmem:[#allocation5 + $0x2e8] sm:$0xff]
    %v190 = vld [vmem:[#allocation5 + $0x2f0] sm:$0xff]
    %v191 = vld [vmem:[#allocation5 + $0x2f8] sm:$0xff]
    %v192 = vld [vmem:[#allocation5 + $0x300] sm:$0xff]
    %v193 = vld [vmem:[#allocation5 + $0x308] sm:$0xff]
    %v194 = vld [vmem:[#allocation5 + $0x310] sm:$0xff]
    %v195 = vld [vmem:[#allocation5 + $0x318] sm:$0xff]
    %v196 = vld [vmem:[#allocation5 + $0x320] sm:$0xff]
    %v197 = vld [vmem:[#allocation5 + $0x328] sm:$0xff]
    %v198 = vld [vmem:[#allocation5 + $0x330] sm:$0xff]
    %v199 = vld [vmem:[#allocation5 + $0x338] sm:$0xff]
    %v200 = vld [vmem:[#allocation5 + $0x340] sm:$0xff]
    %v201 = vld [vmem:[#allocation5 + $0x348] sm:$0xff]
    %v202 = vld [vmem:[#allocation5 + $0x350] sm:$0xff]
    %v203 = vld [vmem:[#allocation5 + $0x358] sm:$0xff]
    %v204 = vld [vmem:[#allocation5 + $0x360] sm:$0xff]
    %v205 = vld [vmem:[#allocation5 + $0x368] sm:$0xff]
    %v206 = vld [vmem:[#allocation5 + $0x370] sm:$0xff]
    %v207 = vld [vmem:[#allocation5 + $0x378] sm:$0xff]
    %v208 = vld [vmem:[#allocation5 + $0x380] sm:$0xff]
    %v209 = vld [vmem:[#allocation5 + $0x388] sm:$0xff]
    %v210 = vld [vmem:[#allocation5 + $0x390] sm:$0xff]
    %v211 = vld [vmem:[#allocation5 + $0x398] sm:$0xff]
    %v212 = vld [vmem:[#allocation5 + $0x3a0] sm:$0xff]
    %v213 = vld [vmem:[#allocation5 + $0x3a8] sm:$0xff]
    %v214 = vld [vmem:[#allocation5 + $0x3b0] sm:$0xff]
    %v215 = vld [vmem:[#allocation5 + $0x3b8] sm:$0xff]
    %v216 = vld [vmem:[#allocation5 + $0x3c0] sm:$0xff]
    %v217 = vld [vmem:[#allocation5 + $0x3c8] sm:$0xff]
    %v218 = vld [vmem:[#allocation5 + $0x3d0] sm:$0xff]
    %v219 = vld [vmem:[#allocation5 + $0x3d8] sm:$0xff]
    %v220 = vld [vmem:[#allocation5 + $0x3e0] sm:$0xff]
    %v221 = vld [vmem:[#allocation5 + $0x3e8] sm:$0xff]
    %v222 = vld [vmem:[#allocation5 + $0x3f0] sm:$0xff]
    %v223 = vld [vmem:[#allocation5 + $0x3f8] sm:$0xff]
    %v224 = vld [vmem:[#allocation5 + $0x400] sm:$0xff]
    %v225 = vld [vmem:[#allocation5 + $0x408] sm:$0xff]
    %v226 = vld [vmem:[#allocation5 + $0x410] sm:$0xff]
    %v227 = vld [vmem:[#allocation5 + $0x418] sm:$0xff]
    %v228 = vld [vmem:[#allocation5 + $0x420] sm:$0xff]
    %v229 = vld [vmem:[#allocation5 + $0x428] sm:$0xff]
    %v230 = vld [vmem:[#allocation5 + $0x430] sm:$0xff]
    %v231 = vld [vmem:[#allocation5 + $0x438] sm:$0xff]
    %v232 = vld [vmem:[#allocation5 + $0x440] sm:$0xff]
    %v233 = vld [vmem:[#allocation5 + $0x448] sm:$0xff]
    %v234 = vld [vmem:[#allocation5 + $0x450] sm:$0xff]
    %v235 = vld [vmem:[#allocation5 + $0x458] sm:$0xff]
    %v236 = vld [vmem:[#allocation5 + $0x460] sm:$0xff]
    %v237 = vld [vmem:[#allocation5 + $0x468] sm:$0xff]
    %v238 = vld [vmem:[#allocation5 + $0x470] sm:$0xff]
    %v239 = vld [vmem:[#allocation5 + $0x478] sm:$0xff]
    %v240 = vld [vmem:[#allocation5 + $0x480] sm:$0xff]
    %v241 = vld [vmem:[#allocation5 + $0x488] sm:$0xff]
    %v242 = vld [vmem:[#allocation5 + $0x490] sm:$0xff]
    %v243 = vld [vmem:[#allocation5 + $0x498] sm:$0xff]
    %v244 = vld [vmem:[#allocation5 + $0x4a0] sm:$0xff]
    %v245 = vld [vmem:[#allocation5 + $0x4a8] sm:$0xff]
    %v246 = vld [vmem:[#allocation5 + $0x4b0] sm:$0xff]
    %v247 = vld [vmem:[#allocation5 + $0x4b8] sm:$0xff]
    %v248 = vld [vmem:[#allocation5 + $0x4c0] sm:$0xff]
    %v249 = vld [vmem:[#allocation5 + $0x4c8] sm:$0xff]
    %v250 = vld [vmem:[#allocation5 + $0x4d0] sm:$0xff]
    %v251 = vld [vmem:[#allocation5 + $0x4d8] sm:$0xff]
    %v252 = vld [vmem:[#allocation5 + $0x4e0] sm:$0xff]
    %v253 = vld [vmem:[#allocation5 + $0x4e8] sm:$0xff]
    %v254 = vld [vmem:[#allocation5 + $0x4f0] sm:$0xff]
    %v255 = vld [vmem:[#allocation5 + $0x4f8] sm:$0xff]
    %v256 = vld [vmem:[#allocation5 + $0x500] sm:$0xff]
    %v257 = vld [vmem:[#allocation5 + $0x508] sm:$0xff]
    %v258 = vld [vmem:[#allocation5 + $0x510] sm:$0xff]
    %v259 = vld [vmem:[#allocation5 + $0x518] sm:$0xff]
    %v260 = vld [vmem:[#allocation5 + $0x520] sm:$0xff]
    %v261 = vld [vmem:[#allocation5 + $0x528] sm:$0xff]
    %v262 = vld [vmem:[#allocation5 + $0x530] sm:$0xff]
    %v263 = vld [vmem:[#allocation5 + $0x538] sm:$0xff]
    %v264 = vld [vmem:[#allocation5 + $0x540] sm:$0xff]
    %v265 = vld [vmem:[#allocation5 + $0x548] sm:$0xff]
    %v266 = vld [vmem:[#allocation5 + $0x550] sm:$0xff]
    %v267 = vld [vmem:[#allocation5 + $0x558] sm:$0xff]
    %v268 = vld [vmem:[#allocation5 + $0x560] sm:$0xff]
    %v269 = vld [vmem:[#allocation5 + $0x568] sm:$0xff]
    %v270 = vld [vmem:[#allocation5 + $0x570] sm:$0xff]
    %v271 = vld [vmem:[#allocation5 + $0x578] sm:$0xff]
    %v272 = vld [vmem:[#allocation5 + $0x580] sm:$0xff]
    %v273 = vld [vmem:[#allocation5 + $0x588] sm:$0xff]
    %v274 = vld [vmem:[#allocation5 + $0x590] sm:$0xff]
    %v275 = vld [vmem:[#allocation5 + $0x598] sm:$0xff]
    %v276 = vld [vmem:[#allocation5 + $0x5a0] sm:$0xff]
    %v277 = vld [vmem:[#allocation5 + $0x5a8] sm:$0xff]
    %v278 = vld [vmem:[#allocation5 + $0x5b0] sm:$0xff]
    %v279 = vld [vmem:[#allocation5 + $0x5b8] sm:$0xff]
    %v280 = vld [vmem:[#allocation5 + $0x5c0] sm:$0xff]
    %v281 = vld [vmem:[#allocation5 + $0x5c8] sm:$0xff]
    %v282 = vld [vmem:[#allocation5 + $0x5d0] sm:$0xff]
    %v283 = vld [vmem:[#allocation5 + $0x5d8] sm:$0xff]
    %v284 = vld [vmem:[#allocation5 + $0x5e0] sm:$0xff]
    %v285 = vld [vmem:[#allocation5 + $0x5e8] sm:$0xff]
    %v286 = vld [vmem:[#allocation5 + $0x5f0] sm:$0xff]
    %v287 = vld [vmem:[#allocation5 + $0x5f8] sm:$0xff]
    %v288 = vld [vmem:[#allocation5 + $0x600] sm:$0xff]
    %v289 = vld [vmem:[#allocation5 + $0x608] sm:$0xff]
    %v290 = vld [vmem:[#allocation5 + $0x610] sm:$0xff]
    %v291 = vld [vmem:[#allocation5 + $0x618] sm:$0xff]
    %v292 = vld [vmem:[#allocation5 + $0x620] sm:$0xff]
    %v293 = vld [vmem:[#allocation5 + $0x628] sm:$0xff]
    %v294 = vld [vmem:[#allocation5 + $0x630] sm:$0xff]
    %v295 = vld [vmem:[#allocation5 + $0x638] sm:$0xff]
    %v296 = vld [vmem:[#allocation5 + $0x640] sm:$0xff]
    %v297 = vld [vmem:[#allocation5 + $0x648] sm:$0xff]
    %v298 = vld [vmem:[#allocation5 + $0x650] sm:$0xff]
    %v299 = vld [vmem:[#allocation5 + $0x658] sm:$0xff]
    %v300 = vld [vmem:[#allocation5 + $0x660] sm:$0xff]
    %v301 = vld [vmem:[#allocation5 + $0x668] sm:$0xff]
    %v302 = vld [vmem:[#allocation5 + $0x670] sm:$0xff]
    %v303 = vld [vmem:[#allocation5 + $0x678] sm:$0xff]
    %v304 = vld [vmem:[#allocation5 + $0x680] sm:$0xff]
    %v305 = vld [vmem:[#allocation5 + $0x688] sm:$0xff]
    %v306 = vld [vmem:[#allocation5 + $0x690] sm:$0xff]
    %v307 = vld [vmem:[#allocation5 + $0x698] sm:$0xff]
    %v308 = vld [vmem:[#allocation5 + $0x6a0] sm:$0xff]
    %v309 = vld [vmem:[#allocation5 + $0x6a8] sm:$0xff]
    %v310 = vld [vmem:[#allocation5 + $0x6b0] sm:$0xff]
    %v311 = vld [vmem:[#allocation5 + $0x6b8] sm:$0xff]
    %v312 = vld [vmem:[#allocation5 + $0x6c0] sm:$0xff]
    %v313 = vld [vmem:[#allocation5 + $0x6c8] sm:$0xff]
    %v314 = vld [vmem:[#allocation5 + $0x6d0] sm:$0xff]
    %v315 = vld [vmem:[#allocation5 + $0x6d8] sm:$0xff]
    %v316 = vld [vmem:[#allocation5 + $0x6e0] sm:$0xff]
    %v317 = vld [vmem:[#allocation5 + $0x6e8] sm:$0xff]
    %v318 = vld [vmem:[#allocation5 + $0x6f0] sm:$0xff]
    %v319 = vld [vmem:[#allocation5 + $0x6f8] sm:$0xff]
    %v320 = vld [vmem:[#allocation5 + $0x700] sm:$0xff]
    %v321 = vld [vmem:[#allocation5 + $0x708] sm:$0xff]
    %v322 = vld [vmem:[#allocation5 + $0x710] sm:$0xff]
    %v323 = vld [vmem:[#allocation5 + $0x718] sm:$0xff]
    %v324 = vld [vmem:[#allocation5 + $0x720] sm:$0xff]
    %v325 = vld [vmem:[#allocation5 + $0x728] sm:$0xff]
    %v326 = vld [vmem:[#allocation5 + $0x730] sm:$0xff]
    %v327 = vld [vmem:[#allocation5 + $0x738] sm:$0xff]
    %v328 = vld [vmem:[#allocation5 + $0x740] sm:$0xff]
    %v329 = vld [vmem:[#allocation5 + $0x748] sm:$0xff]
    %v330 = vld [vmem:[#allocation5 + $0x750] sm:$0xff]
    %v331 = vld [vmem:[#allocation5 + $0x758] sm:$0xff]
    %v332 = vld [vmem:[#allocation5 + $0x760] sm:$0xff]
    %v333 = vld [vmem:[#allocation5 + $0x768] sm:$0xff]
    %v334 = vld [vmem:[#allocation5 + $0x770] sm:$0xff]
    %v335 = vld [vmem:[#allocation5 + $0x778] sm:$0xff]
    %v336 = vld [vmem:[#allocation5 + $0x780] sm:$0xff]
    %v337 = vld [vmem:[#allocation5 + $0x788] sm:$0xff]
    %v338 = vld [vmem:[#allocation5 + $0x790] sm:$0xff]
    %v339 = vld [vmem:[#allocation5 + $0x798] sm:$0xff]
    %v340 = vld [vmem:[#allocation5 + $0x7a0] sm:$0xff]
    %v341 = vld [vmem:[#allocation5 + $0x7a8] sm:$0xff]
    %v342 = vld [vmem:[#allocation5 + $0x7b0] sm:$0xff]
    %v343 = vld [vmem:[#allocation5 + $0x7b8] sm:$0xff]
    %v344 = vld [vmem:[#allocation5 + $0x7c0] sm:$0xff]
    %v345 = vld [vmem:[#allocation5 + $0x7c8] sm:$0xff]
    %v346 = vld [vmem:[#allocation5 + $0x7d0] sm:$0xff]
    %v347 = vld [vmem:[#allocation5 + $0x7d8] sm:$0xff]
    %v348 = vld [vmem:[#allocation5 + $0x7e0] sm:$0xff]
    %v349 = vld [vmem:[#allocation5 + $0x7e8] sm:$0xff]
    %v350 = vld [vmem:[#allocation5 + $0x7f0] sm:$0xff]
    %v351 = vld [vmem:[#allocation5 + $0x7f8] sm:$0xff]
    %v352 = vld [vmem:[#allocation8] sm:$0xff]
    %v354 = vlaneseq
    %v355 = vshrl.u32 %v354, 7
    %v356 = vsub.s32 0, %v355
    %v357 = vrot.slane %v352, %v356
    %v358 = vlaneseq
    %v359 = vshrl.u32 %v358, 7
    %v360 = vsub.s32 1, %v359
    %v361 = vrot.slane %v352, %v360
    %v362 = vlaneseq
    %v363 = vshrl.u32 %v362, 7
    %v364 = vsub.s32 2, %v363
    %v365 = vrot.slane %v352, %v364
    %v366 = vlaneseq
    %v367 = vshrl.u32 %v366, 7
    %v368 = vsub.s32 3, %v367
    %v369 = vrot.slane %v352, %v368
    %v370 = vlaneseq
    %v371 = vshrl.u32 %v370, 7
    %v372 = vsub.s32 4, %v371
    %v373 = vrot.slane %v352, %v372
    %v374 = vlaneseq
    %v375 = vshrl.u32 %v374, 7
    %v376 = vsub.s32 5, %v375
    %v377 = vrot.slane %v352, %v376
    %v378 = vlaneseq
    %v379 = vshrl.u32 %v378, 7
    %v380 = vsub.s32 6, %v379
    %v381 = vrot.slane %v352, %v380
    %v382 = vlaneseq
    %v383 = vshrl.u32 %v382, 7
    %v384 = vsub.s32 7, %v383
    %v385 = vrot.slane %v352, %v384
    %394 = vmatprep.subr.mxu0 %v217
    %395 = vmatpush1.msra.mxu0 %v216
    %396 = vmatprep.subr.mxu0 %v209
    %397 = vmatpush1.msra.mxu0 %v208
    %398 = vmatprep.subr.mxu0 %v201
    %399 = vmatpush1.msra.mxu0 %v200
    %400 = vmatprep.subr.mxu0 %v193
    %401 = vmatpush1.msra.mxu0 %v192
    %402 = vmatprep.subr.mxu0 %v185
    %403 = vmatpush1.msra.mxu0 %v184
    %404 = vmatprep.subr.mxu0 %v177
    %405 = vmatpush1.msra.mxu0 %v176
    %406 = vmatprep.subr.mxu0 %v169
    %407 = vmatpush1.msra.mxu0 %v168
    %408 = vmatprep.subr.mxu0 %v161
    %409 = vmatpush1.msra.mxu0 %v160
    %410 = vmatprep.subr.mxu0 %v153
    %411 = vmatpush1.msra.mxu0 %v152
    %412 = vmatprep.subr.mxu0 %v145
    %413 = vmatpush1.msra.mxu0 %v144
    %414 = vmatprep.subr.mxu0 %v137
    %415 = vmatpush1.msra.mxu0 %v136
    %416 = vmatprep.subr.mxu0 %v129
    %417 = vmatpush1.msra.mxu0 %v128
    %418 = vmatprep.subr.mxu0 %v121
    %419 = vmatpush1.msra.mxu0 %v120
    %420 = vmatprep.subr.mxu0 %v113
    %421 = vmatpush1.msra.mxu0 %v112
    %422 = vmatprep.subr.mxu0 %v105
    %423 = vmatpush1.msra.mxu0 %v104
    %424 = vmatprep.subr.mxu0 %v97
    %425 = vmatpush1.msra.mxu0 %v96
    %426 = vmatprep.subr.mxu0 %v345
    %427 = vmatpush2.msra.mxu0 %v344
    %428 = vmatprep.subr.mxu0 %v337
    %429 = vmatpush2.msra.mxu0 %v336
    %430 = vmatprep.subr.mxu0 %v329
    %431 = vmatpush2.msra.mxu0 %v328
    %432 = vmatprep.subr.mxu0 %v321
    %433 = vmatpush2.msra.mxu0 %v320
    %434 = vmatprep.subr.mxu0 %v313
    %435 = vmatpush2.msra.mxu0 %v312
    %436 = vmatprep.subr.mxu0 %v305
    %437 = vmatpush2.msra.mxu0 %v304
    %438 = vmatprep.subr.mxu0 %v297
    %439 = vmatpush2.msra.mxu0 %v296
    %440 = vmatprep.subr.mxu0 %v289
    %441 = vmatpush2.msra.mxu0 %v288
    %442 = vmatprep.subr.mxu0 %v281
    %443 = vmatpush2.msra.mxu0 %v280
    %444 = vmatprep.subr.mxu0 %v273
    %445 = vmatpush2.msra.mxu0 %v272
    %446 = vmatprep.subr.mxu0 %v265
    %447 = vmatpush2.msra.mxu0 %v264
    %448 = vmatprep.subr.mxu0 %v257
    %449 = vmatpush2.msra.mxu0 %v256
    %450 = vmatprep.subr.mxu0 %v249
    %451 = vmatpush2.msra.mxu0 %v248
    %452 = vmatprep.subr.mxu0 %v241
    %453 = vmatpush2.msra.mxu0 %v240
    %454 = vmatprep.subr.mxu0 %v233
    %455 = vmatpush2.msra.mxu0 %v232
    %456 = vmatprep.subr.mxu0 %v225
    %457 = vmatpush2.msra.mxu0 %v224
    %458 = vmatprep.mubr.f32.mxu0 %v95
    %459 = vmatmul.mubr.f32.gmra.mxu0 %v94
    %v460 = vpop.f32.mrf.mxu0
    %v461 = vadd.f32 %v357, %v460
    %v462 = vpop.f32.mrf.mxu0
    %v463 = vadd.f32 %v361, %v462
    %464 = vdwg.mxu0
    %465 = vmatprep.subr.mxu0 %v219
    %466 = vmatpush1.msra.mxu0 %v218
    %467 = vmatprep.subr.mxu0 %v211
    %468 = vmatpush1.msra.mxu0 %v210
    %469 = vmatprep.subr.mxu0 %v203
    %470 = vmatpush1.msra.mxu0 %v202
    %471 = vmatprep.subr.mxu0 %v195
    %472 = vmatpush1.msra.mxu0 %v194
    %473 = vmatprep.subr.mxu0 %v187
    %474 = vmatpush1.msra.mxu0 %v186
    %475 = vmatprep.subr.mxu0 %v179
    %476 = vmatpush1.msra.mxu0 %v178
    %477 = vmatprep.subr.mxu0 %v171
    %478 = vmatpush1.msra.mxu0 %v170
    %479 = vmatprep.subr.mxu0 %v163
    %480 = vmatpush1.msra.mxu0 %v162
    %481 = vmatprep.subr.mxu0 %v155
    %482 = vmatpush1.msra.mxu0 %v154
    %483 = vmatprep.subr.mxu0 %v147
    %484 = vmatpush1.msra.mxu0 %v146
    %485 = vmatprep.subr.mxu0 %v139
    %486 = vmatpush1.msra.mxu0 %v138
    %487 = vmatprep.subr.mxu0 %v131
    %488 = vmatpush1.msra.mxu0 %v130
    %489 = vmatprep.subr.mxu0 %v123
    %490 = vmatpush1.msra.mxu0 %v122
    %491 = vmatprep.subr.mxu0 %v115
    %492 = vmatpush1.msra.mxu0 %v114
    %493 = vmatprep.subr.mxu0 %v107
    %494 = vmatpush1.msra.mxu0 %v106
    %495 = vmatprep.subr.mxu0 %v99
    %496 = vmatpush1.msra.mxu0 %v98
    %497 = vmatprep.subr.mxu0 %v347
    %498 = vmatpush2.msra.mxu0 %v346
    %499 = vmatprep.subr.mxu0 %v339
    %500 = vmatpush2.msra.mxu0 %v338
    %501 = vmatprep.subr.mxu0 %v331
    %502 = vmatpush2.msra.mxu0 %v330
    %503 = vmatprep.subr.mxu0 %v323
    %504 = vmatpush2.msra.mxu0 %v322
    %505 = vmatprep.subr.mxu0 %v315
    %506 = vmatpush2.msra.mxu0 %v314
    %507 = vmatprep.subr.mxu0 %v307
    %508 = vmatpush2.msra.mxu0 %v306
    %509 = vmatprep.subr.mxu0 %v299
    %510 = vmatpush2.msra.mxu0 %v298
    %511 = vmatprep.subr.mxu0 %v291
    %512 = vmatpush2.msra.mxu0 %v290
    %513 = vmatprep.subr.mxu0 %v283
    %514 = vmatpush2.msra.mxu0 %v282
    %515 = vmatprep.subr.mxu0 %v275
    %516 = vmatpush2.msra.mxu0 %v274
    %517 = vmatprep.subr.mxu0 %v267
    %518 = vmatpush2.msra.mxu0 %v266
    %519 = vmatprep.subr.mxu0 %v259
    %520 = vmatpush2.msra.mxu0 %v258
    %521 = vmatprep.subr.mxu0 %v251
    %522 = vmatpush2.msra.mxu0 %v250
    %523 = vmatprep.subr.mxu0 %v243
    %524 = vmatpush2.msra.mxu0 %v242
    %525 = vmatprep.subr.mxu0 %v235
    %526 = vmatpush2.msra.mxu0 %v234
    %527 = vmatprep.subr.mxu0 %v227
    %528 = vmatpush2.msra.mxu0 %v226
    %529 = vmatprep.mubr.f32.mxu0 %v95
    %530 = vmatmul.mubr.f32.gmra.mxu0 %v94
    %v531 = vpop.f32.mrf.mxu0
    %v532 = vadd.f32 %v365, %v531
    %v533 = vpop.f32.mrf.mxu0
    %v534 = vadd.f32 %v369, %v533
    %535 = vdwg.mxu0
    %536 = vmatprep.subr.mxu0 %v221
    %537 = vmatpush1.msra.mxu0 %v220
    %538 = vmatprep.subr.mxu0 %v213
    %539 = vmatpush1.msra.mxu0 %v212
    %540 = vmatprep.subr.mxu0 %v205
    %541 = vmatpush1.msra.mxu0 %v204
    %542 = vmatprep.subr.mxu0 %v197
    %543 = vmatpush1.msra.mxu0 %v196
    %544 = vmatprep.subr.mxu0 %v189
    %545 = vmatpush1.msra.mxu0 %v188
    %546 = vmatprep.subr.mxu0 %v181
    %547 = vmatpush1.msra.mxu0 %v180
    %548 = vmatprep.subr.mxu0 %v173
    %549 = vmatpush1.msra.mxu0 %v172
    %550 = vmatprep.subr.mxu0 %v165
    %551 = vmatpush1.msra.mxu0 %v164
    %552 = vmatprep.subr.mxu0 %v157
    %553 = vmatpush1.msra.mxu0 %v156
    %554 = vmatprep.subr.mxu0 %v149
    %555 = vmatpush1.msra.mxu0 %v148
    %556 = vmatprep.subr.mxu0 %v141
    %557 = vmatpush1.msra.mxu0 %v140
    %558 = vmatprep.subr.mxu0 %v133
    %559 = vmatpush1.msra.mxu0 %v132
    %560 = vmatprep.subr.mxu0 %v125
    %561 = vmatpush1.msra.mxu0 %v124
    %562 = vmatprep.subr.mxu0 %v117
    %563 = vmatpush1.msra.mxu0 %v116
    %564 = vmatprep.subr.mxu0 %v109
    %565 = vmatpush1.msra.mxu0 %v108
    %566 = vmatprep.subr.mxu0 %v101
    %567 = vmatpush1.msra.mxu0 %v100
    %568 = vmatprep.subr.mxu0 %v349
    %569 = vmatpush2.msra.mxu0 %v348
    %570 = vmatprep.subr.mxu0 %v341
    %571 = vmatpush2.msra.mxu0 %v340
    %572 = vmatprep.subr.mxu0 %v333
    %573 = vmatpush2.msra.mxu0 %v332
    %574 = vmatprep.subr.mxu0 %v325
    %575 = vmatpush2.msra.mxu0 %v324
    %576 = vmatprep.subr.mxu0 %v317
    %577 = vmatpush2.msra.mxu0 %v316
    %578 = vmatprep.subr.mxu0 %v309
    %579 = vmatpush2.msra.mxu0 %v308
    %580 = vmatprep.subr.mxu0 %v301
    %581 = vmatpush2.msra.mxu0 %v300
    %582 = vmatprep.subr.mxu0 %v293
    %583 = vmatpush2.msra.mxu0 %v292
    %584 = vmatprep.subr.mxu0 %v285
    %585 = vmatpush2.msra.mxu0 %v284
    %586 = vmatprep.subr.mxu0 %v277
    %587 = vmatpush2.msra.mxu0 %v276
    %588 = vmatprep.subr.mxu0 %v269
    %589 = vmatpush2.msra.mxu0 %v268
    %590 = vmatprep.subr.mxu0 %v261
    %591 = vmatpush2.msra.mxu0 %v260
    %592 = vmatprep.subr.mxu0 %v253
    %593 = vmatpush2.msra.mxu0 %v252
    %594 = vmatprep.subr.mxu0 %v245
    %595 = vmatpush2.msra.mxu0 %v244
    %596 = vmatprep.subr.mxu0 %v237
    %597 = vmatpush2.msra.mxu0 %v236
    %598 = vmatprep.subr.mxu0 %v229
    %599 = vmatpush2.msra.mxu0 %v228
    %600 = vmatprep.mubr.f32.mxu0 %v95
    %601 = vmatmul.mubr.f32.gmra.mxu0 %v94
    %v602 = vpop.f32.mrf.mxu0
    %v603 = vadd.f32 %v373, %v602
    %v604 = vpop.f32.mrf.mxu0
    %v605 = vadd.f32 %v377, %v604
    %606 = vdwg.mxu0
    %607 = vmatprep.subr.mxu0 %v223
    %608 = vmatpush1.msra.mxu0 %v222
    %609 = vmatprep.subr.mxu0 %v215
    %610 = vmatpush1.msra.mxu0 %v214
    %611 = vmatprep.subr.mxu0 %v207
    %612 = vmatpush1.msra.mxu0 %v206
    %613 = vmatprep.subr.mxu0 %v199
    %614 = vmatpush1.msra.mxu0 %v198
    %615 = vmatprep.subr.mxu0 %v191
    %616 = vmatpush1.msra.mxu0 %v190
    %617 = vmatprep.subr.mxu0 %v183
    %618 = vmatpush1.msra.mxu0 %v182
    %619 = vmatprep.subr.mxu0 %v175
    %620 = vmatpush1.msra.mxu0 %v174
    %621 = vmatprep.subr.mxu0 %v167
    %622 = vmatpush1.msra.mxu0 %v166
    %623 = vmatprep.subr.mxu0 %v159
    %624 = vmatpush1.msra.mxu0 %v158
    %625 = vmatprep.subr.mxu0 %v151
    %626 = vmatpush1.msra.mxu0 %v150
    %627 = vmatprep.subr.mxu0 %v143
    %628 = vmatpush1.msra.mxu0 %v142
    %629 = vmatprep.subr.mxu0 %v135
    %630 = vmatpush1.msra.mxu0 %v134
    %631 = vmatprep.subr.mxu0 %v127
    %632 = vmatpush1.msra.mxu0 %v126
    %633 = vmatprep.subr.mxu0 %v119
    %634 = vmatpush1.msra.mxu0 %v118
    %635 = vmatprep.subr.mxu0 %v111
    %636 = vmatpush1.msra.mxu0 %v110
    %637 = vmatprep.subr.mxu0 %v103
    %638 = vmatpush1.msra.mxu0 %v102
    %639 = vmatprep.subr.mxu0 %v351
    %640 = vmatpush2.msra.mxu0 %v350
    %641 = vmatprep.subr.mxu0 %v343
    %642 = vmatpush2.msra.mxu0 %v342
    %643 = vmatprep.subr.mxu0 %v335
    %644 = vmatpush2.msra.mxu0 %v334
    %645 = vmatprep.subr.mxu0 %v327
    %646 = vmatpush2.msra.mxu0 %v326
    %647 = vmatprep.subr.mxu0 %v319
    %648 = vmatpush2.msra.mxu0 %v318
    %649 = vmatprep.subr.mxu0 %v311
    %650 = vmatpush2.msra.mxu0 %v310
    %651 = vmatprep.subr.mxu0 %v303
    %652 = vmatpush2.msra.mxu0 %v302
    %653 = vmatprep.subr.mxu0 %v295
    %654 = vmatpush2.msra.mxu0 %v294
    %655 = vmatprep.subr.mxu0 %v287
    %656 = vmatpush2.msra.mxu0 %v286
    %657 = vmatprep.subr.mxu0 %v279
    %658 = vmatpush2.msra.mxu0 %v278
    %659 = vmatprep.subr.mxu0 %v271
    %660 = vmatpush2.msra.mxu0 %v270
    %661 = vmatprep.subr.mxu0 %v263
    %662 = vmatpush2.msra.mxu0 %v262
    %663 = vmatprep.subr.mxu0 %v255
    %664 = vmatpush2.msra.mxu0 %v254
    %665 = vmatprep.subr.mxu0 %v247
    %666 = vmatpush2.msra.mxu0 %v246
    %667 = vmatprep.subr.mxu0 %v239
    %668 = vmatpush2.msra.mxu0 %v238
    %669 = vmatprep.subr.mxu0 %v231
    %670 = vmatpush2.msra.mxu0 %v230
    %671 = vmatprep.mubr.f32.mxu0 %v95
    %672 = vmatmul.mubr.f32.gmra.mxu0 %v94
    %v673 = vpop.f32.mrf.mxu0
    %v674 = vadd.f32 %v381, %v673
    %v675 = vpop.f32.mrf.mxu0
    %v676 = vadd.f32 %v385, %v675
    %677 = vdwg.mxu0
    %v678 = vld [vmem:[#allocation7] sm:$0xff]
    %v679 = vld [vmem:[#allocation7 + $0x8] sm:$0xff]
    %v680 = vld [vmem:[#allocation7 + $0x10] sm:$0xff]
    %v681 = vld [vmem:[#allocation7 + $0x18] sm:$0xff]
    %v682 = vld [vmem:[#allocation7 + $0x20] sm:$0xff]
    %v683 = vld [vmem:[#allocation7 + $0x28] sm:$0xff]
    %v684 = vld [vmem:[#allocation7 + $0x30] sm:$0xff]
    %v685 = vld [vmem:[#allocation7 + $0x38] sm:$0xff]
    %v686 = vld [vmem:[#allocation7 + $0x40] sm:$0xff]
    %v687 = vld [vmem:[#allocation7 + $0x48] sm:$0xff]
    %v688 = vld [vmem:[#allocation7 + $0x50] sm:$0xff]
    %v689 = vld [vmem:[#allocation7 + $0x58] sm:$0xff]
    %v690 = vld [vmem:[#allocation7 + $0x60] sm:$0xff]
    %v691 = vld [vmem:[#allocation7 + $0x68] sm:$0xff]
    %v692 = vld [vmem:[#allocation7 + $0x70] sm:$0xff]
    %v693 = vld [vmem:[#allocation7 + $0x78] sm:$0xff]
    %v694 = vld [vmem:[#allocation7 + $0x80] sm:$0xff]
    %v695 = vld [vmem:[#allocation7 + $0x88] sm:$0xff]
    %v696 = vld [vmem:[#allocation7 + $0x90] sm:$0xff]
    %v697 = vld [vmem:[#allocation7 + $0x98] sm:$0xff]
    %v698 = vld [vmem:[#allocation7 + $0xa0] sm:$0xff]
    %v699 = vld [vmem:[#allocation7 + $0xa8] sm:$0xff]
    %v700 = vld [vmem:[#allocation7 + $0xb0] sm:$0xff]
    %v701 = vld [vmem:[#allocation7 + $0xb8] sm:$0xff]
    %v702 = vld [vmem:[#allocation7 + $0xc0] sm:$0xff]
    %v703 = vld [vmem:[#allocation7 + $0xc8] sm:$0xff]
    %v704 = vld [vmem:[#allocation7 + $0xd0] sm:$0xff]
    %v705 = vld [vmem:[#allocation7 + $0xd8] sm:$0xff]
    %v706 = vld [vmem:[#allocation7 + $0xe0] sm:$0xff]
    %v707 = vld [vmem:[#allocation7 + $0xe8] sm:$0xff]
    %v708 = vld [vmem:[#allocation7 + $0xf0] sm:$0xff]
    %v709 = vld [vmem:[#allocation7 + $0xf8] sm:$0xff]
    %v710 = vld [vmem:[#allocation7 + $0x100] sm:$0xff]
    %v711 = vld [vmem:[#allocation7 + $0x108] sm:$0xff]
    %v712 = vld [vmem:[#allocation7 + $0x110] sm:$0xff]
    %v713 = vld [vmem:[#allocation7 + $0x118] sm:$0xff]
    %v714 = vld [vmem:[#allocation7 + $0x120] sm:$0xff]
    %v715 = vld [vmem:[#allocation7 + $0x128] sm:$0xff]
    %v716 = vld [vmem:[#allocation7 + $0x130] sm:$0xff]
    %v717 = vld [vmem:[#allocation7 + $0x138] sm:$0xff]
    %v718 = vld [vmem:[#allocation7 + $0x140] sm:$0xff]
    %v719 = vld [vmem:[#allocation7 + $0x148] sm:$0xff]
    %v720 = vld [vmem:[#allocation7 + $0x150] sm:$0xff]
    %v721 = vld [vmem:[#allocation7 + $0x158] sm:$0xff]
    %v722 = vld [vmem:[#allocation7 + $0x160] sm:$0xff]
    %v723 = vld [vmem:[#allocation7 + $0x168] sm:$0xff]
    %v724 = vld [vmem:[#allocation7 + $0x170] sm:$0xff]
    %v725 = vld [vmem:[#allocation7 + $0x178] sm:$0xff]
    %v726 = vld [vmem:[#allocation7 + $0x180] sm:$0xff]
    %v727 = vld [vmem:[#allocation7 + $0x188] sm:$0xff]
    %v728 = vld [vmem:[#allocation7 + $0x190] sm:$0xff]
    %v729 = vld [vmem:[#allocation7 + $0x198] sm:$0xff]
    %v730 = vld [vmem:[#allocation7 + $0x1a0] sm:$0xff]
    %v731 = vld [vmem:[#allocation7 + $0x1a8] sm:$0xff]
    %v732 = vld [vmem:[#allocation7 + $0x1b0] sm:$0xff]
    %v733 = vld [vmem:[#allocation7 + $0x1b8] sm:$0xff]
    %v734 = vld [vmem:[#allocation7 + $0x1c0] sm:$0xff]
    %v735 = vld [vmem:[#allocation7 + $0x1c8] sm:$0xff]
    %v736 = vld [vmem:[#allocation7 + $0x1d0] sm:$0xff]
    %v737 = vld [vmem:[#allocation7 + $0x1d8] sm:$0xff]
    %v738 = vld [vmem:[#allocation7 + $0x1e0] sm:$0xff]
    %v739 = vld [vmem:[#allocation7 + $0x1e8] sm:$0xff]
    %v740 = vld [vmem:[#allocation7 + $0x1f0] sm:$0xff]
    %v741 = vld [vmem:[#allocation7 + $0x1f8] sm:$0xff]
    %v742 = vld [vmem:[#allocation7 + $0x200] sm:$0xff]
    %v743 = vld [vmem:[#allocation7 + $0x208] sm:$0xff]
    %v744 = vld [vmem:[#allocation7 + $0x210] sm:$0xff]
    %v745 = vld [vmem:[#allocation7 + $0x218] sm:$0xff]
    %v746 = vld [vmem:[#allocation7 + $0x220] sm:$0xff]
    %v747 = vld [vmem:[#allocation7 + $0x228] sm:$0xff]
    %v748 = vld [vmem:[#allocation7 + $0x230] sm:$0xff]
    %v749 = vld [vmem:[#allocation7 + $0x238] sm:$0xff]
    %v750 = vld [vmem:[#allocation7 + $0x240] sm:$0xff]
    %v751 = vld [vmem:[#allocation7 + $0x248] sm:$0xff]
    %v752 = vld [vmem:[#allocation7 + $0x250] sm:$0xff]
    %v753 = vld [vmem:[#allocation7 + $0x258] sm:$0xff]
    %v754 = vld [vmem:[#allocation7 + $0x260] sm:$0xff]
    %v755 = vld [vmem:[#allocation7 + $0x268] sm:$0xff]
    %v756 = vld [vmem:[#allocation7 + $0x270] sm:$0xff]
    %v757 = vld [vmem:[#allocation7 + $0x278] sm:$0xff]
    %v758 = vld [vmem:[#allocation7 + $0x280] sm:$0xff]
    %v759 = vld [vmem:[#allocation7 + $0x288] sm:$0xff]
    %v760 = vld [vmem:[#allocation7 + $0x290] sm:$0xff]
    %v761 = vld [vmem:[#allocation7 + $0x298] sm:$0xff]
    %v762 = vld [vmem:[#allocation7 + $0x2a0] sm:$0xff]
    %v763 = vld [vmem:[#allocation7 + $0x2a8] sm:$0xff]
    %v764 = vld [vmem:[#allocation7 + $0x2b0] sm:$0xff]
    %v765 = vld [vmem:[#allocation7 + $0x2b8] sm:$0xff]
    %v766 = vld [vmem:[#allocation7 + $0x2c0] sm:$0xff]
    %v767 = vld [vmem:[#allocation7 + $0x2c8] sm:$0xff]
    %v768 = vld [vmem:[#allocation7 + $0x2d0] sm:$0xff]
    %v769 = vld [vmem:[#allocation7 + $0x2d8] sm:$0xff]
    %v770 = vld [vmem:[#allocation7 + $0x2e0] sm:$0xff]
    %v771 = vld [vmem:[#allocation7 + $0x2e8] sm:$0xff]
    %v772 = vld [vmem:[#allocation7 + $0x2f0] sm:$0xff]
    %v773 = vld [vmem:[#allocation7 + $0x2f8] sm:$0xff]
    %v774 = vld [vmem:[#allocation7 + $0x300] sm:$0xff]
    %v775 = vld [vmem:[#allocation7 + $0x308] sm:$0xff]
    %v776 = vld [vmem:[#allocation7 + $0x310] sm:$0xff]
    %v777 = vld [vmem:[#allocation7 + $0x318] sm:$0xff]
    %v778 = vld [vmem:[#allocation7 + $0x320] sm:$0xff]
    %v779 = vld [vmem:[#allocation7 + $0x328] sm:$0xff]
    %v780 = vld [vmem:[#allocation7 + $0x330] sm:$0xff]
    %v781 = vld [vmem:[#allocation7 + $0x338] sm:$0xff]
    %v782 = vld [vmem:[#allocation7 + $0x340] sm:$0xff]
    %v783 = vld [vmem:[#allocation7 + $0x348] sm:$0xff]
    %v784 = vld [vmem:[#allocation7 + $0x350] sm:$0xff]
    %v785 = vld [vmem:[#allocation7 + $0x358] sm:$0xff]
    %v786 = vld [vmem:[#allocation7 + $0x360] sm:$0xff]
    %v787 = vld [vmem:[#allocation7 + $0x368] sm:$0xff]
    %v788 = vld [vmem:[#allocation7 + $0x370] sm:$0xff]
    %v789 = vld [vmem:[#allocation7 + $0x378] sm:$0xff]
    %v790 = vld [vmem:[#allocation7 + $0x380] sm:$0xff]
    %v791 = vld [vmem:[#allocation7 + $0x388] sm:$0xff]
    %v792 = vld [vmem:[#allocation7 + $0x390] sm:$0xff]
    %v793 = vld [vmem:[#allocation7 + $0x398] sm:$0xff]
    %v794 = vld [vmem:[#allocation7 + $0x3a0] sm:$0xff]
    %v795 = vld [vmem:[#allocation7 + $0x3a8] sm:$0xff]
    %v796 = vld [vmem:[#allocation7 + $0x3b0] sm:$0xff]
    %v797 = vld [vmem:[#allocation7 + $0x3b8] sm:$0xff]
    %v798 = vld [vmem:[#allocation7 + $0x3c0] sm:$0xff]
    %v799 = vld [vmem:[#allocation7 + $0x3c8] sm:$0xff]
    %v800 = vld [vmem:[#allocation7 + $0x3d0] sm:$0xff]
    %v801 = vld [vmem:[#allocation7 + $0x3d8] sm:$0xff]
    %v802 = vld [vmem:[#allocation7 + $0x3e0] sm:$0xff]
    %v803 = vld [vmem:[#allocation7 + $0x3e8] sm:$0xff]
    %v804 = vld [vmem:[#allocation7 + $0x3f0] sm:$0xff]
    %v805 = vld [vmem:[#allocation7 + $0x3f8] sm:$0xff]
    %v806 = vld [vmem:[#allocation7 + $0x400] sm:$0xff]
    %v807 = vld [vmem:[#allocation7 + $0x408] sm:$0xff]
    %v808 = vld [vmem:[#allocation7 + $0x410] sm:$0xff]
    %v809 = vld [vmem:[#allocation7 + $0x418] sm:$0xff]
    %v810 = vld [vmem:[#allocation7 + $0x420] sm:$0xff]
    %v811 = vld [vmem:[#allocation7 + $0x428] sm:$0xff]
    %v812 = vld [vmem:[#allocation7 + $0x430] sm:$0xff]
    %v813 = vld [vmem:[#allocation7 + $0x438] sm:$0xff]
    %v814 = vld [vmem:[#allocation7 + $0x440] sm:$0xff]
    %v815 = vld [vmem:[#allocation7 + $0x448] sm:$0xff]
    %v816 = vld [vmem:[#allocation7 + $0x450] sm:$0xff]
    %v817 = vld [vmem:[#allocation7 + $0x458] sm:$0xff]
    %v818 = vld [vmem:[#allocation7 + $0x460] sm:$0xff]
    %v819 = vld [vmem:[#allocation7 + $0x468] sm:$0xff]
    %v820 = vld [vmem:[#allocation7 + $0x470] sm:$0xff]
    %v821 = vld [vmem:[#allocation7 + $0x478] sm:$0xff]
    %v822 = vld [vmem:[#allocation7 + $0x480] sm:$0xff]
    %v823 = vld [vmem:[#allocation7 + $0x488] sm:$0xff]
    %v824 = vld [vmem:[#allocation7 + $0x490] sm:$0xff]
    %v825 = vld [vmem:[#allocation7 + $0x498] sm:$0xff]
    %v826 = vld [vmem:[#allocation7 + $0x4a0] sm:$0xff]
    %v827 = vld [vmem:[#allocation7 + $0x4a8] sm:$0xff]
    %v828 = vld [vmem:[#allocation7 + $0x4b0] sm:$0xff]
    %v829 = vld [vmem:[#allocation7 + $0x4b8] sm:$0xff]
    %v830 = vld [vmem:[#allocation7 + $0x4c0] sm:$0xff]
    %v831 = vld [vmem:[#allocation7 + $0x4c8] sm:$0xff]
    %v832 = vld [vmem:[#allocation7 + $0x4d0] sm:$0xff]
    %v833 = vld [vmem:[#allocation7 + $0x4d8] sm:$0xff]
    %v834 = vld [vmem:[#allocation7 + $0x4e0] sm:$0xff]
    %v835 = vld [vmem:[#allocation7 + $0x4e8] sm:$0xff]
    %v836 = vld [vmem:[#allocation7 + $0x4f0] sm:$0xff]
    %v837 = vld [vmem:[#allocation7 + $0x4f8] sm:$0xff]
    %v838 = vld [vmem:[#allocation7 + $0x500] sm:$0xff]
    %v839 = vld [vmem:[#allocation7 + $0x508] sm:$0xff]
    %v840 = vld [vmem:[#allocation7 + $0x510] sm:$0xff]
    %v841 = vld [vmem:[#allocation7 + $0x518] sm:$0xff]
    %v842 = vld [vmem:[#allocation7 + $0x520] sm:$0xff]
    %v843 = vld [vmem:[#allocation7 + $0x528] sm:$0xff]
    %v844 = vld [vmem:[#allocation7 + $0x530] sm:$0xff]
    %v845 = vld [vmem:[#allocation7 + $0x538] sm:$0xff]
    %v846 = vld [vmem:[#allocation7 + $0x540] sm:$0xff]
    %v847 = vld [vmem:[#allocation7 + $0x548] sm:$0xff]
    %v848 = vld [vmem:[#allocation7 + $0x550] sm:$0xff]
    %v849 = vld [vmem:[#allocation7 + $0x558] sm:$0xff]
    %v850 = vld [vmem:[#allocation7 + $0x560] sm:$0xff]
    %v851 = vld [vmem:[#allocation7 + $0x568] sm:$0xff]
    %v852 = vld [vmem:[#allocation7 + $0x570] sm:$0xff]
    %v853 = vld [vmem:[#allocation7 + $0x578] sm:$0xff]
    %v854 = vld [vmem:[#allocation7 + $0x580] sm:$0xff]
    %v855 = vld [vmem:[#allocation7 + $0x588] sm:$0xff]
    %v856 = vld [vmem:[#allocation7 + $0x590] sm:$0xff]
    %v857 = vld [vmem:[#allocation7 + $0x598] sm:$0xff]
    %v858 = vld [vmem:[#allocation7 + $0x5a0] sm:$0xff]
    %v859 = vld [vmem:[#allocation7 + $0x5a8] sm:$0xff]
    %v860 = vld [vmem:[#allocation7 + $0x5b0] sm:$0xff]
    %v861 = vld [vmem:[#allocation7 + $0x5b8] sm:$0xff]
    %v862 = vld [vmem:[#allocation7 + $0x5c0] sm:$0xff]
    %v863 = vld [vmem:[#allocation7 + $0x5c8] sm:$0xff]
    %v864 = vld [vmem:[#allocation7 + $0x5d0] sm:$0xff]
    %v865 = vld [vmem:[#allocation7 + $0x5d8] sm:$0xff]
    %v866 = vld [vmem:[#allocation7 + $0x5e0] sm:$0xff]
    %v867 = vld [vmem:[#allocation7 + $0x5e8] sm:$0xff]
    %v868 = vld [vmem:[#allocation7 + $0x5f0] sm:$0xff]
    %v869 = vld [vmem:[#allocation7 + $0x5f8] sm:$0xff]
    %v870 = vld [vmem:[#allocation7 + $0x600] sm:$0xff]
    %v871 = vld [vmem:[#allocation7 + $0x608] sm:$0xff]
    %v872 = vld [vmem:[#allocation7 + $0x610] sm:$0xff]
    %v873 = vld [vmem:[#allocation7 + $0x618] sm:$0xff]
    %v874 = vld [vmem:[#allocation7 + $0x620] sm:$0xff]
    %v875 = vld [vmem:[#allocation7 + $0x628] sm:$0xff]
    %v876 = vld [vmem:[#allocation7 + $0x630] sm:$0xff]
    %v877 = vld [vmem:[#allocation7 + $0x638] sm:$0xff]
    %v878 = vld [vmem:[#allocation7 + $0x640] sm:$0xff]
    %v879 = vld [vmem:[#allocation7 + $0x648] sm:$0xff]
    %v880 = vld [vmem:[#allocation7 + $0x650] sm:$0xff]
    %v881 = vld [vmem:[#allocation7 + $0x658] sm:$0xff]
    %v882 = vld [vmem:[#allocation7 + $0x660] sm:$0xff]
    %v883 = vld [vmem:[#allocation7 + $0x668] sm:$0xff]
    %v884 = vld [vmem:[#allocation7 + $0x670] sm:$0xff]
    %v885 = vld [vmem:[#allocation7 + $0x678] sm:$0xff]
    %v886 = vld [vmem:[#allocation7 + $0x680] sm:$0xff]
    %v887 = vld [vmem:[#allocation7 + $0x688] sm:$0xff]
    %v888 = vld [vmem:[#allocation7 + $0x690] sm:$0xff]
    %v889 = vld [vmem:[#allocation7 + $0x698] sm:$0xff]
    %v890 = vld [vmem:[#allocation7 + $0x6a0] sm:$0xff]
    %v891 = vld [vmem:[#allocation7 + $0x6a8] sm:$0xff]
    %v892 = vld [vmem:[#allocation7 + $0x6b0] sm:$0xff]
    %v893 = vld [vmem:[#allocation7 + $0x6b8] sm:$0xff]
    %v894 = vld [vmem:[#allocation7 + $0x6c0] sm:$0xff]
    %v895 = vld [vmem:[#allocation7 + $0x6c8] sm:$0xff]
    %v896 = vld [vmem:[#allocation7 + $0x6d0] sm:$0xff]
    %v897 = vld [vmem:[#allocation7 + $0x6d8] sm:$0xff]
    %v898 = vld [vmem:[#allocation7 + $0x6e0] sm:$0xff]
    %v899 = vld [vmem:[#allocation7 + $0x6e8] sm:$0xff]
    %v900 = vld [vmem:[#allocation7 + $0x6f0] sm:$0xff]
    %v901 = vld [vmem:[#allocation7 + $0x6f8] sm:$0xff]
    %v902 = vld [vmem:[#allocation7 + $0x700] sm:$0xff]
    %v903 = vld [vmem:[#allocation7 + $0x708] sm:$0xff]
    %v904 = vld [vmem:[#allocation7 + $0x710] sm:$0xff]
    %v905 = vld [vmem:[#allocation7 + $0x718] sm:$0xff]
    %v906 = vld [vmem:[#allocation7 + $0x720] sm:$0xff]
    %v907 = vld [vmem:[#allocation7 + $0x728] sm:$0xff]
    %v908 = vld [vmem:[#allocation7 + $0x730] sm:$0xff]
    %v909 = vld [vmem:[#allocation7 + $0x738] sm:$0xff]
    %v910 = vld [vmem:[#allocation7 + $0x740] sm:$0xff]
    %v911 = vld [vmem:[#allocation7 + $0x748] sm:$0xff]
    %v912 = vld [vmem:[#allocation7 + $0x750] sm:$0xff]
    %v913 = vld [vmem:[#allocation7 + $0x758] sm:$0xff]
    %v914 = vld [vmem:[#allocation7 + $0x760] sm:$0xff]
    %v915 = vld [vmem:[#allocation7 + $0x768] sm:$0xff]
    %v916 = vld [vmem:[#allocation7 + $0x770] sm:$0xff]
    %v917 = vld [vmem:[#allocation7 + $0x778] sm:$0xff]
    %v918 = vld [vmem:[#allocation7 + $0x780] sm:$0xff]
    %v919 = vld [vmem:[#allocation7 + $0x788] sm:$0xff]
    %v920 = vld [vmem:[#allocation7 + $0x790] sm:$0xff]
    %v921 = vld [vmem:[#allocation7 + $0x798] sm:$0xff]
    %v922 = vld [vmem:[#allocation7 + $0x7a0] sm:$0xff]
    %v923 = vld [vmem:[#allocation7 + $0x7a8] sm:$0xff]
    %v924 = vld [vmem:[#allocation7 + $0x7b0] sm:$0xff]
    %v925 = vld [vmem:[#allocation7 + $0x7b8] sm:$0xff]
    %v926 = vld [vmem:[#allocation7 + $0x7c0] sm:$0xff]
    %v927 = vld [vmem:[#allocation7 + $0x7c8] sm:$0xff]
    %v928 = vld [vmem:[#allocation7 + $0x7d0] sm:$0xff]
    %v929 = vld [vmem:[#allocation7 + $0x7d8] sm:$0xff]
    %v930 = vld [vmem:[#allocation7 + $0x7e0] sm:$0xff]
    %v931 = vld [vmem:[#allocation7 + $0x7e8] sm:$0xff]
    %v932 = vld [vmem:[#allocation7 + $0x7f0] sm:$0xff]
    %v933 = vld [vmem:[#allocation7 + $0x7f8] sm:$0xff]
    %v934 = vld [vmem:[%s6] ss:$2 sm:$0x3]
    %s935 = scalar_lea.vmem %s6, 1
    %v936 = vld [vmem:[%s935] ss:$2 sm:$0x3]
    %v938 = vlaneseq
    %v939 = vshrl.u32 %v938, 7
    %v940 = vsub.s32 0, %v939
    %v941 = vrot.slane %v934, %v940
    %v942 = vlaneseq
    %v943 = vshrl.u32 %v942, 7
    %v944 = vsub.s32 1, %v943
    %v945 = vrot.slane %v934, %v944
    %948 = vmatprep.subr.mxu0 %v799
    %949 = vmatpush1.msra.mxu0 %v798
    %950 = vmatprep.subr.mxu0 %v791
    %951 = vmatpush1.msra.mxu0 %v790
    %952 = vmatprep.subr.mxu0 %v783
    %953 = vmatpush1.msra.mxu0 %v782
    %954 = vmatprep.subr.mxu0 %v775
    %955 = vmatpush1.msra.mxu0 %v774
    %956 = vmatprep.subr.mxu0 %v767
    %957 = vmatpush1.msra.mxu0 %v766
    %958 = vmatprep.subr.mxu0 %v759
    %959 = vmatpush1.msra.mxu0 %v758
    %960 = vmatprep.subr.mxu0 %v751
    %961 = vmatpush1.msra.mxu0 %v750
    %962 = vmatprep.subr.mxu0 %v743
    %963 = vmatpush1.msra.mxu0 %v742
    %964 = vmatprep.subr.mxu0 %v735
    %965 = vmatpush1.msra.mxu0 %v734
    %966 = vmatprep.subr.mxu0 %v727
    %967 = vmatpush1.msra.mxu0 %v726
    %968 = vmatprep.subr.mxu0 %v719
    %969 = vmatpush1.msra.mxu0 %v718
    %970 = vmatprep.subr.mxu0 %v711
    %971 = vmatpush1.msra.mxu0 %v710
    %972 = vmatprep.subr.mxu0 %v703
    %973 = vmatpush1.msra.mxu0 %v702
    %974 = vmatprep.subr.mxu0 %v695
    %975 = vmatpush1.msra.mxu0 %v694
    %976 = vmatprep.subr.mxu0 %v687
    %977 = vmatpush1.msra.mxu0 %v686
    %978 = vmatprep.subr.mxu0 %v679
    %979 = vmatpush1.msra.mxu0 %v678
    %980 = vmatprep.subr.mxu0 %v927
    %981 = vmatpush2.msra.mxu0 %v926
    %982 = vmatprep.subr.mxu0 %v919
    %983 = vmatpush2.msra.mxu0 %v918
    %984 = vmatprep.subr.mxu0 %v911
    %985 = vmatpush2.msra.mxu0 %v910
    %986 = vmatprep.subr.mxu0 %v903
    %987 = vmatpush2.msra.mxu0 %v902
    %988 = vmatprep.subr.mxu0 %v895
    %989 = vmatpush2.msra.mxu0 %v894
    %990 = vmatprep.subr.mxu0 %v887
    %991 = vmatpush2.msra.mxu0 %v886
    %992 = vmatprep.subr.mxu0 %v879
    %993 = vmatpush2.msra.mxu0 %v878
    %994 = vmatprep.subr.mxu0 %v871
    %995 = vmatpush2.msra.mxu0 %v870
    %996 = vmatprep.subr.mxu0 %v863
    %997 = vmatpush2.msra.mxu0 %v862
    %998 = vmatprep.subr.mxu0 %v855
    %999 = vmatpush2.msra.mxu0 %v854
    %1000 = vmatprep.subr.mxu0 %v847
    %1001 = vmatpush2.msra.mxu0 %v846
    %1002 = vmatprep.subr.mxu0 %v839
    %1003 = vmatpush2.msra.mxu0 %v838
    %1004 = vmatprep.subr.mxu0 %v831
    %1005 = vmatpush2.msra.mxu0 %v830
    %1006 = vmatprep.subr.mxu0 %v823
    %1007 = vmatpush2.msra.mxu0 %v822
    %1008 = vmatprep.subr.mxu0 %v815
    %1009 = vmatpush2.msra.mxu0 %v814
    %1010 = vmatprep.subr.mxu0 %v807
    %1011 = vmatpush2.msra.mxu0 %v806
    %1012 = vmatprep.mubr.f32.mxu0 %v945
    %1013 = vmatmul.mubr.f32.gmra.mxu0 %v941
    %v1014 = vpop.f32.mrf.mxu0
    %v1015 = vadd.f32 0.0, %v1014
    %v1016 = vpop.f32.mrf.mxu0
    %v1017 = vadd.f32 0.0, %v1016
    %1018 = vdwg.mxu0
    %1019 = vmatprep.subr.mxu0 %v801
    %1020 = vmatpush1.msra.mxu0 %v800
    %1021 = vmatprep.subr.mxu0 %v793
    %1022 = vmatpush1.msra.mxu0 %v792
    %1023 = vmatprep.subr.mxu0 %v785
    %1024 = vmatpush1.msra.mxu0 %v784
    %1025 = vmatprep.subr.mxu0 %v777
    %1026 = vmatpush1.msra.mxu0 %v776
    %1027 = vmatprep.subr.mxu0 %v769
    %1028 = vmatpush1.msra.mxu0 %v768
    %1029 = vmatprep.subr.mxu0 %v761
    %1030 = vmatpush1.msra.mxu0 %v760
    %1031 = vmatprep.subr.mxu0 %v753
    %1032 = vmatpush1.msra.mxu0 %v752
    %1033 = vmatprep.subr.mxu0 %v745
    %1034 = vmatpush1.msra.mxu0 %v744
    %1035 = vmatprep.subr.mxu0 %v737
    %1036 = vmatpush1.msra.mxu0 %v736
    %1037 = vmatprep.subr.mxu0 %v729
    %1038 = vmatpush1.msra.mxu0 %v728
    %1039 = vmatprep.subr.mxu0 %v721
    %1040 = vmatpush1.msra.mxu0 %v720
    %1041 = vmatprep.subr.mxu0 %v713
    %1042 = vmatpush1.msra.mxu0 %v712
    %1043 = vmatprep.subr.mxu0 %v705
    %1044 = vmatpush1.msra.mxu0 %v704
    %1045 = vmatprep.subr.mxu0 %v697
    %1046 = vmatpush1.msra.mxu0 %v696
    %1047 = vmatprep.subr.mxu0 %v689
    %1048 = vmatpush1.msra.mxu0 %v688
    %1049 = vmatprep.subr.mxu0 %v681
    %1050 = vmatpush1.msra.mxu0 %v680
    %1051 = vmatprep.subr.mxu0 %v929
    %1052 = vmatpush2.msra.mxu0 %v928
    %1053 = vmatprep.subr.mxu0 %v921
    %1054 = vmatpush2.msra.mxu0 %v920
    %1055 = vmatprep.subr.mxu0 %v913
    %1056 = vmatpush2.msra.mxu0 %v912
    %1057 = vmatprep.subr.mxu0 %v905
    %1058 = vmatpush2.msra.mxu0 %v904
    %1059 = vmatprep.subr.mxu0 %v897
    %1060 = vmatpush2.msra.mxu0 %v896
    %1061 = vmatprep.subr.mxu0 %v889
    %1062 = vmatpush2.msra.mxu0 %v888
    %1063 = vmatprep.subr.mxu0 %v881
    %1064 = vmatpush2.msra.mxu0 %v880
    %1065 = vmatprep.subr.mxu0 %v873
    %1066 = vmatpush2.msra.mxu0 %v872
    %1067 = vmatprep.subr.mxu0 %v865
    %1068 = vmatpush2.msra.mxu0 %v864
    %1069 = vmatprep.subr.mxu0 %v857
    %1070 = vmatpush2.msra.mxu0 %v856
    %1071 = vmatprep.subr.mxu0 %v849
    %1072 = vmatpush2.msra.mxu0 %v848
    %1073 = vmatprep.subr.mxu0 %v841
    %1074 = vmatpush2.msra.mxu0 %v840
    %1075 = vmatprep.subr.mxu0 %v833
    %1076 = vmatpush2.msra.mxu0 %v832
    %1077 = vmatprep.subr.mxu0 %v825
    %1078 = vmatpush2.msra.mxu0 %v824
    %1079 = vmatprep.subr.mxu0 %v817
    %1080 = vmatpush2.msra.mxu0 %v816
    %1081 = vmatprep.subr.mxu0 %v809
    %1082 = vmatpush2.msra.mxu0 %v808
    %1083 = vmatprep.mubr.f32.mxu0 %v945
    %1084 = vmatmul.mubr.f32.gmra.mxu0 %v941
    %v1085 = vpop.f32.mrf.mxu0
    %v1086 = vadd.f32 0.0, %v1085
    %v1087 = vpop.f32.mrf.mxu0
    %v1088 = vadd.f32 0.0, %v1087
    %1089 = vdwg.mxu0
    %1090 = vmatprep.subr.mxu0 %v803
    %1091 = vmatpush1.msra.mxu0 %v802
    %1092 = vmatprep.subr.mxu0 %v795
    %1093 = vmatpush1.msra.mxu0 %v794
    %1094 = vmatprep.subr.mxu0 %v787
    %1095 = vmatpush1.msra.mxu0 %v786
    %1096 = vmatprep.subr.mxu0 %v779
    %1097 = vmatpush1.msra.mxu0 %v778
    %1098 = vmatprep.subr.mxu0 %v771
    %1099 = vmatpush1.msra.mxu0 %v770
    %1100 = vmatprep.subr.mxu0 %v763
    %1101 = vmatpush1.msra.mxu0 %v762
    %1102 = vmatprep.subr.mxu0 %v755
    %1103 = vmatpush1.msra.mxu0 %v754
    %1104 = vmatprep.subr.mxu0 %v747
    %1105 = vmatpush1.msra.mxu0 %v746
    %1106 = vmatprep.subr.mxu0 %v739
    %1107 = vmatpush1.msra.mxu0 %v738
    %1108 = vmatprep.subr.mxu0 %v731
    %1109 = vmatpush1.msra.mxu0 %v730
    %1110 = vmatprep.subr.mxu0 %v723
    %1111 = vmatpush1.msra.mxu0 %v722
    %1112 = vmatprep.subr.mxu0 %v715
    %1113 = vmatpush1.msra.mxu0 %v714
    %1114 = vmatprep.subr.mxu0 %v707
    %1115 = vmatpush1.msra.mxu0 %v706
    %1116 = vmatprep.subr.mxu0 %v699
    %1117 = vmatpush1.msra.mxu0 %v698
    %1118 = vmatprep.subr.mxu0 %v691
    %1119 = vmatpush1.msra.mxu0 %v690
    %1120 = vmatprep.subr.mxu0 %v683
    %1121 = vmatpush1.msra.mxu0 %v682
    %1122 = vmatprep.subr.mxu0 %v931
    %1123 = vmatpush2.msra.mxu0 %v930
    %1124 = vmatprep.subr.mxu0 %v923
    %1125 = vmatpush2.msra.mxu0 %v922
    %1126 = vmatprep.subr.mxu0 %v915
    %1127 = vmatpush2.msra.mxu0 %v914
    %1128 = vmatprep.subr.mxu0 %v907
    %1129 = vmatpush2.msra.mxu0 %v906
    %1130 = vmatprep.subr.mxu0 %v899
    %1131 = vmatpush2.msra.mxu0 %v898
    %1132 = vmatprep.subr.mxu0 %v891
    %1133 = vmatpush2.msra.mxu0 %v890
    %1134 = vmatprep.subr.mxu0 %v883
    %1135 = vmatpush2.msra.mxu0 %v882
    %1136 = vmatprep.subr.mxu0 %v875
    %1137 = vmatpush2.msra.mxu0 %v874
    %1138 = vmatprep.subr.mxu0 %v867
    %1139 = vmatpush2.msra.mxu0 %v866
    %1140 = vmatprep.subr.mxu0 %v859
    %1141 = vmatpush2.msra.mxu0 %v858
    %1142 = vmatprep.subr.mxu0 %v851
    %1143 = vmatpush2.msra.mxu0 %v850
    %1144 = vmatprep.subr.mxu0 %v843
    %1145 = vmatpush2.msra.mxu0 %v842
    %1146 = vmatprep.subr.mxu0 %v835
    %1147 = vmatpush2.msra.mxu0 %v834
    %1148 = vmatprep.subr.mxu0 %v827
    %1149 = vmatpush2.msra.mxu0 %v826
    %1150 = vmatprep.subr.mxu0 %v819
    %1151 = vmatpush2.msra.mxu0 %v818
    %1152 = vmatprep.subr.mxu0 %v811
    %1153 = vmatpush2.msra.mxu0 %v810
    %1154 = vmatprep.mubr.f32.mxu0 %v945
    %1155 = vmatmul.mubr.f32.gmra.mxu0 %v941
    %v1156 = vpop.f32.mrf.mxu0
    %v1157 = vadd.f32 0.0, %v1156
    %v1158 = vpop.f32.mrf.mxu0
    %v1159 = vadd.f32 0.0, %v1158
    %1160 = vdwg.mxu0
    %1161 = vmatprep.subr.mxu0 %v805
    %1162 = vmatpush1.msra.mxu0 %v804
    %1163 = vmatprep.subr.mxu0 %v797
    %1164 = vmatpush1.msra.mxu0 %v796
    %1165 = vmatprep.subr.mxu0 %v789
    %1166 = vmatpush1.msra.mxu0 %v788
    %1167 = vmatprep.subr.mxu0 %v781
    %1168 = vmatpush1.msra.mxu0 %v780
    %1169 = vmatprep.subr.mxu0 %v773
    %1170 = vmatpush1.msra.mxu0 %v772
    %1171 = vmatprep.subr.mxu0 %v765
    %1172 = vmatpush1.msra.mxu0 %v764
    %1173 = vmatprep.subr.mxu0 %v757
    %1174 = vmatpush1.msra.mxu0 %v756
    %1175 = vmatprep.subr.mxu0 %v749
    %1176 = vmatpush1.msra.mxu0 %v748
    %1177 = vmatprep.subr.mxu0 %v741
    %1178 = vmatpush1.msra.mxu0 %v740
    %1179 = vmatprep.subr.mxu0 %v733
    %1180 = vmatpush1.msra.mxu0 %v732
    %1181 = vmatprep.subr.mxu0 %v725
    %1182 = vmatpush1.msra.mxu0 %v724
    %1183 = vmatprep.subr.mxu0 %v717
    %1184 = vmatpush1.msra.mxu0 %v716
    %1185 = vmatprep.subr.mxu0 %v709
    %1186 = vmatpush1.msra.mxu0 %v708
    %1187 = vmatprep.subr.mxu0 %v701
    %1188 = vmatpush1.msra.mxu0 %v700
    %1189 = vmatprep.subr.mxu0 %v693
    %1190 = vmatpush1.msra.mxu0 %v692
    %1191 = vmatprep.subr.mxu0 %v685
    %1192 = vmatpush1.msra.mxu0 %v684
    %1193 = vmatprep.subr.mxu0 %v933
    %1194 = vmatpush2.msra.mxu0 %v932
    %1195 = vmatprep.subr.mxu0 %v925
    %1196 = vmatpush2.msra.mxu0 %v924
    %1197 = vmatprep.subr.mxu0 %v917
    %1198 = vmatpush2.msra.mxu0 %v916
    %1199 = vmatprep.subr.mxu0 %v909
    %1200 = vmatpush2.msra.mxu0 %v908
    %1201 = vmatprep.subr.mxu0 %v901
    %1202 = vmatpush2.msra.mxu0 %v900
    %1203 = vmatprep.subr.mxu0 %v893
    %1204 = vmatpush2.msra.mxu0 %v892
    %1205 = vmatprep.subr.mxu0 %v885
    %1206 = vmatpush2.msra.mxu0 %v884
    %1207 = vmatprep.subr.mxu0 %v877
    %1208 = vmatpush2.msra.mxu0 %v876
    %1209 = vmatprep.subr.mxu0 %v869
    %1210 = vmatpush2.msra.mxu0 %v868
    %1211 = vmatprep.subr.mxu0 %v861
    %1212 = vmatpush2.msra.mxu0 %v860
    %1213 = vmatprep.subr.mxu0 %v853
    %1214 = vmatpush2.msra.mxu0 %v852
    %1215 = vmatprep.subr.mxu0 %v845
    %1216 = vmatpush2.msra.mxu0 %v844
    %1217 = vmatprep.subr.mxu0 %v837
    %1218 = vmatpush2.msra.mxu0 %v836
    %1219 = vmatprep.subr.mxu0 %v829
    %1220 = vmatpush2.msra.mxu0 %v828
    %1221 = vmatprep.subr.mxu0 %v821
    %1222 = vmatpush2.msra.mxu0 %v820
    %1223 = vmatprep.subr.mxu0 %v813
    %1224 = vmatpush2.msra.mxu0 %v812
    %1225 = vmatprep.mubr.f32.mxu0 %v945
    %1226 = vmatmul.mubr.f32.gmra.mxu0 %v941
    %v1227 = vpop.f32.mrf.mxu0
    %v1228 = vadd.f32 0.0, %v1227
    %v1229 = vpop.f32.mrf.mxu0
    %v1230 = vadd.f32 0.0, %v1229
    %1231 = vdwg.mxu0
    %v1232 = vadd.f32 %v461, %v1015
    %v1233 = vadd.f32 %v463, %v1017
    %v1234 = vadd.f32 %v532, %v1086
    %v1235 = vadd.f32 %v534, %v1088
    %v1236 = vadd.f32 %v603, %v1157
    %v1237 = vadd.f32 %v605, %v1159
    %v1238 = vadd.f32 %v674, %v1228
    %v1239 = vadd.f32 %v676, %v1230
    %v1240 = vmul.f32 %v1232, 0.5
    %v1241 = vmul.f32 %v1233, 0.5
    %v1242 = vtanh.pop %v1240
    %v1243 = vtanh.pop %v1241
    %v1244 = vadd.f32 %v1242, 1.0
    %v1245 = vadd.f32 %v1243, 1.0
    %v1246 = vmul.f32 %v1244, 0.5
    %v1247 = vmul.f32 %v1245, 0.5
    %v1248 = vmul.f32 %v1234, 0.5
    %v1249 = vmul.f32 %v1235, 0.5
    %v1250 = vtanh.pop %v1248
    %v1251 = vtanh.pop %v1249
    %v1252 = vadd.f32 %v1250, 1.0
    %v1253 = vadd.f32 %v1251, 1.0
    %v1254 = vmul.f32 %v1252, 0.5
    %v1255 = vmul.f32 %v1253, 0.5
    %v1256 = vtanh.pop %v1236
    %v1257 = vtanh.pop %v1237
    %v1258 = vmul.f32 %v1238, 0.5
    %v1259 = vmul.f32 %v1239, 0.5
    %v1260 = vtanh.pop %v1258
    %v1261 = vtanh.pop %v1259
    %v1262 = vadd.f32 %v1260, 1.0
    %v1263 = vadd.f32 %v1261, 1.0
    %v1264 = vmul.f32 %v1262, 0.5
    %v1265 = vmul.f32 %v1263, 0.5
    %v1267 = vlaneseq
    %v1268 = vshrl.u32 %v1267, 7
    %v1269 = vsub.s32 0, %v1268
    %v1270 = vrot.slane %v936, %v1269
    %v1271 = vlaneseq
    %v1272 = vshrl.u32 %v1271, 7
    %v1273 = vsub.s32 1, %v1272
    %v1274 = vrot.slane %v936, %v1273
    %v1277 = vmul.f32 %v1254, %v1270
    %v1278 = vmul.f32 %v1255, %v1274
    %v1279 = vmul.f32 %v1246, %v1256
    %v1280 = vmul.f32 %v1247, %v1257
    %v1281 = vadd.f32 %v1277, %v1279
    %v1282 = vadd.f32 %v1278, %v1280
    %v1283 = vtanh.pop %v1281
    %v1284 = vtanh.pop %v1282
    %v1285 = vmul.f32 %v1264, %v1283
    %v1286 = vmul.f32 %v1265, %v1284
    %1287 = vmatprep.subr.mxu0 %v799
    %1288 = vmatpush1.msra.mxu0 %v798
    %1289 = vmatprep.subr.mxu0 %v791
    %1290 = vmatpush1.msra.mxu0 %v790
    %1291 = vmatprep.subr.mxu0 %v783
    %1292 = vmatpush1.msra.mxu0 %v782
    %1293 = vmatprep.subr.mxu0 %v775
    %1294 = vmatpush1.msra.mxu0 %v774
    %1295 = vmatprep.subr.mxu0 %v767
    %1296 = vmatpush1.msra.mxu0 %v766
    %1297 = vmatprep.subr.mxu0 %v759
    %1298 = vmatpush1.msra.mxu0 %v758
    %1299 = vmatprep.subr.mxu0 %v751
    %1300 = vmatpush1.msra.mxu0 %v750
    %1301 = vmatprep.subr.mxu0 %v743
    %1302 = vmatpush1.msra.mxu0 %v742
    %1303 = vmatprep.subr.mxu0 %v735
    %1304 = vmatpush1.msra.mxu0 %v734
    %1305 = vmatprep.subr.mxu0 %v727
    %1306 = vmatpush1.msra.mxu0 %v726
    %1307 = vmatprep.subr.mxu0 %v719
    %1308 = vmatpush1.msra.mxu0 %v718
    %1309 = vmatprep.subr.mxu0 %v711
    %1310 = vmatpush1.msra.mxu0 %v710
    %1311 = vmatprep.subr.mxu0 %v703
    %1312 = vmatpush1.msra.mxu0 %v702
    %1313 = vmatprep.subr.mxu0 %v695
    %1314 = vmatpush1.msra.mxu0 %v694
    %1315 = vmatprep.subr.mxu0 %v687
    %1316 = vmatpush1.msra.mxu0 %v686
    %1317 = vmatprep.subr.mxu0 %v679
    %1318 = vmatpush1.msra.mxu0 %v678
    %1319 = vmatprep.subr.mxu0 %v927
    %1320 = vmatpush2.msra.mxu0 %v926
    %1321 = vmatprep.subr.mxu0 %v919
    %1322 = vmatpush2.msra.mxu0 %v918
    %1323 = vmatprep.subr.mxu0 %v911
    %1324 = vmatpush2.msra.mxu0 %v910
    %1325 = vmatprep.subr.mxu0 %v903
    %1326 = vmatpush2.msra.mxu0 %v902
    %1327 = vmatprep.subr.mxu0 %v895
    %1328 = vmatpush2.msra.mxu0 %v894
    %1329 = vmatprep.subr.mxu0 %v887
    %1330 = vmatpush2.msra.mxu0 %v886
    %1331 = vmatprep.subr.mxu0 %v879
    %1332 = vmatpush2.msra.mxu0 %v878
    %1333 = vmatprep.subr.mxu0 %v871
    %1334 = vmatpush2.msra.mxu0 %v870
    %1335 = vmatprep.subr.mxu0 %v863
    %1336 = vmatpush2.msra.mxu0 %v862
    %1337 = vmatprep.subr.mxu0 %v855
    %1338 = vmatpush2.msra.mxu0 %v854
    %1339 = vmatprep.subr.mxu0 %v847
    %1340 = vmatpush2.msra.mxu0 %v846
    %1341 = vmatprep.subr.mxu0 %v839
    %1342 = vmatpush2.msra.mxu0 %v838
    %1343 = vmatprep.subr.mxu0 %v831
    %1344 = vmatpush2.msra.mxu0 %v830
    %1345 = vmatprep.subr.mxu0 %v823
    %1346 = vmatpush2.msra.mxu0 %v822
    %1347 = vmatprep.subr.mxu0 %v815
    %1348 = vmatpush2.msra.mxu0 %v814
    %1349 = vmatprep.subr.mxu0 %v807
    %1350 = vmatpush2.msra.mxu0 %v806
    %1351 = vmatprep.mubr.f32.mxu0 %v1286
    %1352 = vmatmul.mubr.f32.gmra.mxu0 %v1285
    %v1353 = vpop.f32.mrf.mxu0
    %v1354 = vadd.f32 0.0, %v1353
    %v1355 = vpop.f32.mrf.mxu0
    %v1356 = vadd.f32 0.0, %v1355
    %1357 = vdwg.mxu0
    %1358 = vmatprep.subr.mxu0 %v801
    %1359 = vmatpush1.msra.mxu0 %v800
    %1360 = vmatprep.subr.mxu0 %v793
    %1361 = vmatpush1.msra.mxu0 %v792
    %1362 = vmatprep.subr.mxu0 %v785
    %1363 = vmatpush1.msra.mxu0 %v784
    %1364 = vmatprep.subr.mxu0 %v777
    %1365 = vmatpush1.msra.mxu0 %v776
    %1366 = vmatprep.subr.mxu0 %v769
    %1367 = vmatpush1.msra.mxu0 %v768
    %1368 = vmatprep.subr.mxu0 %v761
    %1369 = vmatpush1.msra.mxu0 %v760
    %1370 = vmatprep.subr.mxu0 %v753
    %1371 = vmatpush1.msra.mxu0 %v752
    %1372 = vmatprep.subr.mxu0 %v745
    %1373 = vmatpush1.msra.mxu0 %v744
    %1374 = vmatprep.subr.mxu0 %v737
    %1375 = vmatpush1.msra.mxu0 %v736
    %1376 = vmatprep.subr.mxu0 %v729
    %1377 = vmatpush1.msra.mxu0 %v728
    %1378 = vmatprep.subr.mxu0 %v721
    %1379 = vmatpush1.msra.mxu0 %v720
    %1380 = vmatprep.subr.mxu0 %v713
    %1381 = vmatpush1.msra.mxu0 %v712
    %1382 = vmatprep.subr.mxu0 %v705
    %1383 = vmatpush1.msra.mxu0 %v704
    %1384 = vmatprep.subr.mxu0 %v697
    %1385 = vmatpush1.msra.mxu0 %v696
    %1386 = vmatprep.subr.mxu0 %v689
    %1387 = vmatpush1.msra.mxu0 %v688
    %1388 = vmatprep.subr.mxu0 %v681
    %1389 = vmatpush1.msra.mxu0 %v680
    %1390 = vmatprep.subr.mxu0 %v929
    %1391 = vmatpush2.msra.mxu0 %v928
    %1392 = vmatprep.subr.mxu0 %v921
    %1393 = vmatpush2.msra.mxu0 %v920
    %1394 = vmatprep.subr.mxu0 %v913
    %1395 = vmatpush2.msra.mxu0 %v912
    %1396 = vmatprep.subr.mxu0 %v905
    %1397 = vmatpush2.msra.mxu0 %v904
    %1398 = vmatprep.subr.mxu0 %v897
    %1399 = vmatpush2.msra.mxu0 %v896
    %1400 = vmatprep.subr.mxu0 %v889
    %1401 = vmatpush2.msra.mxu0 %v888
    %1402 = vmatprep.subr.mxu0 %v881
    %1403 = vmatpush2.msra.mxu0 %v880
    %1404 = vmatprep.subr.mxu0 %v873
    %1405 = vmatpush2.msra.mxu0 %v872
    %1406 = vmatprep.subr.mxu0 %v865
    %1407 = vmatpush2.msra.mxu0 %v864
    %1408 = vmatprep.subr.mxu0 %v857
    %1409 = vmatpush2.msra.mxu0 %v856
    %1410 = vmatprep.subr.mxu0 %v849
    %1411 = vmatpush2.msra.mxu0 %v848
    %1412 = vmatprep.subr.mxu0 %v841
    %1413 = vmatpush2.msra.mxu0 %v840
    %1414 = vmatprep.subr.mxu0 %v833
    %1415 = vmatpush2.msra.mxu0 %v832
    %1416 = vmatprep.subr.mxu0 %v825
    %1417 = vmatpush2.msra.mxu0 %v824
    %1418 = vmatprep.subr.mxu0 %v817
    %1419 = vmatpush2.msra.mxu0 %v816
    %1420 = vmatprep.subr.mxu0 %v809
    %1421 = vmatpush2.msra.mxu0 %v808
    %1422 = vmatprep.mubr.f32.mxu0 %v1286
    %1423 = vmatmul.mubr.f32.gmra.mxu0 %v1285
    %v1424 = vpop.f32.mrf.mxu0
    %v1425 = vadd.f32 0.0, %v1424
    %v1426 = vpop.f32.mrf.mxu0
    %v1427 = vadd.f32 0.0, %v1426
    %1428 = vdwg.mxu0
    %1429 = vmatprep.subr.mxu0 %v803
    %1430 = vmatpush1.msra.mxu0 %v802
    %1431 = vmatprep.subr.mxu0 %v795
    %1432 = vmatpush1.msra.mxu0 %v794
    %1433 = vmatprep.subr.mxu0 %v787
    %1434 = vmatpush1.msra.mxu0 %v786
    %1435 = vmatprep.subr.mxu0 %v779
    %1436 = vmatpush1.msra.mxu0 %v778
    %1437 = vmatprep.subr.mxu0 %v771
    %1438 = vmatpush1.msra.mxu0 %v770
    %1439 = vmatprep.subr.mxu0 %v763
    %1440 = vmatpush1.msra.mxu0 %v762
    %1441 = vmatprep.subr.mxu0 %v755
    %1442 = vmatpush1.msra.mxu0 %v754
    %1443 = vmatprep.subr.mxu0 %v747
    %1444 = vmatpush1.msra.mxu0 %v746
    %1445 = vmatprep.subr.mxu0 %v739
    %1446 = vmatpush1.msra.mxu0 %v738
    %1447 = vmatprep.subr.mxu0 %v731
    %1448 = vmatpush1.msra.mxu0 %v730
    %1449 = vmatprep.subr.mxu0 %v723
    %1450 = vmatpush1.msra.mxu0 %v722
    %1451 = vmatprep.subr.mxu0 %v715
    %1452 = vmatpush1.msra.mxu0 %v714
    %1453 = vmatprep.subr.mxu0 %v707
    %1454 = vmatpush1.msra.mxu0 %v706
    %1455 = vmatprep.subr.mxu0 %v699
    %1456 = vmatpush1.msra.mxu0 %v698
    %1457 = vmatprep.subr.mxu0 %v691
    %1458 = vmatpush1.msra.mxu0 %v690
    %1459 = vmatprep.subr.mxu0 %v683
    %1460 = vmatpush1.msra.mxu0 %v682
    %1461 = vmatprep.subr.mxu0 %v931
    %1462 = vmatpush2.msra.mxu0 %v930
    %1463 = vmatprep.subr.mxu0 %v923
    %1464 = vmatpush2.msra.mxu0 %v922
    %1465 = vmatprep.subr.mxu0 %v915
    %1466 = vmatpush2.msra.mxu0 %v914
    %1467 = vmatprep.subr.mxu0 %v907
    %1468 = vmatpush2.msra.mxu0 %v906
    %1469 = vmatprep.subr.mxu0 %v899
    %1470 = vmatpush2.msra.mxu0 %v898
    %1471 = vmatprep.subr.mxu0 %v891
    %1472 = vmatpush2.msra.mxu0 %v890
    %1473 = vmatprep.subr.mxu0 %v883
    %1474 = vmatpush2.msra.mxu0 %v882
    %1475 = vmatprep.subr.mxu0 %v875
    %1476 = vmatpush2.msra.mxu0 %v874
    %1477 = vmatprep.subr.mxu0 %v867
    %1478 = vmatpush2.msra.mxu0 %v866
    %1479 = vmatprep.subr.mxu0 %v859
    %1480 = vmatpush2.msra.mxu0 %v858
    %1481 = vmatprep.subr.mxu0 %v851
    %1482 = vmatpush2.msra.mxu0 %v850
    %1483 = vmatprep.subr.mxu0 %v843
    %1484 = vmatpush2.msra.mxu0 %v842
    %1485 = vmatprep.subr.mxu0 %v835
    %1486 = vmatpush2.msra.mxu0 %v834
    %1487 = vmatprep.subr.mxu0 %v827
    %1488 = vmatpush2.msra.mxu0 %v826
    %1489 = vmatprep.subr.mxu0 %v819
    %1490 = vmatpush2.msra.mxu0 %v818
    %1491 = vmatprep.subr.mxu0 %v811
    %1492 = vmatpush2.msra.mxu0 %v810
    %1493 = vmatprep.mubr.f32.mxu0 %v1286
    %1494 = vmatmul.mubr.f32.gmra.mxu0 %v1285
    %v1495 = vpop.f32.mrf.mxu0
    %v1496 = vadd.f32 0.0, %v1495
    %v1497 = vpop.f32.mrf.mxu0
    %v1498 = vadd.f32 0.0, %v1497
    %1499 = vdwg.mxu0
    %1500 = vmatprep.subr.mxu0 %v805
    %1501 = vmatpush1.msra.mxu0 %v804
    %1502 = vmatprep.subr.mxu0 %v797
    %1503 = vmatpush1.msra.mxu0 %v796
    %1504 = vmatprep.subr.mxu0 %v789
    %1505 = vmatpush1.msra.mxu0 %v788
    %1506 = vmatprep.subr.mxu0 %v781
    %1507 = vmatpush1.msra.mxu0 %v780
    %1508 = vmatprep.subr.mxu0 %v773
    %1509 = vmatpush1.msra.mxu0 %v772
    %1510 = vmatprep.subr.mxu0 %v765
    %1511 = vmatpush1.msra.mxu0 %v764
    %1512 = vmatprep.subr.mxu0 %v757
    %1513 = vmatpush1.msra.mxu0 %v756
    %1514 = vmatprep.subr.mxu0 %v749
    %1515 = vmatpush1.msra.mxu0 %v748
    %1516 = vmatprep.subr.mxu0 %v741
    %1517 = vmatpush1.msra.mxu0 %v740
    %1518 = vmatprep.subr.mxu0 %v733
    %1519 = vmatpush1.msra.mxu0 %v732
    %1520 = vmatprep.subr.mxu0 %v725
    %1521 = vmatpush1.msra.mxu0 %v724
    %1522 = vmatprep.subr.mxu0 %v717
    %1523 = vmatpush1.msra.mxu0 %v716
    %1524 = vmatprep.subr.mxu0 %v709
    %1525 = vmatpush1.msra.mxu0 %v708
    %1526 = vmatprep.subr.mxu0 %v701
    %1527 = vmatpush1.msra.mxu0 %v700
    %1528 = vmatprep.subr.mxu0 %v693
    %1529 = vmatpush1.msra.mxu0 %v692
    %1530 = vmatprep.subr.mxu0 %v685
    %1531 = vmatpush1.msra.mxu0 %v684
    %1532 = vmatprep.subr.mxu0 %v933
    %1533 = vmatpush2.msra.mxu0 %v932
    %1534 = vmatprep.subr.mxu0 %v925
    %1535 = vmatpush2.msra.mxu0 %v924
    %1536 = vmatprep.subr.mxu0 %v917
    %1537 = vmatpush2.msra.mxu0 %v916
    %1538 = vmatprep.subr.mxu0 %v909
    %1539 = vmatpush2.msra.mxu0 %v908
    %1540 = vmatprep.subr.mxu0 %v901
    %1541 = vmatpush2.msra.mxu0 %v900
    %1542 = vmatprep.subr.mxu0 %v893
    %1543 = vmatpush2.msra.mxu0 %v892
    %1544 = vmatprep.subr.mxu0 %v885
    %1545 = vmatpush2.msra.mxu0 %v884
    %1546 = vmatprep.subr.mxu0 %v877
    %1547 = vmatpush2.msra.mxu0 %v876
    %1548 = vmatprep.subr.mxu0 %v869
    %1549 = vmatpush2.msra.mxu0 %v868
    %1550 = vmatprep.subr.mxu0 %v861
    %1551 = vmatpush2.msra.mxu0 %v860
    %1552 = vmatprep.subr.mxu0 %v853
    %1553 = vmatpush2.msra.mxu0 %v852
    %1554 = vmatprep.subr.mxu0 %v845
    %1555 = vmatpush2.msra.mxu0 %v844
    %1556 = vmatprep.subr.mxu0 %v837
    %1557 = vmatpush2.msra.mxu0 %v836
    %1558 = vmatprep.subr.mxu0 %v829
    %1559 = vmatpush2.msra.mxu0 %v828
    %1560 = vmatprep.subr.mxu0 %v821
    %1561 = vmatpush2.msra.mxu0 %v820
    %1562 = vmatprep.subr.mxu0 %v813
    %1563 = vmatpush2.msra.mxu0 %v812
    %1564 = vmatprep.mubr.f32.mxu0 %v1286
    %1565 = vmatmul.mubr.f32.gmra.mxu0 %v1285
    %v1566 = vpop.f32.mrf.mxu0
    %v1567 = vadd.f32 0.0, %v1566
    %v1568 = vpop.f32.mrf.mxu0
    %v1569 = vadd.f32 0.0, %v1568
    %1570 = vdwg.mxu0
    %v1579 = vrot.slane %v1354, 7
    %v1580 = vrot.slane %v1356, 7
    %v1581 = vrot.slane %v1425, 7
    %v1582 = vrot.slane %v1427, 7
    %v1583 = vrot.slane %v1496, 7
    %v1584 = vrot.slane %v1498, 7
    %v1585 = vrot.slane %v1567, 7
    %v1586 = vrot.slane %v1569, 7
    %v1595 = vadd.f32 %v461, %v1579
    %v1596 = vadd.f32 %v463, %v1580
    %v1597 = vadd.f32 %v532, %v1581
    %v1598 = vadd.f32 %v534, %v1582
    %v1599 = vadd.f32 %v603, %v1583
    %v1600 = vadd.f32 %v605, %v1584
    %v1601 = vadd.f32 %v674, %v1585
    %v1602 = vadd.f32 %v676, %v1586
    %v1603 = vmul.f32 %v1595, 0.5
    %v1604 = vmul.f32 %v1596, 0.5
    %v1605 = vtanh.pop %v1603
    %v1606 = vtanh.pop %v1604
    %v1607 = vadd.f32 %v1605, 1.0
    %v1608 = vadd.f32 %v1606, 1.0
    %v1609 = vmul.f32 %v1607, 0.5
    %v1610 = vmul.f32 %v1608, 0.5
    %v1611 = vmul.f32 %v1597, 0.5
    %v1612 = vmul.f32 %v1598, 0.5
    %v1613 = vtanh.pop %v1611
    %v1614 = vtanh.pop %v1612
    %v1615 = vadd.f32 %v1613, 1.0
    %v1616 = vadd.f32 %v1614, 1.0
    %v1617 = vmul.f32 %v1615, 0.5
    %v1618 = vmul.f32 %v1616, 0.5
    %v1619 = vtanh.pop %v1599
    %v1620 = vtanh.pop %v1600
    %v1621 = vmul.f32 %v1601, 0.5
    %v1622 = vmul.f32 %v1602, 0.5
    %v1623 = vtanh.pop %v1621
    %v1624 = vtanh.pop %v1622
    %v1625 = vadd.f32 %v1623, 1.0
    %v1626 = vadd.f32 %v1624, 1.0
    %v1627 = vmul.f32 %v1625, 0.5
    %v1628 = vmul.f32 %v1626, 0.5
    %v1631 = vrot.slane %v1281, 7
    %v1632 = vrot.slane %v1282, 7
    %v1635 = vmul.f32 %v1617, %v1631
    %v1636 = vmul.f32 %v1618, %v1632
    %v1637 = vmul.f32 %v1609, %v1619
    %v1638 = vmul.f32 %v1610, %v1620
    %v1639 = vadd.f32 %v1635, %v1637
    %v1640 = vadd.f32 %v1636, %v1638
    %v1641 = vtanh.pop %v1639
    %v1642 = vtanh.pop %v1640
    %v1643 = vmul.f32 %v1627, %v1641
    %v1644 = vmul.f32 %v1628, %v1642
    %v1647 = vrot.slane %v1643, 1
    %v1648 = vrot.slane %v1644, 1
    %1651 = vmatprep.subr.mxu0 %v799
    %1652 = vmatpush1.msra.mxu0 %v798
    %1653 = vmatprep.subr.mxu0 %v791
    %1654 = vmatpush1.msra.mxu0 %v790
    %1655 = vmatprep.subr.mxu0 %v783
    %1656 = vmatpush1.msra.mxu0 %v782
    %1657 = vmatprep.subr.mxu0 %v775
    %1658 = vmatpush1.msra.mxu0 %v774
    %1659 = vmatprep.subr.mxu0 %v767
    %1660 = vmatpush1.msra.mxu0 %v766
    %1661 = vmatprep.subr.mxu0 %v759
    %1662 = vmatpush1.msra.mxu0 %v758
    %1663 = vmatprep.subr.mxu0 %v751
    %1664 = vmatpush1.msra.mxu0 %v750
    %1665 = vmatprep.subr.mxu0 %v743
    %1666 = vmatpush1.msra.mxu0 %v742
    %1667 = vmatprep.subr.mxu0 %v735
    %1668 = vmatpush1.msra.mxu0 %v734
    %1669 = vmatprep.subr.mxu0 %v727
    %1670 = vmatpush1.msra.mxu0 %v726
    %1671 = vmatprep.subr.mxu0 %v719
    %1672 = vmatpush1.msra.mxu0 %v718
    %1673 = vmatprep.subr.mxu0 %v711
    %1674 = vmatpush1.msra.mxu0 %v710
    %1675 = vmatprep.subr.mxu0 %v703
    %1676 = vmatpush1.msra.mxu0 %v702
    %1677 = vmatprep.subr.mxu0 %v695
    %1678 = vmatpush1.msra.mxu0 %v694
    %1679 = vmatprep.subr.mxu0 %v687
    %1680 = vmatpush1.msra.mxu0 %v686
    %1681 = vmatprep.subr.mxu0 %v679
    %1682 = vmatpush1.msra.mxu0 %v678
    %1683 = vmatprep.subr.mxu0 %v927
    %1684 = vmatpush2.msra.mxu0 %v926
    %1685 = vmatprep.subr.mxu0 %v919
    %1686 = vmatpush2.msra.mxu0 %v918
    %1687 = vmatprep.subr.mxu0 %v911
    %1688 = vmatpush2.msra.mxu0 %v910
    %1689 = vmatprep.subr.mxu0 %v903
    %1690 = vmatpush2.msra.mxu0 %v902
    %1691 = vmatprep.subr.mxu0 %v895
    %1692 = vmatpush2.msra.mxu0 %v894
    %1693 = vmatprep.subr.mxu0 %v887
    %1694 = vmatpush2.msra.mxu0 %v886
    %1695 = vmatprep.subr.mxu0 %v879
    %1696 = vmatpush2.msra.mxu0 %v878
    %1697 = vmatprep.subr.mxu0 %v871
    %1698 = vmatpush2.msra.mxu0 %v870
    %1699 = vmatprep.subr.mxu0 %v863
    %1700 = vmatpush2.msra.mxu0 %v862
    %1701 = vmatprep.subr.mxu0 %v855
    %1702 = vmatpush2.msra.mxu0 %v854
    %1703 = vmatprep.subr.mxu0 %v847
    %1704 = vmatpush2.msra.mxu0 %v846
    %1705 = vmatprep.subr.mxu0 %v839
    %1706 = vmatpush2.msra.mxu0 %v838
    %1707 = vmatprep.subr.mxu0 %v831
    %1708 = vmatpush2.msra.mxu0 %v830
    %1709 = vmatprep.subr.mxu0 %v823
    %1710 = vmatpush2.msra.mxu0 %v822
    %1711 = vmatprep.subr.mxu0 %v815
    %1712 = vmatpush2.msra.mxu0 %v814
    %1713 = vmatprep.subr.mxu0 %v807
    %1714 = vmatpush2.msra.mxu0 %v806
    %1715 = vmatprep.mubr.f32.mxu0 %v1648
    %1716 = vmatmul.mubr.f32.gmra.mxu0 %v1647
    %v1717 = vpop.f32.mrf.mxu0
    %v1718 = vadd.f32 0.0, %v1717
    %v1719 = vpop.f32.mrf.mxu0
    %v1720 = vadd.f32 0.0, %v1719
    %1721 = vdwg.mxu0
    %1722 = vmatprep.subr.mxu0 %v801
    %1723 = vmatpush1.msra.mxu0 %v800
    %1724 = vmatprep.subr.mxu0 %v793
    %1725 = vmatpush1.msra.mxu0 %v792
    %1726 = vmatprep.subr.mxu0 %v785
    %1727 = vmatpush1.msra.mxu0 %v784
    %1728 = vmatprep.subr.mxu0 %v777
    %1729 = vmatpush1.msra.mxu0 %v776
    %1730 = vmatprep.subr.mxu0 %v769
    %1731 = vmatpush1.msra.mxu0 %v768
    %1732 = vmatprep.subr.mxu0 %v761
    %1733 = vmatpush1.msra.mxu0 %v760
    %1734 = vmatprep.subr.mxu0 %v753
    %1735 = vmatpush1.msra.mxu0 %v752
    %1736 = vmatprep.subr.mxu0 %v745
    %1737 = vmatpush1.msra.mxu0 %v744
    %1738 = vmatprep.subr.mxu0 %v737
    %1739 = vmatpush1.msra.mxu0 %v736
    %1740 = vmatprep.subr.mxu0 %v729
    %1741 = vmatpush1.msra.mxu0 %v728
    %1742 = vmatprep.subr.mxu0 %v721
    %1743 = vmatpush1.msra.mxu0 %v720
    %1744 = vmatprep.subr.mxu0 %v713
    %1745 = vmatpush1.msra.mxu0 %v712
    %1746 = vmatprep.subr.mxu0 %v705
    %1747 = vmatpush1.msra.mxu0 %v704
    %1748 = vmatprep.subr.mxu0 %v697
    %1749 = vmatpush1.msra.mxu0 %v696
    %1750 = vmatprep.subr.mxu0 %v689
    %1751 = vmatpush1.msra.mxu0 %v688
    %1752 = vmatprep.subr.mxu0 %v681
    %1753 = vmatpush1.msra.mxu0 %v680
    %1754 = vmatprep.subr.mxu0 %v929
    %1755 = vmatpush2.msra.mxu0 %v928
    %1756 = vmatprep.subr.mxu0 %v921
    %1757 = vmatpush2.msra.mxu0 %v920
    %1758 = vmatprep.subr.mxu0 %v913
    %1759 = vmatpush2.msra.mxu0 %v912
    %1760 = vmatprep.subr.mxu0 %v905
    %1761 = vmatpush2.msra.mxu0 %v904
    %1762 = vmatprep.subr.mxu0 %v897
    %1763 = vmatpush2.msra.mxu0 %v896
    %1764 = vmatprep.subr.mxu0 %v889
    %1765 = vmatpush2.msra.mxu0 %v888
    %1766 = vmatprep.subr.mxu0 %v881
    %1767 = vmatpush2.msra.mxu0 %v880
    %1768 = vmatprep.subr.mxu0 %v873
    %1769 = vmatpush2.msra.mxu0 %v872
    %1770 = vmatprep.subr.mxu0 %v865
    %1771 = vmatpush2.msra.mxu0 %v864
    %1772 = vmatprep.subr.mxu0 %v857
    %1773 = vmatpush2.msra.mxu0 %v856
    %1774 = vmatprep.subr.mxu0 %v849
    %1775 = vmatpush2.msra.mxu0 %v848
    %1776 = vmatprep.subr.mxu0 %v841
    %1777 = vmatpush2.msra.mxu0 %v840
    %1778 = vmatprep.subr.mxu0 %v833
    %1779 = vmatpush2.msra.mxu0 %v832
    %1780 = vmatprep.subr.mxu0 %v825
    %1781 = vmatpush2.msra.mxu0 %v824
    %1782 = vmatprep.subr.mxu0 %v817
    %1783 = vmatpush2.msra.mxu0 %v816
    %1784 = vmatprep.subr.mxu0 %v809
    %1785 = vmatpush2.msra.mxu0 %v808
    %1786 = vmatprep.mubr.f32.mxu0 %v1648
    %1787 = vmatmul.mubr.f32.gmra.mxu0 %v1647
    %v1788 = vpop.f32.mrf.mxu0
    %v1789 = vadd.f32 0.0, %v1788
    %v1790 = vpop.f32.mrf.mxu0
    %v1791 = vadd.f32 0.0, %v1790
    %1792 = vdwg.mxu0
    %1793 = vmatprep.subr.mxu0 %v803
    %1794 = vmatpush1.msra.mxu0 %v802
    %1795 = vmatprep.subr.mxu0 %v795
    %1796 = vmatpush1.msra.mxu0 %v794
    %1797 = vmatprep.subr.mxu0 %v787
    %1798 = vmatpush1.msra.mxu0 %v786
    %1799 = vmatprep.subr.mxu0 %v779
    %1800 = vmatpush1.msra.mxu0 %v778
    %1801 = vmatprep.subr.mxu0 %v771
    %1802 = vmatpush1.msra.mxu0 %v770
    %1803 = vmatprep.subr.mxu0 %v763
    %1804 = vmatpush1.msra.mxu0 %v762
    %1805 = vmatprep.subr.mxu0 %v755
    %1806 = vmatpush1.msra.mxu0 %v754
    %1807 = vmatprep.subr.mxu0 %v747
    %1808 = vmatpush1.msra.mxu0 %v746
    %1809 = vmatprep.subr.mxu0 %v739
    %1810 = vmatpush1.msra.mxu0 %v738
    %1811 = vmatprep.subr.mxu0 %v731
    %1812 = vmatpush1.msra.mxu0 %v730
    %1813 = vmatprep.subr.mxu0 %v723
    %1814 = vmatpush1.msra.mxu0 %v722
    %1815 = vmatprep.subr.mxu0 %v715
    %1816 = vmatpush1.msra.mxu0 %v714
    %1817 = vmatprep.subr.mxu0 %v707
    %1818 = vmatpush1.msra.mxu0 %v706
    %1819 = vmatprep.subr.mxu0 %v699
    %1820 = vmatpush1.msra.mxu0 %v698
    %1821 = vmatprep.subr.mxu0 %v691
    %1822 = vmatpush1.msra.mxu0 %v690
    %1823 = vmatprep.subr.mxu0 %v683
    %1824 = vmatpush1.msra.mxu0 %v682
    %1825 = vmatprep.subr.mxu0 %v931
    %1826 = vmatpush2.msra.mxu0 %v930
    %1827 = vmatprep.subr.mxu0 %v923
    %1828 = vmatpush2.msra.mxu0 %v922
    %1829 = vmatprep.subr.mxu0 %v915
    %1830 = vmatpush2.msra.mxu0 %v914
    %1831 = vmatprep.subr.mxu0 %v907
    %1832 = vmatpush2.msra.mxu0 %v906
    %1833 = vmatprep.subr.mxu0 %v899
    %1834 = vmatpush2.msra.mxu0 %v898
    %1835 = vmatprep.subr.mxu0 %v891
    %1836 = vmatpush2.msra.mxu0 %v890
    %1837 = vmatprep.subr.mxu0 %v883
    %1838 = vmatpush2.msra.mxu0 %v882
    %1839 = vmatprep.subr.mxu0 %v875
    %1840 = vmatpush2.msra.mxu0 %v874
    %1841 = vmatprep.subr.mxu0 %v867
    %1842 = vmatpush2.msra.mxu0 %v866
    %1843 = vmatprep.subr.mxu0 %v859
    %1844 = vmatpush2.msra.mxu0 %v858
    %1845 = vmatprep.subr.mxu0 %v851
    %1846 = vmatpush2.msra.mxu0 %v850
    %1847 = vmatprep.subr.mxu0 %v843
    %1848 = vmatpush2.msra.mxu0 %v842
    %1849 = vmatprep.subr.mxu0 %v835
    %1850 = vmatpush2.msra.mxu0 %v834
    %1851 = vmatprep.subr.mxu0 %v827
    %1852 = vmatpush2.msra.mxu0 %v826
    %1853 = vmatprep.subr.mxu0 %v819
    %1854 = vmatpush2.msra.mxu0 %v818
    %1855 = vmatprep.subr.mxu0 %v811
    %1856 = vmatpush2.msra.mxu0 %v810
    %1857 = vmatprep.mubr.f32.mxu0 %v1648
    %1858 = vmatmul.mubr.f32.gmra.mxu0 %v1647
    %v1859 = vpop.f32.mrf.mxu0
    %v1860 = vadd.f32 0.0, %v1859
    %v1861 = vpop.f32.mrf.mxu0
    %v1862 = vadd.f32 0.0, %v1861
    %1863 = vdwg.mxu0
    %1864 = vmatprep.subr.mxu0 %v805
    %1865 = vmatpush1.msra.mxu0 %v804
    %1866 = vmatprep.subr.mxu0 %v797
    %1867 = vmatpush1.msra.mxu0 %v796
    %1868 = vmatprep.subr.mxu0 %v789
    %1869 = vmatpush1.msra.mxu0 %v788
    %1870 = vmatprep.subr.mxu0 %v781
    %1871 = vmatpush1.msra.mxu0 %v780
    %1872 = vmatprep.subr.mxu0 %v773
    %1873 = vmatpush1.msra.mxu0 %v772
    %1874 = vmatprep.subr.mxu0 %v765
    %1875 = vmatpush1.msra.mxu0 %v764
    %1876 = vmatprep.subr.mxu0 %v757
    %1877 = vmatpush1.msra.mxu0 %v756
    %1878 = vmatprep.subr.mxu0 %v749
    %1879 = vmatpush1.msra.mxu0 %v748
    %1880 = vmatprep.subr.mxu0 %v741
    %1881 = vmatpush1.msra.mxu0 %v740
    %1882 = vmatprep.subr.mxu0 %v733
    %1883 = vmatpush1.msra.mxu0 %v732
    %1884 = vmatprep.subr.mxu0 %v725
    %1885 = vmatpush1.msra.mxu0 %v724
    %1886 = vmatprep.subr.mxu0 %v717
    %1887 = vmatpush1.msra.mxu0 %v716
    %1888 = vmatprep.subr.mxu0 %v709
    %1889 = vmatpush1.msra.mxu0 %v708
    %1890 = vmatprep.subr.mxu0 %v701
    %1891 = vmatpush1.msra.mxu0 %v700
    %1892 = vmatprep.subr.mxu0 %v693
    %1893 = vmatpush1.msra.mxu0 %v692
    %1894 = vmatprep.subr.mxu0 %v685
    %1895 = vmatpush1.msra.mxu0 %v684
    %1896 = vmatprep.subr.mxu0 %v933
    %1897 = vmatpush2.msra.mxu0 %v932
    %1898 = vmatprep.subr.mxu0 %v925
    %1899 = vmatpush2.msra.mxu0 %v924
    %1900 = vmatprep.subr.mxu0 %v917
    %1901 = vmatpush2.msra.mxu0 %v916
    %1902 = vmatprep.subr.mxu0 %v909
    %1903 = vmatpush2.msra.mxu0 %v908
    %1904 = vmatprep.subr.mxu0 %v901
    %1905 = vmatpush2.msra.mxu0 %v900
    %1906 = vmatprep.subr.mxu0 %v893
    %1907 = vmatpush2.msra.mxu0 %v892
    %1908 = vmatprep.subr.mxu0 %v885
    %1909 = vmatpush2.msra.mxu0 %v884
    %1910 = vmatprep.subr.mxu0 %v877
    %1911 = vmatpush2.msra.mxu0 %v876
    %1912 = vmatprep.subr.mxu0 %v869
    %1913 = vmatpush2.msra.mxu0 %v868
    %1914 = vmatprep.subr.mxu0 %v861
    %1915 = vmatpush2.msra.mxu0 %v860
    %1916 = vmatprep.subr.mxu0 %v853
    %1917 = vmatpush2.msra.mxu0 %v852
    %1918 = vmatprep.subr.mxu0 %v845
    %1919 = vmatpush2.msra.mxu0 %v844
    %1920 = vmatprep.subr.mxu0 %v837
    %1921 = vmatpush2.msra.mxu0 %v836
    %1922 = vmatprep.subr.mxu0 %v829
    %1923 = vmatpush2.msra.mxu0 %v828
    %1924 = vmatprep.subr.mxu0 %v821
    %1925 = vmatpush2.msra.mxu0 %v820
    %1926 = vmatprep.subr.mxu0 %v813
    %1927 = vmatpush2.msra.mxu0 %v812
    %1928 = vmatprep.mubr.f32.mxu0 %v1648
    %1929 = vmatmul.mubr.f32.gmra.mxu0 %v1647
    %v1930 = vpop.f32.mrf.mxu0
    %v1931 = vadd.f32 0.0, %v1930
    %v1932 = vpop.f32.mrf.mxu0
    %v1933 = vadd.f32 0.0, %v1932
    %1934 = vdwg.mxu0
    %v1943 = vrot.slane %v1718, 6
    %v1944 = vrot.slane %v1720, 6
    %v1945 = vrot.slane %v1789, 6
    %v1946 = vrot.slane %v1791, 6
    %v1947 = vrot.slane %v1860, 6
    %v1948 = vrot.slane %v1862, 6
    %v1949 = vrot.slane %v1931, 6
    %v1950 = vrot.slane %v1933, 6
    %v1959 = vadd.f32 %v461, %v1943
    %v1960 = vadd.f32 %v463, %v1944
    %v1961 = vadd.f32 %v532, %v1945
    %v1962 = vadd.f32 %v534, %v1946
    %v1963 = vadd.f32 %v603, %v1947
    %v1964 = vadd.f32 %v605, %v1948
    %v1965 = vadd.f32 %v674, %v1949
    %v1966 = vadd.f32 %v676, %v1950
    %v1967 = vmul.f32 %v1959, 0.5
    %v1968 = vmul.f32 %v1960, 0.5
    %v1969 = vtanh.pop %v1967
    %v1970 = vtanh.pop %v1968
    %v1971 = vadd.f32 %v1969, 1.0
    %v1972 = vadd.f32 %v1970, 1.0
    %v1973 = vmul.f32 %v1971, 0.5
    %v1974 = vmul.f32 %v1972, 0.5
    %v1975 = vmul.f32 %v1961, 0.5
    %v1976 = vmul.f32 %v1962, 0.5
    %v1977 = vtanh.pop %v1975
    %v1978 = vtanh.pop %v1976
    %v1979 = vadd.f32 %v1977, 1.0
    %v1980 = vadd.f32 %v1978, 1.0
    %v1981 = vmul.f32 %v1979, 0.5
    %v1982 = vmul.f32 %v1980, 0.5
    %v1983 = vtanh.pop %v1963
    %v1984 = vtanh.pop %v1964
    %v1985 = vmul.f32 %v1965, 0.5
    %v1986 = vmul.f32 %v1966, 0.5
    %v1987 = vtanh.pop %v1985
    %v1988 = vtanh.pop %v1986
    %v1989 = vadd.f32 %v1987, 1.0
    %v1990 = vadd.f32 %v1988, 1.0
    %v1991 = vmul.f32 %v1989, 0.5
    %v1992 = vmul.f32 %v1990, 0.5
    %v1995 = vrot.slane %v1639, 7
    %v1996 = vrot.slane %v1640, 7
    %v1999 = vmul.f32 %v1981, %v1995
    %v2000 = vmul.f32 %v1982, %v1996
    %v2001 = vmul.f32 %v1973, %v1983
    %v2002 = vmul.f32 %v1974, %v1984
    %v2003 = vadd.f32 %v1999, %v2001
    %v2004 = vadd.f32 %v2000, %v2002
    %v2005 = vtanh.pop %v2003
    %v2006 = vtanh.pop %v2004
    %v2007 = vmul.f32 %v1991, %v2005
    %v2008 = vmul.f32 %v1992, %v2006
    %v2011 = vrot.slane %v2007, 2
    %v2012 = vrot.slane %v2008, 2
    %2015 = vmatprep.subr.mxu0 %v799
    %2016 = vmatpush1.msra.mxu0 %v798
    %2017 = vmatprep.subr.mxu0 %v791
    %2018 = vmatpush1.msra.mxu0 %v790
    %2019 = vmatprep.subr.mxu0 %v783
    %2020 = vmatpush1.msra.mxu0 %v782
    %2021 = vmatprep.subr.mxu0 %v775
    %2022 = vmatpush1.msra.mxu0 %v774
    %2023 = vmatprep.subr.mxu0 %v767
    %2024 = vmatpush1.msra.mxu0 %v766
    %2025 = vmatprep.subr.mxu0 %v759
    %2026 = vmatpush1.msra.mxu0 %v758
    %2027 = vmatprep.subr.mxu0 %v751
    %2028 = vmatpush1.msra.mxu0 %v750
    %2029 = vmatprep.subr.mxu0 %v743
    %2030 = vmatpush1.msra.mxu0 %v742
    %2031 = vmatprep.subr.mxu0 %v735
    %2032 = vmatpush1.msra.mxu0 %v734
    %2033 = vmatprep.subr.mxu0 %v727
    %2034 = vmatpush1.msra.mxu0 %v726
    %2035 = vmatprep.subr.mxu0 %v719
    %2036 = vmatpush1.msra.mxu0 %v718
    %2037 = vmatprep.subr.mxu0 %v711
    %2038 = vmatpush1.msra.mxu0 %v710
    %2039 = vmatprep.subr.mxu0 %v703
    %2040 = vmatpush1.msra.mxu0 %v702
    %2041 = vmatprep.subr.mxu0 %v695
    %2042 = vmatpush1.msra.mxu0 %v694
    %2043 = vmatprep.subr.mxu0 %v687
    %2044 = vmatpush1.msra.mxu0 %v686
    %2045 = vmatprep.subr.mxu0 %v679
    %2046 = vmatpush1.msra.mxu0 %v678
    %2047 = vmatprep.subr.mxu0 %v927
    %2048 = vmatpush2.msra.mxu0 %v926
    %2049 = vmatprep.subr.mxu0 %v919
    %2050 = vmatpush2.msra.mxu0 %v918
    %2051 = vmatprep.subr.mxu0 %v911
    %2052 = vmatpush2.msra.mxu0 %v910
    %2053 = vmatprep.subr.mxu0 %v903
    %2054 = vmatpush2.msra.mxu0 %v902
    %2055 = vmatprep.subr.mxu0 %v895
    %2056 = vmatpush2.msra.mxu0 %v894
    %2057 = vmatprep.subr.mxu0 %v887
    %2058 = vmatpush2.msra.mxu0 %v886
    %2059 = vmatprep.subr.mxu0 %v879
    %2060 = vmatpush2.msra.mxu0 %v878
    %2061 = vmatprep.subr.mxu0 %v871
    %2062 = vmatpush2.msra.mxu0 %v870
    %2063 = vmatprep.subr.mxu0 %v863
    %2064 = vmatpush2.msra.mxu0 %v862
    %2065 = vmatprep.subr.mxu0 %v855
    %2066 = vmatpush2.msra.mxu0 %v854
    %2067 = vmatprep.subr.mxu0 %v847
    %2068 = vmatpush2.msra.mxu0 %v846
    %2069 = vmatprep.subr.mxu0 %v839
    %2070 = vmatpush2.msra.mxu0 %v838
    %2071 = vmatprep.subr.mxu0 %v831
    %2072 = vmatpush2.msra.mxu0 %v830
    %2073 = vmatprep.subr.mxu0 %v823
    %2074 = vmatpush2.msra.mxu0 %v822
    %2075 = vmatprep.subr.mxu0 %v815
    %2076 = vmatpush2.msra.mxu0 %v814
    %2077 = vmatprep.subr.mxu0 %v807
    %2078 = vmatpush2.msra.mxu0 %v806
    %2079 = vmatprep.mubr.f32.mxu0 %v2012
    %2080 = vmatmul.mubr.f32.gmra.mxu0 %v2011
    %v2081 = vpop.f32.mrf.mxu0
    %v2082 = vadd.f32 0.0, %v2081
    %v2083 = vpop.f32.mrf.mxu0
    %v2084 = vadd.f32 0.0, %v2083
    %2085 = vdwg.mxu0
    %2086 = vmatprep.subr.mxu0 %v801
    %2087 = vmatpush1.msra.mxu0 %v800
    %2088 = vmatprep.subr.mxu0 %v793
    %2089 = vmatpush1.msra.mxu0 %v792
    %2090 = vmatprep.subr.mxu0 %v785
    %2091 = vmatpush1.msra.mxu0 %v784
    %2092 = vmatprep.subr.mxu0 %v777
    %2093 = vmatpush1.msra.mxu0 %v776
    %2094 = vmatprep.subr.mxu0 %v769
    %2095 = vmatpush1.msra.mxu0 %v768
    %2096 = vmatprep.subr.mxu0 %v761
    %2097 = vmatpush1.msra.mxu0 %v760
    %2098 = vmatprep.subr.mxu0 %v753
    %2099 = vmatpush1.msra.mxu0 %v752
    %2100 = vmatprep.subr.mxu0 %v745
    %2101 = vmatpush1.msra.mxu0 %v744
    %2102 = vmatprep.subr.mxu0 %v737
    %2103 = vmatpush1.msra.mxu0 %v736
    %2104 = vmatprep.subr.mxu0 %v729
    %2105 = vmatpush1.msra.mxu0 %v728
    %2106 = vmatprep.subr.mxu0 %v721
    %2107 = vmatpush1.msra.mxu0 %v720
    %2108 = vmatprep.subr.mxu0 %v713
    %2109 = vmatpush1.msra.mxu0 %v712
    %2110 = vmatprep.subr.mxu0 %v705
    %2111 = vmatpush1.msra.mxu0 %v704
    %2112 = vmatprep.subr.mxu0 %v697
    %2113 = vmatpush1.msra.mxu0 %v696
    %2114 = vmatprep.subr.mxu0 %v689
    %2115 = vmatpush1.msra.mxu0 %v688
    %2116 = vmatprep.subr.mxu0 %v681
    %2117 = vmatpush1.msra.mxu0 %v680
    %2118 = vmatprep.subr.mxu0 %v929
    %2119 = vmatpush2.msra.mxu0 %v928
    %2120 = vmatprep.subr.mxu0 %v921
    %2121 = vmatpush2.msra.mxu0 %v920
    %2122 = vmatprep.subr.mxu0 %v913
    %2123 = vmatpush2.msra.mxu0 %v912
    %2124 = vmatprep.subr.mxu0 %v905
    %2125 = vmatpush2.msra.mxu0 %v904
    %2126 = vmatprep.subr.mxu0 %v897
    %2127 = vmatpush2.msra.mxu0 %v896
    %2128 = vmatprep.subr.mxu0 %v889
    %2129 = vmatpush2.msra.mxu0 %v888
    %2130 = vmatprep.subr.mxu0 %v881
    %2131 = vmatpush2.msra.mxu0 %v880
    %2132 = vmatprep.subr.mxu0 %v873
    %2133 = vmatpush2.msra.mxu0 %v872
    %2134 = vmatprep.subr.mxu0 %v865
    %2135 = vmatpush2.msra.mxu0 %v864
    %2136 = vmatprep.subr.mxu0 %v857
    %2137 = vmatpush2.msra.mxu0 %v856
    %2138 = vmatprep.subr.mxu0 %v849
    %2139 = vmatpush2.msra.mxu0 %v848
    %2140 = vmatprep.subr.mxu0 %v841
    %2141 = vmatpush2.msra.mxu0 %v840
    %2142 = vmatprep.subr.mxu0 %v833
    %2143 = vmatpush2.msra.mxu0 %v832
    %2144 = vmatprep.subr.mxu0 %v825
    %2145 = vmatpush2.msra.mxu0 %v824
    %2146 = vmatprep.subr.mxu0 %v817
    %2147 = vmatpush2.msra.mxu0 %v816
    %2148 = vmatprep.subr.mxu0 %v809
    %2149 = vmatpush2.msra.mxu0 %v808
    %2150 = vmatprep.mubr.f32.mxu0 %v2012
    %2151 = vmatmul.mubr.f32.gmra.mxu0 %v2011
    %v2152 = vpop.f32.mrf.mxu0
    %v2153 = vadd.f32 0.0, %v2152
    %v2154 = vpop.f32.mrf.mxu0
    %v2155 = vadd.f32 0.0, %v2154
    %2156 = vdwg.mxu0
    %2157 = vmatprep.subr.mxu0 %v803
    %2158 = vmatpush1.msra.mxu0 %v802
    %2159 = vmatprep.subr.mxu0 %v795
    %2160 = vmatpush1.msra.mxu0 %v794
    %2161 = vmatprep.subr.mxu0 %v787
    %2162 = vmatpush1.msra.mxu0 %v786
    %2163 = vmatprep.subr.mxu0 %v779
    %2164 = vmatpush1.msra.mxu0 %v778
    %2165 = vmatprep.subr.mxu0 %v771
    %2166 = vmatpush1.msra.mxu0 %v770
    %2167 = vmatprep.subr.mxu0 %v763
    %2168 = vmatpush1.msra.mxu0 %v762
    %2169 = vmatprep.subr.mxu0 %v755
    %2170 = vmatpush1.msra.mxu0 %v754
    %2171 = vmatprep.subr.mxu0 %v747
    %2172 = vmatpush1.msra.mxu0 %v746
    %2173 = vmatprep.subr.mxu0 %v739
    %2174 = vmatpush1.msra.mxu0 %v738
    %2175 = vmatprep.subr.mxu0 %v731
    %2176 = vmatpush1.msra.mxu0 %v730
    %2177 = vmatprep.subr.mxu0 %v723
    %2178 = vmatpush1.msra.mxu0 %v722
    %2179 = vmatprep.subr.mxu0 %v715
    %2180 = vmatpush1.msra.mxu0 %v714
    %2181 = vmatprep.subr.mxu0 %v707
    %2182 = vmatpush1.msra.mxu0 %v706
    %2183 = vmatprep.subr.mxu0 %v699
    %2184 = vmatpush1.msra.mxu0 %v698
    %2185 = vmatprep.subr.mxu0 %v691
    %2186 = vmatpush1.msra.mxu0 %v690
    %2187 = vmatprep.subr.mxu0 %v683
    %2188 = vmatpush1.msra.mxu0 %v682
    %2189 = vmatprep.subr.mxu0 %v931
    %2190 = vmatpush2.msra.mxu0 %v930
    %2191 = vmatprep.subr.mxu0 %v923
    %2192 = vmatpush2.msra.mxu0 %v922
    %2193 = vmatprep.subr.mxu0 %v915
    %2194 = vmatpush2.msra.mxu0 %v914
    %2195 = vmatprep.subr.mxu0 %v907
    %2196 = vmatpush2.msra.mxu0 %v906
    %2197 = vmatprep.subr.mxu0 %v899
    %2198 = vmatpush2.msra.mxu0 %v898
    %2199 = vmatprep.subr.mxu0 %v891
    %2200 = vmatpush2.msra.mxu0 %v890
    %2201 = vmatprep.subr.mxu0 %v883
    %2202 = vmatpush2.msra.mxu0 %v882
    %2203 = vmatprep.subr.mxu0 %v875
    %2204 = vmatpush2.msra.mxu0 %v874
    %2205 = vmatprep.subr.mxu0 %v867
    %2206 = vmatpush2.msra.mxu0 %v866
    %2207 = vmatprep.subr.mxu0 %v859
    %2208 = vmatpush2.msra.mxu0 %v858
    %2209 = vmatprep.subr.mxu0 %v851
    %2210 = vmatpush2.msra.mxu0 %v850
    %2211 = vmatprep.subr.mxu0 %v843
    %2212 = vmatpush2.msra.mxu0 %v842
    %2213 = vmatprep.subr.mxu0 %v835
    %2214 = vmatpush2.msra.mxu0 %v834
    %2215 = vmatprep.subr.mxu0 %v827
    %2216 = vmatpush2.msra.mxu0 %v826
    %2217 = vmatprep.subr.mxu0 %v819
    %2218 = vmatpush2.msra.mxu0 %v818
    %2219 = vmatprep.subr.mxu0 %v811
    %2220 = vmatpush2.msra.mxu0 %v810
    %2221 = vmatprep.mubr.f32.mxu0 %v2012
    %2222 = vmatmul.mubr.f32.gmra.mxu0 %v2011
    %v2223 = vpop.f32.mrf.mxu0
    %v2224 = vadd.f32 0.0, %v2223
    %v2225 = vpop.f32.mrf.mxu0
    %v2226 = vadd.f32 0.0, %v2225
    %2227 = vdwg.mxu0
    %2228 = vmatprep.subr.mxu0 %v805
    %2229 = vmatpush1.msra.mxu0 %v804
    %2230 = vmatprep.subr.mxu0 %v797
    %2231 = vmatpush1.msra.mxu0 %v796
    %2232 = vmatprep.subr.mxu0 %v789
    %2233 = vmatpush1.msra.mxu0 %v788
    %2234 = vmatprep.subr.mxu0 %v781
    %2235 = vmatpush1.msra.mxu0 %v780
    %2236 = vmatprep.subr.mxu0 %v773
    %2237 = vmatpush1.msra.mxu0 %v772
    %2238 = vmatprep.subr.mxu0 %v765
    %2239 = vmatpush1.msra.mxu0 %v764
    %2240 = vmatprep.subr.mxu0 %v757
    %2241 = vmatpush1.msra.mxu0 %v756
    %2242 = vmatprep.subr.mxu0 %v749
    %2243 = vmatpush1.msra.mxu0 %v748
    %2244 = vmatprep.subr.mxu0 %v741
    %2245 = vmatpush1.msra.mxu0 %v740
    %2246 = vmatprep.subr.mxu0 %v733
    %2247 = vmatpush1.msra.mxu0 %v732
    %2248 = vmatprep.subr.mxu0 %v725
    %2249 = vmatpush1.msra.mxu0 %v724
    %2250 = vmatprep.subr.mxu0 %v717
    %2251 = vmatpush1.msra.mxu0 %v716
    %2252 = vmatprep.subr.mxu0 %v709
    %2253 = vmatpush1.msra.mxu0 %v708
    %2254 = vmatprep.subr.mxu0 %v701
    %2255 = vmatpush1.msra.mxu0 %v700
    %2256 = vmatprep.subr.mxu0 %v693
    %2257 = vmatpush1.msra.mxu0 %v692
    %2258 = vmatprep.subr.mxu0 %v685
    %2259 = vmatpush1.msra.mxu0 %v684
    %2260 = vmatprep.subr.mxu0 %v933
    %2261 = vmatpush2.msra.mxu0 %v932
    %2262 = vmatprep.subr.mxu0 %v925
    %2263 = vmatpush2.msra.mxu0 %v924
    %2264 = vmatprep.subr.mxu0 %v917
    %2265 = vmatpush2.msra.mxu0 %v916
    %2266 = vmatprep.subr.mxu0 %v909
    %2267 = vmatpush2.msra.mxu0 %v908
    %2268 = vmatprep.subr.mxu0 %v901
    %2269 = vmatpush2.msra.mxu0 %v900
    %2270 = vmatprep.subr.mxu0 %v893
    %2271 = vmatpush2.msra.mxu0 %v892
    %2272 = vmatprep.subr.mxu0 %v885
    %2273 = vmatpush2.msra.mxu0 %v884
    %2274 = vmatprep.subr.mxu0 %v877
    %2275 = vmatpush2.msra.mxu0 %v876
    %2276 = vmatprep.subr.mxu0 %v869
    %2277 = vmatpush2.msra.mxu0 %v868
    %2278 = vmatprep.subr.mxu0 %v861
    %2279 = vmatpush2.msra.mxu0 %v860
    %2280 = vmatprep.subr.mxu0 %v853
    %2281 = vmatpush2.msra.mxu0 %v852
    %2282 = vmatprep.subr.mxu0 %v845
    %2283 = vmatpush2.msra.mxu0 %v844
    %2284 = vmatprep.subr.mxu0 %v837
    %2285 = vmatpush2.msra.mxu0 %v836
    %2286 = vmatprep.subr.mxu0 %v829
    %2287 = vmatpush2.msra.mxu0 %v828
    %2288 = vmatprep.subr.mxu0 %v821
    %2289 = vmatpush2.msra.mxu0 %v820
    %2290 = vmatprep.subr.mxu0 %v813
    %2291 = vmatpush2.msra.mxu0 %v812
    %2292 = vmatprep.mubr.f32.mxu0 %v2012
    %2293 = vmatmul.mubr.f32.gmra.mxu0 %v2011
    %v2294 = vpop.f32.mrf.mxu0
    %v2295 = vadd.f32 0.0, %v2294
    %v2296 = vpop.f32.mrf.mxu0
    %v2297 = vadd.f32 0.0, %v2296
    %2298 = vdwg.mxu0
    %v2307 = vrot.slane %v2082, 5
    %v2308 = vrot.slane %v2084, 5
    %v2309 = vrot.slane %v2153, 5
    %v2310 = vrot.slane %v2155, 5
    %v2311 = vrot.slane %v2224, 5
    %v2312 = vrot.slane %v2226, 5
    %v2313 = vrot.slane %v2295, 5
    %v2314 = vrot.slane %v2297, 5
    %v2323 = vadd.f32 %v461, %v2307
    %v2324 = vadd.f32 %v463, %v2308
    %v2325 = vadd.f32 %v532, %v2309
    %v2326 = vadd.f32 %v534, %v2310
    %v2327 = vadd.f32 %v603, %v2311
    %v2328 = vadd.f32 %v605, %v2312
    %v2329 = vadd.f32 %v674, %v2313
    %v2330 = vadd.f32 %v676, %v2314
    %v2331 = vmul.f32 %v2323, 0.5
    %v2332 = vmul.f32 %v2324, 0.5
    %v2333 = vtanh.pop %v2331
    %v2334 = vtanh.pop %v2332
    %v2335 = vadd.f32 %v2333, 1.0
    %v2336 = vadd.f32 %v2334, 1.0
    %v2337 = vmul.f32 %v2335, 0.5
    %v2338 = vmul.f32 %v2336, 0.5
    %v2339 = vmul.f32 %v2325, 0.5
    %v2340 = vmul.f32 %v2326, 0.5
    %v2341 = vtanh.pop %v2339
    %v2342 = vtanh.pop %v2340
    %v2343 = vadd.f32 %v2341, 1.0
    %v2344 = vadd.f32 %v2342, 1.0
    %v2345 = vmul.f32 %v2343, 0.5
    %v2346 = vmul.f32 %v2344, 0.5
    %v2347 = vtanh.pop %v2327
    %v2348 = vtanh.pop %v2328
    %v2349 = vmul.f32 %v2329, 0.5
    %v2350 = vmul.f32 %v2330, 0.5
    %v2351 = vtanh.pop %v2349
    %v2352 = vtanh.pop %v2350
    %v2353 = vadd.f32 %v2351, 1.0
    %v2354 = vadd.f32 %v2352, 1.0
    %v2355 = vmul.f32 %v2353, 0.5
    %v2356 = vmul.f32 %v2354, 0.5
    %v2359 = vrot.slane %v2003, 7
    %v2360 = vrot.slane %v2004, 7
    %v2363 = vmul.f32 %v2345, %v2359
    %v2364 = vmul.f32 %v2346, %v2360
    %v2365 = vmul.f32 %v2337, %v2347
    %v2366 = vmul.f32 %v2338, %v2348
    %v2367 = vadd.f32 %v2363, %v2365
    %v2368 = vadd.f32 %v2364, %v2366
    %v2369 = vtanh.pop %v2367
    %v2370 = vtanh.pop %v2368
    %v2371 = vmul.f32 %v2355, %v2369
    %v2372 = vmul.f32 %v2356, %v2370
    %v2375 = vrot.slane %v2371, 3
    %v2376 = vrot.slane %v2372, 3
    %2379 = vmatprep.subr.mxu0 %v799
    %2380 = vmatpush1.msra.mxu0 %v798
    %2381 = vmatprep.subr.mxu0 %v791
    %2382 = vmatpush1.msra.mxu0 %v790
    %2383 = vmatprep.subr.mxu0 %v783
    %2384 = vmatpush1.msra.mxu0 %v782
    %2385 = vmatprep.subr.mxu0 %v775
    %2386 = vmatpush1.msra.mxu0 %v774
    %2387 = vmatprep.subr.mxu0 %v767
    %2388 = vmatpush1.msra.mxu0 %v766
    %2389 = vmatprep.subr.mxu0 %v759
    %2390 = vmatpush1.msra.mxu0 %v758
    %2391 = vmatprep.subr.mxu0 %v751
    %2392 = vmatpush1.msra.mxu0 %v750
    %2393 = vmatprep.subr.mxu0 %v743
    %2394 = vmatpush1.msra.mxu0 %v742
    %2395 = vmatprep.subr.mxu0 %v735
    %2396 = vmatpush1.msra.mxu0 %v734
    %2397 = vmatprep.subr.mxu0 %v727
    %2398 = vmatpush1.msra.mxu0 %v726
    %2399 = vmatprep.subr.mxu0 %v719
    %2400 = vmatpush1.msra.mxu0 %v718
    %2401 = vmatprep.subr.mxu0 %v711
    %2402 = vmatpush1.msra.mxu0 %v710
    %2403 = vmatprep.subr.mxu0 %v703
    %2404 = vmatpush1.msra.mxu0 %v702
    %2405 = vmatprep.subr.mxu0 %v695
    %2406 = vmatpush1.msra.mxu0 %v694
    %2407 = vmatprep.subr.mxu0 %v687
    %2408 = vmatpush1.msra.mxu0 %v686
    %2409 = vmatprep.subr.mxu0 %v679
    %2410 = vmatpush1.msra.mxu0 %v678
    %2411 = vmatprep.subr.mxu0 %v927
    %2412 = vmatpush2.msra.mxu0 %v926
    %2413 = vmatprep.subr.mxu0 %v919
    %2414 = vmatpush2.msra.mxu0 %v918
    %2415 = vmatprep.subr.mxu0 %v911
    %2416 = vmatpush2.msra.mxu0 %v910
    %2417 = vmatprep.subr.mxu0 %v903
    %2418 = vmatpush2.msra.mxu0 %v902
    %2419 = vmatprep.subr.mxu0 %v895
    %2420 = vmatpush2.msra.mxu0 %v894
    %2421 = vmatprep.subr.mxu0 %v887
    %2422 = vmatpush2.msra.mxu0 %v886
    %2423 = vmatprep.subr.mxu0 %v879
    %2424 = vmatpush2.msra.mxu0 %v878
    %2425 = vmatprep.subr.mxu0 %v871
    %2426 = vmatpush2.msra.mxu0 %v870
    %2427 = vmatprep.subr.mxu0 %v863
    %2428 = vmatpush2.msra.mxu0 %v862
    %2429 = vmatprep.subr.mxu0 %v855
    %2430 = vmatpush2.msra.mxu0 %v854
    %2431 = vmatprep.subr.mxu0 %v847
    %2432 = vmatpush2.msra.mxu0 %v846
    %2433 = vmatprep.subr.mxu0 %v839
    %2434 = vmatpush2.msra.mxu0 %v838
    %2435 = vmatprep.subr.mxu0 %v831
    %2436 = vmatpush2.msra.mxu0 %v830
    %2437 = vmatprep.subr.mxu0 %v823
    %2438 = vmatpush2.msra.mxu0 %v822
    %2439 = vmatprep.subr.mxu0 %v815
    %2440 = vmatpush2.msra.mxu0 %v814
    %2441 = vmatprep.subr.mxu0 %v807
    %2442 = vmatpush2.msra.mxu0 %v806
    %2443 = vmatprep.mubr.f32.mxu0 %v2376
    %2444 = vmatmul.mubr.f32.gmra.mxu0 %v2375
    %v2445 = vpop.f32.mrf.mxu0
    %v2446 = vadd.f32 0.0, %v2445
    %v2447 = vpop.f32.mrf.mxu0
    %v2448 = vadd.f32 0.0, %v2447
    %2449 = vdwg.mxu0
    %2450 = vmatprep.subr.mxu0 %v801
    %2451 = vmatpush1.msra.mxu0 %v800
    %2452 = vmatprep.subr.mxu0 %v793
    %2453 = vmatpush1.msra.mxu0 %v792
    %2454 = vmatprep.subr.mxu0 %v785
    %2455 = vmatpush1.msra.mxu0 %v784
    %2456 = vmatprep.subr.mxu0 %v777
    %2457 = vmatpush1.msra.mxu0 %v776
    %2458 = vmatprep.subr.mxu0 %v769
    %2459 = vmatpush1.msra.mxu0 %v768
    %2460 = vmatprep.subr.mxu0 %v761
    %2461 = vmatpush1.msra.mxu0 %v760
    %2462 = vmatprep.subr.mxu0 %v753
    %2463 = vmatpush1.msra.mxu0 %v752
    %2464 = vmatprep.subr.mxu0 %v745
    %2465 = vmatpush1.msra.mxu0 %v744
    %2466 = vmatprep.subr.mxu0 %v737
    %2467 = vmatpush1.msra.mxu0 %v736
    %2468 = vmatprep.subr.mxu0 %v729
    %2469 = vmatpush1.msra.mxu0 %v728
    %2470 = vmatprep.subr.mxu0 %v721
    %2471 = vmatpush1.msra.mxu0 %v720
    %2472 = vmatprep.subr.mxu0 %v713
    %2473 = vmatpush1.msra.mxu0 %v712
    %2474 = vmatprep.subr.mxu0 %v705
    %2475 = vmatpush1.msra.mxu0 %v704
    %2476 = vmatprep.subr.mxu0 %v697
    %2477 = vmatpush1.msra.mxu0 %v696
    %2478 = vmatprep.subr.mxu0 %v689
    %2479 = vmatpush1.msra.mxu0 %v688
    %2480 = vmatprep.subr.mxu0 %v681
    %2481 = vmatpush1.msra.mxu0 %v680
    %2482 = vmatprep.subr.mxu0 %v929
    %2483 = vmatpush2.msra.mxu0 %v928
    %2484 = vmatprep.subr.mxu0 %v921
    %2485 = vmatpush2.msra.mxu0 %v920
    %2486 = vmatprep.subr.mxu0 %v913
    %2487 = vmatpush2.msra.mxu0 %v912
    %2488 = vmatprep.subr.mxu0 %v905
    %2489 = vmatpush2.msra.mxu0 %v904
    %2490 = vmatprep.subr.mxu0 %v897
    %2491 = vmatpush2.msra.mxu0 %v896
    %2492 = vmatprep.subr.mxu0 %v889
    %2493 = vmatpush2.msra.mxu0 %v888
    %2494 = vmatprep.subr.mxu0 %v881
    %2495 = vmatpush2.msra.mxu0 %v880
    %2496 = vmatprep.subr.mxu0 %v873
    %2497 = vmatpush2.msra.mxu0 %v872
    %2498 = vmatprep.subr.mxu0 %v865
    %2499 = vmatpush2.msra.mxu0 %v864
    %2500 = vmatprep.subr.mxu0 %v857
    %2501 = vmatpush2.msra.mxu0 %v856
    %2502 = vmatprep.subr.mxu0 %v849
    %2503 = vmatpush2.msra.mxu0 %v848
    %2504 = vmatprep.subr.mxu0 %v841
    %2505 = vmatpush2.msra.mxu0 %v840
    %2506 = vmatprep.subr.mxu0 %v833
    %2507 = vmatpush2.msra.mxu0 %v832
    %2508 = vmatprep.subr.mxu0 %v825
    %2509 = vmatpush2.msra.mxu0 %v824
    %2510 = vmatprep.subr.mxu0 %v817
    %2511 = vmatpush2.msra.mxu0 %v816
    %2512 = vmatprep.subr.mxu0 %v809
    %2513 = vmatpush2.msra.mxu0 %v808
    %2514 = vmatprep.mubr.f32.mxu0 %v2376
    %2515 = vmatmul.mubr.f32.gmra.mxu0 %v2375
    %v2516 = vpop.f32.mrf.mxu0
    %v2517 = vadd.f32 0.0, %v2516
    %v2518 = vpop.f32.mrf.mxu0
    %v2519 = vadd.f32 0.0, %v2518
    %2520 = vdwg.mxu0
    %2521 = vmatprep.subr.mxu0 %v803
    %2522 = vmatpush1.msra.mxu0 %v802
    %2523 = vmatprep.subr.mxu0 %v795
    %2524 = vmatpush1.msra.mxu0 %v794
    %2525 = vmatprep.subr.mxu0 %v787
    %2526 = vmatpush1.msra.mxu0 %v786
    %2527 = vmatprep.subr.mxu0 %v779
    %2528 = vmatpush1.msra.mxu0 %v778
    %2529 = vmatprep.subr.mxu0 %v771
    %2530 = vmatpush1.msra.mxu0 %v770
    %2531 = vmatprep.subr.mxu0 %v763
    %2532 = vmatpush1.msra.mxu0 %v762
    %2533 = vmatprep.subr.mxu0 %v755
    %2534 = vmatpush1.msra.mxu0 %v754
    %2535 = vmatprep.subr.mxu0 %v747
    %2536 = vmatpush1.msra.mxu0 %v746
    %2537 = vmatprep.subr.mxu0 %v739
    %2538 = vmatpush1.msra.mxu0 %v738
    %2539 = vmatprep.subr.mxu0 %v731
    %2540 = vmatpush1.msra.mxu0 %v730
    %2541 = vmatprep.subr.mxu0 %v723
    %2542 = vmatpush1.msra.mxu0 %v722
    %2543 = vmatprep.subr.mxu0 %v715
    %2544 = vmatpush1.msra.mxu0 %v714
    %2545 = vmatprep.subr.mxu0 %v707
    %2546 = vmatpush1.msra.mxu0 %v706
    %2547 = vmatprep.subr.mxu0 %v699
    %2548 = vmatpush1.msra.mxu0 %v698
    %2549 = vmatprep.subr.mxu0 %v691
    %2550 = vmatpush1.msra.mxu0 %v690
    %2551 = vmatprep.subr.mxu0 %v683
    %2552 = vmatpush1.msra.mxu0 %v682
    %2553 = vmatprep.subr.mxu0 %v931
    %2554 = vmatpush2.msra.mxu0 %v930
    %2555 = vmatprep.subr.mxu0 %v923
    %2556 = vmatpush2.msra.mxu0 %v922
    %2557 = vmatprep.subr.mxu0 %v915
    %2558 = vmatpush2.msra.mxu0 %v914
    %2559 = vmatprep.subr.mxu0 %v907
    %2560 = vmatpush2.msra.mxu0 %v906
    %2561 = vmatprep.subr.mxu0 %v899
    %2562 = vmatpush2.msra.mxu0 %v898
    %2563 = vmatprep.subr.mxu0 %v891
    %2564 = vmatpush2.msra.mxu0 %v890
    %2565 = vmatprep.subr.mxu0 %v883
    %2566 = vmatpush2.msra.mxu0 %v882
    %2567 = vmatprep.subr.mxu0 %v875
    %2568 = vmatpush2.msra.mxu0 %v874
    %2569 = vmatprep.subr.mxu0 %v867
    %2570 = vmatpush2.msra.mxu0 %v866
    %2571 = vmatprep.subr.mxu0 %v859
    %2572 = vmatpush2.msra.mxu0 %v858
    %2573 = vmatprep.subr.mxu0 %v851
    %2574 = vmatpush2.msra.mxu0 %v850
    %2575 = vmatprep.subr.mxu0 %v843
    %2576 = vmatpush2.msra.mxu0 %v842
    %2577 = vmatprep.subr.mxu0 %v835
    %2578 = vmatpush2.msra.mxu0 %v834
    %2579 = vmatprep.subr.mxu0 %v827
    %2580 = vmatpush2.msra.mxu0 %v826
    %2581 = vmatprep.subr.mxu0 %v819
    %2582 = vmatpush2.msra.mxu0 %v818
    %2583 = vmatprep.subr.mxu0 %v811
    %2584 = vmatpush2.msra.mxu0 %v810
    %2585 = vmatprep.mubr.f32.mxu0 %v2376
    %2586 = vmatmul.mubr.f32.gmra.mxu0 %v2375
    %v2587 = vpop.f32.mrf.mxu0
    %v2588 = vadd.f32 0.0, %v2587
    %v2589 = vpop.f32.mrf.mxu0
    %v2590 = vadd.f32 0.0, %v2589
    %2591 = vdwg.mxu0
    %2592 = vmatprep.subr.mxu0 %v805
    %2593 = vmatpush1.msra.mxu0 %v804
    %2594 = vmatprep.subr.mxu0 %v797
    %2595 = vmatpush1.msra.mxu0 %v796
    %2596 = vmatprep.subr.mxu0 %v789
    %2597 = vmatpush1.msra.mxu0 %v788
    %2598 = vmatprep.subr.mxu0 %v781
    %2599 = vmatpush1.msra.mxu0 %v780
    %2600 = vmatprep.subr.mxu0 %v773
    %2601 = vmatpush1.msra.mxu0 %v772
    %2602 = vmatprep.subr.mxu0 %v765
    %2603 = vmatpush1.msra.mxu0 %v764
    %2604 = vmatprep.subr.mxu0 %v757
    %2605 = vmatpush1.msra.mxu0 %v756
    %2606 = vmatprep.subr.mxu0 %v749
    %2607 = vmatpush1.msra.mxu0 %v748
    %2608 = vmatprep.subr.mxu0 %v741
    %2609 = vmatpush1.msra.mxu0 %v740
    %2610 = vmatprep.subr.mxu0 %v733
    %2611 = vmatpush1.msra.mxu0 %v732
    %2612 = vmatprep.subr.mxu0 %v725
    %2613 = vmatpush1.msra.mxu0 %v724
    %2614 = vmatprep.subr.mxu0 %v717
    %2615 = vmatpush1.msra.mxu0 %v716
    %2616 = vmatprep.subr.mxu0 %v709
    %2617 = vmatpush1.msra.mxu0 %v708
    %2618 = vmatprep.subr.mxu0 %v701
    %2619 = vmatpush1.msra.mxu0 %v700
    %2620 = vmatprep.subr.mxu0 %v693
    %2621 = vmatpush1.msra.mxu0 %v692
    %2622 = vmatprep.subr.mxu0 %v685
    %2623 = vmatpush1.msra.mxu0 %v684
    %2624 = vmatprep.subr.mxu0 %v933
    %2625 = vmatpush2.msra.mxu0 %v932
    %2626 = vmatprep.subr.mxu0 %v925
    %2627 = vmatpush2.msra.mxu0 %v924
    %2628 = vmatprep.subr.mxu0 %v917
    %2629 = vmatpush2.msra.mxu0 %v916
    %2630 = vmatprep.subr.mxu0 %v909
    %2631 = vmatpush2.msra.mxu0 %v908
    %2632 = vmatprep.subr.mxu0 %v901
    %2633 = vmatpush2.msra.mxu0 %v900
    %2634 = vmatprep.subr.mxu0 %v893
    %2635 = vmatpush2.msra.mxu0 %v892
    %2636 = vmatprep.subr.mxu0 %v885
    %2637 = vmatpush2.msra.mxu0 %v884
    %2638 = vmatprep.subr.mxu0 %v877
    %2639 = vmatpush2.msra.mxu0 %v876
    %2640 = vmatprep.subr.mxu0 %v869
    %2641 = vmatpush2.msra.mxu0 %v868
    %2642 = vmatprep.subr.mxu0 %v861
    %2643 = vmatpush2.msra.mxu0 %v860
    %2644 = vmatprep.subr.mxu0 %v853
    %2645 = vmatpush2.msra.mxu0 %v852
    %2646 = vmatprep.subr.mxu0 %v845
    %2647 = vmatpush2.msra.mxu0 %v844
    %2648 = vmatprep.subr.mxu0 %v837
    %2649 = vmatpush2.msra.mxu0 %v836
    %2650 = vmatprep.subr.mxu0 %v829
    %2651 = vmatpush2.msra.mxu0 %v828
    %2652 = vmatprep.subr.mxu0 %v821
    %2653 = vmatpush2.msra.mxu0 %v820
    %2654 = vmatprep.subr.mxu0 %v813
    %2655 = vmatpush2.msra.mxu0 %v812
    %2656 = vmatprep.mubr.f32.mxu0 %v2376
    %2657 = vmatmul.mubr.f32.gmra.mxu0 %v2375
    %v2658 = vpop.f32.mrf.mxu0
    %v2659 = vadd.f32 0.0, %v2658
    %v2660 = vpop.f32.mrf.mxu0
    %v2661 = vadd.f32 0.0, %v2660
    %2662 = vdwg.mxu0
    %v2671 = vrot.slane %v2446, 4
    %v2672 = vrot.slane %v2448, 4
    %v2673 = vrot.slane %v2517, 4
    %v2674 = vrot.slane %v2519, 4
    %v2675 = vrot.slane %v2588, 4
    %v2676 = vrot.slane %v2590, 4
    %v2677 = vrot.slane %v2659, 4
    %v2678 = vrot.slane %v2661, 4
    %v2687 = vadd.f32 %v461, %v2671
    %v2688 = vadd.f32 %v463, %v2672
    %v2689 = vadd.f32 %v532, %v2673
    %v2690 = vadd.f32 %v534, %v2674
    %v2691 = vadd.f32 %v603, %v2675
    %v2692 = vadd.f32 %v605, %v2676
    %v2693 = vadd.f32 %v674, %v2677
    %v2694 = vadd.f32 %v676, %v2678
    %v2695 = vmul.f32 %v2687, 0.5
    %v2696 = vmul.f32 %v2688, 0.5
    %v2697 = vtanh.pop %v2695
    %v2698 = vtanh.pop %v2696
    %v2699 = vadd.f32 %v2697, 1.0
    %v2700 = vadd.f32 %v2698, 1.0
    %v2701 = vmul.f32 %v2699, 0.5
    %v2702 = vmul.f32 %v2700, 0.5
    %v2703 = vmul.f32 %v2689, 0.5
    %v2704 = vmul.f32 %v2690, 0.5
    %v2705 = vtanh.pop %v2703
    %v2706 = vtanh.pop %v2704
    %v2707 = vadd.f32 %v2705, 1.0
    %v2708 = vadd.f32 %v2706, 1.0
    %v2709 = vmul.f32 %v2707, 0.5
    %v2710 = vmul.f32 %v2708, 0.5
    %v2711 = vtanh.pop %v2691
    %v2712 = vtanh.pop %v2692
    %v2713 = vmul.f32 %v2693, 0.5
    %v2714 = vmul.f32 %v2694, 0.5
    %v2715 = vtanh.pop %v2713
    %v2716 = vtanh.pop %v2714
    %v2717 = vadd.f32 %v2715, 1.0
    %v2718 = vadd.f32 %v2716, 1.0
    %v2719 = vmul.f32 %v2717, 0.5
    %v2720 = vmul.f32 %v2718, 0.5
    %v2723 = vrot.slane %v2367, 7
    %v2724 = vrot.slane %v2368, 7
    %v2727 = vmul.f32 %v2709, %v2723
    %v2728 = vmul.f32 %v2710, %v2724
    %v2729 = vmul.f32 %v2701, %v2711
    %v2730 = vmul.f32 %v2702, %v2712
    %v2731 = vadd.f32 %v2727, %v2729
    %v2732 = vadd.f32 %v2728, %v2730
    %v2733 = vtanh.pop %v2731
    %v2734 = vtanh.pop %v2732
    %v2735 = vmul.f32 %v2719, %v2733
    %v2736 = vmul.f32 %v2720, %v2734
    %v2739 = vrot.slane %v2735, 4
    %v2740 = vrot.slane %v2736, 4
    %2743 = vmatprep.subr.mxu0 %v799
    %2744 = vmatpush1.msra.mxu0 %v798
    %2745 = vmatprep.subr.mxu0 %v791
    %2746 = vmatpush1.msra.mxu0 %v790
    %2747 = vmatprep.subr.mxu0 %v783
    %2748 = vmatpush1.msra.mxu0 %v782
    %2749 = vmatprep.subr.mxu0 %v775
    %2750 = vmatpush1.msra.mxu0 %v774
    %2751 = vmatprep.subr.mxu0 %v767
    %2752 = vmatpush1.msra.mxu0 %v766
    %2753 = vmatprep.subr.mxu0 %v759
    %2754 = vmatpush1.msra.mxu0 %v758
    %2755 = vmatprep.subr.mxu0 %v751
    %2756 = vmatpush1.msra.mxu0 %v750
    %2757 = vmatprep.subr.mxu0 %v743
    %2758 = vmatpush1.msra.mxu0 %v742
    %2759 = vmatprep.subr.mxu0 %v735
    %2760 = vmatpush1.msra.mxu0 %v734
    %2761 = vmatprep.subr.mxu0 %v727
    %2762 = vmatpush1.msra.mxu0 %v726
    %2763 = vmatprep.subr.mxu0 %v719
    %2764 = vmatpush1.msra.mxu0 %v718
    %2765 = vmatprep.subr.mxu0 %v711
    %2766 = vmatpush1.msra.mxu0 %v710
    %2767 = vmatprep.subr.mxu0 %v703
    %2768 = vmatpush1.msra.mxu0 %v702
    %2769 = vmatprep.subr.mxu0 %v695
    %2770 = vmatpush1.msra.mxu0 %v694
    %2771 = vmatprep.subr.mxu0 %v687
    %2772 = vmatpush1.msra.mxu0 %v686
    %2773 = vmatprep.subr.mxu0 %v679
    %2774 = vmatpush1.msra.mxu0 %v678
    %2775 = vmatprep.subr.mxu0 %v927
    %2776 = vmatpush2.msra.mxu0 %v926
    %2777 = vmatprep.subr.mxu0 %v919
    %2778 = vmatpush2.msra.mxu0 %v918
    %2779 = vmatprep.subr.mxu0 %v911
    %2780 = vmatpush2.msra.mxu0 %v910
    %2781 = vmatprep.subr.mxu0 %v903
    %2782 = vmatpush2.msra.mxu0 %v902
    %2783 = vmatprep.subr.mxu0 %v895
    %2784 = vmatpush2.msra.mxu0 %v894
    %2785 = vmatprep.subr.mxu0 %v887
    %2786 = vmatpush2.msra.mxu0 %v886
    %2787 = vmatprep.subr.mxu0 %v879
    %2788 = vmatpush2.msra.mxu0 %v878
    %2789 = vmatprep.subr.mxu0 %v871
    %2790 = vmatpush2.msra.mxu0 %v870
    %2791 = vmatprep.subr.mxu0 %v863
    %2792 = vmatpush2.msra.mxu0 %v862
    %2793 = vmatprep.subr.mxu0 %v855
    %2794 = vmatpush2.msra.mxu0 %v854
    %2795 = vmatprep.subr.mxu0 %v847
    %2796 = vmatpush2.msra.mxu0 %v846
    %2797 = vmatprep.subr.mxu0 %v839
    %2798 = vmatpush2.msra.mxu0 %v838
    %2799 = vmatprep.subr.mxu0 %v831
    %2800 = vmatpush2.msra.mxu0 %v830
    %2801 = vmatprep.subr.mxu0 %v823
    %2802 = vmatpush2.msra.mxu0 %v822
    %2803 = vmatprep.subr.mxu0 %v815
    %2804 = vmatpush2.msra.mxu0 %v814
    %2805 = vmatprep.subr.mxu0 %v807
    %2806 = vmatpush2.msra.mxu0 %v806
    %2807 = vmatprep.mubr.f32.mxu0 %v2740
    %2808 = vmatmul.mubr.f32.gmra.mxu0 %v2739
    %v2809 = vpop.f32.mrf.mxu0
    %v2810 = vadd.f32 0.0, %v2809
    %v2811 = vpop.f32.mrf.mxu0
    %v2812 = vadd.f32 0.0, %v2811
    %2813 = vdwg.mxu0
    %2814 = vmatprep.subr.mxu0 %v801
    %2815 = vmatpush1.msra.mxu0 %v800
    %2816 = vmatprep.subr.mxu0 %v793
    %2817 = vmatpush1.msra.mxu0 %v792
    %2818 = vmatprep.subr.mxu0 %v785
    %2819 = vmatpush1.msra.mxu0 %v784
    %2820 = vmatprep.subr.mxu0 %v777
    %2821 = vmatpush1.msra.mxu0 %v776
    %2822 = vmatprep.subr.mxu0 %v769
    %2823 = vmatpush1.msra.mxu0 %v768
    %2824 = vmatprep.subr.mxu0 %v761
    %2825 = vmatpush1.msra.mxu0 %v760
    %2826 = vmatprep.subr.mxu0 %v753
    %2827 = vmatpush1.msra.mxu0 %v752
    %2828 = vmatprep.subr.mxu0 %v745
    %2829 = vmatpush1.msra.mxu0 %v744
    %2830 = vmatprep.subr.mxu0 %v737
    %2831 = vmatpush1.msra.mxu0 %v736
    %2832 = vmatprep.subr.mxu0 %v729
    %2833 = vmatpush1.msra.mxu0 %v728
    %2834 = vmatprep.subr.mxu0 %v721
    %2835 = vmatpush1.msra.mxu0 %v720
    %2836 = vmatprep.subr.mxu0 %v713
    %2837 = vmatpush1.msra.mxu0 %v712
    %2838 = vmatprep.subr.mxu0 %v705
    %2839 = vmatpush1.msra.mxu0 %v704
    %2840 = vmatprep.subr.mxu0 %v697
    %2841 = vmatpush1.msra.mxu0 %v696
    %2842 = vmatprep.subr.mxu0 %v689
    %2843 = vmatpush1.msra.mxu0 %v688
    %2844 = vmatprep.subr.mxu0 %v681
    %2845 = vmatpush1.msra.mxu0 %v680
    %2846 = vmatprep.subr.mxu0 %v929
    %2847 = vmatpush2.msra.mxu0 %v928
    %2848 = vmatprep.subr.mxu0 %v921
    %2849 = vmatpush2.msra.mxu0 %v920
    %2850 = vmatprep.subr.mxu0 %v913
    %2851 = vmatpush2.msra.mxu0 %v912
    %2852 = vmatprep.subr.mxu0 %v905
    %2853 = vmatpush2.msra.mxu0 %v904
    %2854 = vmatprep.subr.mxu0 %v897
    %2855 = vmatpush2.msra.mxu0 %v896
    %2856 = vmatprep.subr.mxu0 %v889
    %2857 = vmatpush2.msra.mxu0 %v888
    %2858 = vmatprep.subr.mxu0 %v881
    %2859 = vmatpush2.msra.mxu0 %v880
    %2860 = vmatprep.subr.mxu0 %v873
    %2861 = vmatpush2.msra.mxu0 %v872
    %2862 = vmatprep.subr.mxu0 %v865
    %2863 = vmatpush2.msra.mxu0 %v864
    %2864 = vmatprep.subr.mxu0 %v857
    %2865 = vmatpush2.msra.mxu0 %v856
    %2866 = vmatprep.subr.mxu0 %v849
    %2867 = vmatpush2.msra.mxu0 %v848
    %2868 = vmatprep.subr.mxu0 %v841
    %2869 = vmatpush2.msra.mxu0 %v840
    %2870 = vmatprep.subr.mxu0 %v833
    %2871 = vmatpush2.msra.mxu0 %v832
    %2872 = vmatprep.subr.mxu0 %v825
    %2873 = vmatpush2.msra.mxu0 %v824
    %2874 = vmatprep.subr.mxu0 %v817
    %2875 = vmatpush2.msra.mxu0 %v816
    %2876 = vmatprep.subr.mxu0 %v809
    %2877 = vmatpush2.msra.mxu0 %v808
    %2878 = vmatprep.mubr.f32.mxu0 %v2740
    %2879 = vmatmul.mubr.f32.gmra.mxu0 %v2739
    %v2880 = vpop.f32.mrf.mxu0
    %v2881 = vadd.f32 0.0, %v2880
    %v2882 = vpop.f32.mrf.mxu0
    %v2883 = vadd.f32 0.0, %v2882
    %2884 = vdwg.mxu0
    %2885 = vmatprep.subr.mxu0 %v803
    %2886 = vmatpush1.msra.mxu0 %v802
    %2887 = vmatprep.subr.mxu0 %v795
    %2888 = vmatpush1.msra.mxu0 %v794
    %2889 = vmatprep.subr.mxu0 %v787
    %2890 = vmatpush1.msra.mxu0 %v786
    %2891 = vmatprep.subr.mxu0 %v779
    %2892 = vmatpush1.msra.mxu0 %v778
    %2893 = vmatprep.subr.mxu0 %v771
    %2894 = vmatpush1.msra.mxu0 %v770
    %2895 = vmatprep.subr.mxu0 %v763
    %2896 = vmatpush1.msra.mxu0 %v762
    %2897 = vmatprep.subr.mxu0 %v755
    %2898 = vmatpush1.msra.mxu0 %v754
    %2899 = vmatprep.subr.mxu0 %v747
    %2900 = vmatpush1.msra.mxu0 %v746
    %2901 = vmatprep.subr.mxu0 %v739
    %2902 = vmatpush1.msra.mxu0 %v738
    %2903 = vmatprep.subr.mxu0 %v731
    %2904 = vmatpush1.msra.mxu0 %v730
    %2905 = vmatprep.subr.mxu0 %v723
    %2906 = vmatpush1.msra.mxu0 %v722
    %2907 = vmatprep.subr.mxu0 %v715
    %2908 = vmatpush1.msra.mxu0 %v714
    %2909 = vmatprep.subr.mxu0 %v707
    %2910 = vmatpush1.msra.mxu0 %v706
    %2911 = vmatprep.subr.mxu0 %v699
    %2912 = vmatpush1.msra.mxu0 %v698
    %2913 = vmatprep.subr.mxu0 %v691
    %2914 = vmatpush1.msra.mxu0 %v690
    %2915 = vmatprep.subr.mxu0 %v683
    %2916 = vmatpush1.msra.mxu0 %v682
    %2917 = vmatprep.subr.mxu0 %v931
    %2918 = vmatpush2.msra.mxu0 %v930
    %2919 = vmatprep.subr.mxu0 %v923
    %2920 = vmatpush2.msra.mxu0 %v922
    %2921 = vmatprep.subr.mxu0 %v915
    %2922 = vmatpush2.msra.mxu0 %v914
    %2923 = vmatprep.subr.mxu0 %v907
    %2924 = vmatpush2.msra.mxu0 %v906
    %2925 = vmatprep.subr.mxu0 %v899
    %2926 = vmatpush2.msra.mxu0 %v898
    %2927 = vmatprep.subr.mxu0 %v891
    %2928 = vmatpush2.msra.mxu0 %v890
    %2929 = vmatprep.subr.mxu0 %v883
    %2930 = vmatpush2.msra.mxu0 %v882
    %2931 = vmatprep.subr.mxu0 %v875
    %2932 = vmatpush2.msra.mxu0 %v874
    %2933 = vmatprep.subr.mxu0 %v867
    %2934 = vmatpush2.msra.mxu0 %v866
    %2935 = vmatprep.subr.mxu0 %v859
    %2936 = vmatpush2.msra.mxu0 %v858
    %2937 = vmatprep.subr.mxu0 %v851
    %2938 = vmatpush2.msra.mxu0 %v850
    %2939 = vmatprep.subr.mxu0 %v843
    %2940 = vmatpush2.msra.mxu0 %v842
    %2941 = vmatprep.subr.mxu0 %v835
    %2942 = vmatpush2.msra.mxu0 %v834
    %2943 = vmatprep.subr.mxu0 %v827
    %2944 = vmatpush2.msra.mxu0 %v826
    %2945 = vmatprep.subr.mxu0 %v819
    %2946 = vmatpush2.msra.mxu0 %v818
    %2947 = vmatprep.subr.mxu0 %v811
    %2948 = vmatpush2.msra.mxu0 %v810
    %2949 = vmatprep.mubr.f32.mxu0 %v2740
    %2950 = vmatmul.mubr.f32.gmra.mxu0 %v2739
    %v2951 = vpop.f32.mrf.mxu0
    %v2952 = vadd.f32 0.0, %v2951
    %v2953 = vpop.f32.mrf.mxu0
    %v2954 = vadd.f32 0.0, %v2953
    %2955 = vdwg.mxu0
    %2956 = vmatprep.subr.mxu0 %v805
    %2957 = vmatpush1.msra.mxu0 %v804
    %2958 = vmatprep.subr.mxu0 %v797
    %2959 = vmatpush1.msra.mxu0 %v796
    %2960 = vmatprep.subr.mxu0 %v789
    %2961 = vmatpush1.msra.mxu0 %v788
    %2962 = vmatprep.subr.mxu0 %v781
    %2963 = vmatpush1.msra.mxu0 %v780
    %2964 = vmatprep.subr.mxu0 %v773
    %2965 = vmatpush1.msra.mxu0 %v772
    %2966 = vmatprep.subr.mxu0 %v765
    %2967 = vmatpush1.msra.mxu0 %v764
    %2968 = vmatprep.subr.mxu0 %v757
    %2969 = vmatpush1.msra.mxu0 %v756
    %2970 = vmatprep.subr.mxu0 %v749
    %2971 = vmatpush1.msra.mxu0 %v748
    %2972 = vmatprep.subr.mxu0 %v741
    %2973 = vmatpush1.msra.mxu0 %v740
    %2974 = vmatprep.subr.mxu0 %v733
    %2975 = vmatpush1.msra.mxu0 %v732
    %2976 = vmatprep.subr.mxu0 %v725
    %2977 = vmatpush1.msra.mxu0 %v724
    %2978 = vmatprep.subr.mxu0 %v717
    %2979 = vmatpush1.msra.mxu0 %v716
    %2980 = vmatprep.subr.mxu0 %v709
    %2981 = vmatpush1.msra.mxu0 %v708
    %2982 = vmatprep.subr.mxu0 %v701
    %2983 = vmatpush1.msra.mxu0 %v700
    %2984 = vmatprep.subr.mxu0 %v693
    %2985 = vmatpush1.msra.mxu0 %v692
    %2986 = vmatprep.subr.mxu0 %v685
    %2987 = vmatpush1.msra.mxu0 %v684
    %2988 = vmatprep.subr.mxu0 %v933
    %2989 = vmatpush2.msra.mxu0 %v932
    %2990 = vmatprep.subr.mxu0 %v925
    %2991 = vmatpush2.msra.mxu0 %v924
    %2992 = vmatprep.subr.mxu0 %v917
    %2993 = vmatpush2.msra.mxu0 %v916
    %2994 = vmatprep.subr.mxu0 %v909
    %2995 = vmatpush2.msra.mxu0 %v908
    %2996 = vmatprep.subr.mxu0 %v901
    %2997 = vmatpush2.msra.mxu0 %v900
    %2998 = vmatprep.subr.mxu0 %v893
    %2999 = vmatpush2.msra.mxu0 %v892
    %3000 = vmatprep.subr.mxu0 %v885
    %3001 = vmatpush2.msra.mxu0 %v884
    %3002 = vmatprep.subr.mxu0 %v877
    %3003 = vmatpush2.msra.mxu0 %v876
    %3004 = vmatprep.subr.mxu0 %v869
    %3005 = vmatpush2.msra.mxu0 %v868
    %3006 = vmatprep.subr.mxu0 %v861
    %3007 = vmatpush2.msra.mxu0 %v860
    %3008 = vmatprep.subr.mxu0 %v853
    %3009 = vmatpush2.msra.mxu0 %v852
    %3010 = vmatprep.subr.mxu0 %v845
    %3011 = vmatpush2.msra.mxu0 %v844
    %3012 = vmatprep.subr.mxu0 %v837
    %3013 = vmatpush2.msra.mxu0 %v836
    %3014 = vmatprep.subr.mxu0 %v829
    %3015 = vmatpush2.msra.mxu0 %v828
    %3016 = vmatprep.subr.mxu0 %v821
    %3017 = vmatpush2.msra.mxu0 %v820
    %3018 = vmatprep.subr.mxu0 %v813
    %3019 = vmatpush2.msra.mxu0 %v812
    %3020 = vmatprep.mubr.f32.mxu0 %v2740
    %3021 = vmatmul.mubr.f32.gmra.mxu0 %v2739
    %v3022 = vpop.f32.mrf.mxu0
    %v3023 = vadd.f32 0.0, %v3022
    %v3024 = vpop.f32.mrf.mxu0
    %v3025 = vadd.f32 0.0, %v3024
    %3026 = vdwg.mxu0
    %v3035 = vrot.slane %v2810, 3
    %v3036 = vrot.slane %v2812, 3
    %v3037 = vrot.slane %v2881, 3
    %v3038 = vrot.slane %v2883, 3
    %v3039 = vrot.slane %v2952, 3
    %v3040 = vrot.slane %v2954, 3
    %v3041 = vrot.slane %v3023, 3
    %v3042 = vrot.slane %v3025, 3
    %v3051 = vadd.f32 %v461, %v3035
    %v3052 = vadd.f32 %v463, %v3036
    %v3053 = vadd.f32 %v532, %v3037
    %v3054 = vadd.f32 %v534, %v3038
    %v3055 = vadd.f32 %v603, %v3039
    %v3056 = vadd.f32 %v605, %v3040
    %v3057 = vadd.f32 %v674, %v3041
    %v3058 = vadd.f32 %v676, %v3042
    %v3059 = vmul.f32 %v3051, 0.5
    %v3060 = vmul.f32 %v3052, 0.5
    %v3061 = vtanh.pop %v3059
    %v3062 = vtanh.pop %v3060
    %v3063 = vadd.f32 %v3061, 1.0
    %v3064 = vadd.f32 %v3062, 1.0
    %v3065 = vmul.f32 %v3063, 0.5
    %v3066 = vmul.f32 %v3064, 0.5
    %v3067 = vmul.f32 %v3053, 0.5
    %v3068 = vmul.f32 %v3054, 0.5
    %v3069 = vtanh.pop %v3067
    %v3070 = vtanh.pop %v3068
    %v3071 = vadd.f32 %v3069, 1.0
    %v3072 = vadd.f32 %v3070, 1.0
    %v3073 = vmul.f32 %v3071, 0.5
    %v3074 = vmul.f32 %v3072, 0.5
    %v3075 = vtanh.pop %v3055
    %v3076 = vtanh.pop %v3056
    %v3077 = vmul.f32 %v3057, 0.5
    %v3078 = vmul.f32 %v3058, 0.5
    %v3079 = vtanh.pop %v3077
    %v3080 = vtanh.pop %v3078
    %v3081 = vadd.f32 %v3079, 1.0
    %v3082 = vadd.f32 %v3080, 1.0
    %v3083 = vmul.f32 %v3081, 0.5
    %v3084 = vmul.f32 %v3082, 0.5
    %v3087 = vrot.slane %v2731, 7
    %v3088 = vrot.slane %v2732, 7
    %v3091 = vmul.f32 %v3073, %v3087
    %v3092 = vmul.f32 %v3074, %v3088
    %v3093 = vmul.f32 %v3065, %v3075
    %v3094 = vmul.f32 %v3066, %v3076
    %v3095 = vadd.f32 %v3091, %v3093
    %v3096 = vadd.f32 %v3092, %v3094
    %v3097 = vtanh.pop %v3095
    %v3098 = vtanh.pop %v3096
    %v3099 = vmul.f32 %v3083, %v3097
    %v3100 = vmul.f32 %v3084, %v3098
    %v3103 = vrot.slane %v3099, 5
    %v3104 = vrot.slane %v3100, 5
    %3107 = vmatprep.subr.mxu0 %v799
    %3108 = vmatpush1.msra.mxu0 %v798
    %3109 = vmatprep.subr.mxu0 %v791
    %3110 = vmatpush1.msra.mxu0 %v790
    %3111 = vmatprep.subr.mxu0 %v783
    %3112 = vmatpush1.msra.mxu0 %v782
    %3113 = vmatprep.subr.mxu0 %v775
    %3114 = vmatpush1.msra.mxu0 %v774
    %3115 = vmatprep.subr.mxu0 %v767
    %3116 = vmatpush1.msra.mxu0 %v766
    %3117 = vmatprep.subr.mxu0 %v759
    %3118 = vmatpush1.msra.mxu0 %v758
    %3119 = vmatprep.subr.mxu0 %v751
    %3120 = vmatpush1.msra.mxu0 %v750
    %3121 = vmatprep.subr.mxu0 %v743
    %3122 = vmatpush1.msra.mxu0 %v742
    %3123 = vmatprep.subr.mxu0 %v735
    %3124 = vmatpush1.msra.mxu0 %v734
    %3125 = vmatprep.subr.mxu0 %v727
    %3126 = vmatpush1.msra.mxu0 %v726
    %3127 = vmatprep.subr.mxu0 %v719
    %3128 = vmatpush1.msra.mxu0 %v718
    %3129 = vmatprep.subr.mxu0 %v711
    %3130 = vmatpush1.msra.mxu0 %v710
    %3131 = vmatprep.subr.mxu0 %v703
    %3132 = vmatpush1.msra.mxu0 %v702
    %3133 = vmatprep.subr.mxu0 %v695
    %3134 = vmatpush1.msra.mxu0 %v694
    %3135 = vmatprep.subr.mxu0 %v687
    %3136 = vmatpush1.msra.mxu0 %v686
    %3137 = vmatprep.subr.mxu0 %v679
    %3138 = vmatpush1.msra.mxu0 %v678
    %3139 = vmatprep.subr.mxu0 %v927
    %3140 = vmatpush2.msra.mxu0 %v926
    %3141 = vmatprep.subr.mxu0 %v919
    %3142 = vmatpush2.msra.mxu0 %v918
    %3143 = vmatprep.subr.mxu0 %v911
    %3144 = vmatpush2.msra.mxu0 %v910
    %3145 = vmatprep.subr.mxu0 %v903
    %3146 = vmatpush2.msra.mxu0 %v902
    %3147 = vmatprep.subr.mxu0 %v895
    %3148 = vmatpush2.msra.mxu0 %v894
    %3149 = vmatprep.subr.mxu0 %v887
    %3150 = vmatpush2.msra.mxu0 %v886
    %3151 = vmatprep.subr.mxu0 %v879
    %3152 = vmatpush2.msra.mxu0 %v878
    %3153 = vmatprep.subr.mxu0 %v871
    %3154 = vmatpush2.msra.mxu0 %v870
    %3155 = vmatprep.subr.mxu0 %v863
    %3156 = vmatpush2.msra.mxu0 %v862
    %3157 = vmatprep.subr.mxu0 %v855
    %3158 = vmatpush2.msra.mxu0 %v854
    %3159 = vmatprep.subr.mxu0 %v847
    %3160 = vmatpush2.msra.mxu0 %v846
    %3161 = vmatprep.subr.mxu0 %v839
    %3162 = vmatpush2.msra.mxu0 %v838
    %3163 = vmatprep.subr.mxu0 %v831
    %3164 = vmatpush2.msra.mxu0 %v830
    %3165 = vmatprep.subr.mxu0 %v823
    %3166 = vmatpush2.msra.mxu0 %v822
    %3167 = vmatprep.subr.mxu0 %v815
    %3168 = vmatpush2.msra.mxu0 %v814
    %3169 = vmatprep.subr.mxu0 %v807
    %3170 = vmatpush2.msra.mxu0 %v806
    %3171 = vmatprep.mubr.f32.mxu0 %v3104
    %3172 = vmatmul.mubr.f32.gmra.mxu0 %v3103
    %v3173 = vpop.f32.mrf.mxu0
    %v3174 = vadd.f32 0.0, %v3173
    %v3175 = vpop.f32.mrf.mxu0
    %v3176 = vadd.f32 0.0, %v3175
    %3177 = vdwg.mxu0
    %3178 = vmatprep.subr.mxu0 %v801
    %3179 = vmatpush1.msra.mxu0 %v800
    %3180 = vmatprep.subr.mxu0 %v793
    %3181 = vmatpush1.msra.mxu0 %v792
    %3182 = vmatprep.subr.mxu0 %v785
    %3183 = vmatpush1.msra.mxu0 %v784
    %3184 = vmatprep.subr.mxu0 %v777
    %3185 = vmatpush1.msra.mxu0 %v776
    %3186 = vmatprep.subr.mxu0 %v769
    %3187 = vmatpush1.msra.mxu0 %v768
    %3188 = vmatprep.subr.mxu0 %v761
    %3189 = vmatpush1.msra.mxu0 %v760
    %3190 = vmatprep.subr.mxu0 %v753
    %3191 = vmatpush1.msra.mxu0 %v752
    %3192 = vmatprep.subr.mxu0 %v745
    %3193 = vmatpush1.msra.mxu0 %v744
    %3194 = vmatprep.subr.mxu0 %v737
    %3195 = vmatpush1.msra.mxu0 %v736
    %3196 = vmatprep.subr.mxu0 %v729
    %3197 = vmatpush1.msra.mxu0 %v728
    %3198 = vmatprep.subr.mxu0 %v721
    %3199 = vmatpush1.msra.mxu0 %v720
    %3200 = vmatprep.subr.mxu0 %v713
    %3201 = vmatpush1.msra.mxu0 %v712
    %3202 = vmatprep.subr.mxu0 %v705
    %3203 = vmatpush1.msra.mxu0 %v704
    %3204 = vmatprep.subr.mxu0 %v697
    %3205 = vmatpush1.msra.mxu0 %v696
    %3206 = vmatprep.subr.mxu0 %v689
    %3207 = vmatpush1.msra.mxu0 %v688
    %3208 = vmatprep.subr.mxu0 %v681
    %3209 = vmatpush1.msra.mxu0 %v680
    %3210 = vmatprep.subr.mxu0 %v929
    %3211 = vmatpush2.msra.mxu0 %v928
    %3212 = vmatprep.subr.mxu0 %v921
    %3213 = vmatpush2.msra.mxu0 %v920
    %3214 = vmatprep.subr.mxu0 %v913
    %3215 = vmatpush2.msra.mxu0 %v912
    %3216 = vmatprep.subr.mxu0 %v905
    %3217 = vmatpush2.msra.mxu0 %v904
    %3218 = vmatprep.subr.mxu0 %v897
    %3219 = vmatpush2.msra.mxu0 %v896
    %3220 = vmatprep.subr.mxu0 %v889
    %3221 = vmatpush2.msra.mxu0 %v888
    %3222 = vmatprep.subr.mxu0 %v881
    %3223 = vmatpush2.msra.mxu0 %v880
    %3224 = vmatprep.subr.mxu0 %v873
    %3225 = vmatpush2.msra.mxu0 %v872
    %3226 = vmatprep.subr.mxu0 %v865
    %3227 = vmatpush2.msra.mxu0 %v864
    %3228 = vmatprep.subr.mxu0 %v857
    %3229 = vmatpush2.msra.mxu0 %v856
    %3230 = vmatprep.subr.mxu0 %v849
    %3231 = vmatpush2.msra.mxu0 %v848
    %3232 = vmatprep.subr.mxu0 %v841
    %3233 = vmatpush2.msra.mxu0 %v840
    %3234 = vmatprep.subr.mxu0 %v833
    %3235 = vmatpush2.msra.mxu0 %v832
    %3236 = vmatprep.subr.mxu0 %v825
    %3237 = vmatpush2.msra.mxu0 %v824
    %3238 = vmatprep.subr.mxu0 %v817
    %3239 = vmatpush2.msra.mxu0 %v816
    %3240 = vmatprep.subr.mxu0 %v809
    %3241 = vmatpush2.msra.mxu0 %v808
    %3242 = vmatprep.mubr.f32.mxu0 %v3104
    %3243 = vmatmul.mubr.f32.gmra.mxu0 %v3103
    %v3244 = vpop.f32.mrf.mxu0
    %v3245 = vadd.f32 0.0, %v3244
    %v3246 = vpop.f32.mrf.mxu0
    %v3247 = vadd.f32 0.0, %v3246
    %3248 = vdwg.mxu0
    %3249 = vmatprep.subr.mxu0 %v803
    %3250 = vmatpush1.msra.mxu0 %v802
    %3251 = vmatprep.subr.mxu0 %v795
    %3252 = vmatpush1.msra.mxu0 %v794
    %3253 = vmatprep.subr.mxu0 %v787
    %3254 = vmatpush1.msra.mxu0 %v786
    %3255 = vmatprep.subr.mxu0 %v779
    %3256 = vmatpush1.msra.mxu0 %v778
    %3257 = vmatprep.subr.mxu0 %v771
    %3258 = vmatpush1.msra.mxu0 %v770
    %3259 = vmatprep.subr.mxu0 %v763
    %3260 = vmatpush1.msra.mxu0 %v762
    %3261 = vmatprep.subr.mxu0 %v755
    %3262 = vmatpush1.msra.mxu0 %v754
    %3263 = vmatprep.subr.mxu0 %v747
    %3264 = vmatpush1.msra.mxu0 %v746
    %3265 = vmatprep.subr.mxu0 %v739
    %3266 = vmatpush1.msra.mxu0 %v738
    %3267 = vmatprep.subr.mxu0 %v731
    %3268 = vmatpush1.msra.mxu0 %v730
    %3269 = vmatprep.subr.mxu0 %v723
    %3270 = vmatpush1.msra.mxu0 %v722
    %3271 = vmatprep.subr.mxu0 %v715
    %3272 = vmatpush1.msra.mxu0 %v714
    %3273 = vmatprep.subr.mxu0 %v707
    %3274 = vmatpush1.msra.mxu0 %v706
    %3275 = vmatprep.subr.mxu0 %v699
    %3276 = vmatpush1.msra.mxu0 %v698
    %3277 = vmatprep.subr.mxu0 %v691
    %3278 = vmatpush1.msra.mxu0 %v690
    %3279 = vmatprep.subr.mxu0 %v683
    %3280 = vmatpush1.msra.mxu0 %v682
    %3281 = vmatprep.subr.mxu0 %v931
    %3282 = vmatpush2.msra.mxu0 %v930
    %3283 = vmatprep.subr.mxu0 %v923
    %3284 = vmatpush2.msra.mxu0 %v922
    %3285 = vmatprep.subr.mxu0 %v915
    %3286 = vmatpush2.msra.mxu0 %v914
    %3287 = vmatprep.subr.mxu0 %v907
    %3288 = vmatpush2.msra.mxu0 %v906
    %3289 = vmatprep.subr.mxu0 %v899
    %3290 = vmatpush2.msra.mxu0 %v898
    %3291 = vmatprep.subr.mxu0 %v891
    %3292 = vmatpush2.msra.mxu0 %v890
    %3293 = vmatprep.subr.mxu0 %v883
    %3294 = vmatpush2.msra.mxu0 %v882
    %3295 = vmatprep.subr.mxu0 %v875
    %3296 = vmatpush2.msra.mxu0 %v874
    %3297 = vmatprep.subr.mxu0 %v867
    %3298 = vmatpush2.msra.mxu0 %v866
    %3299 = vmatprep.subr.mxu0 %v859
    %3300 = vmatpush2.msra.mxu0 %v858
    %3301 = vmatprep.subr.mxu0 %v851
    %3302 = vmatpush2.msra.mxu0 %v850
    %3303 = vmatprep.subr.mxu0 %v843
    %3304 = vmatpush2.msra.mxu0 %v842
    %3305 = vmatprep.subr.mxu0 %v835
    %3306 = vmatpush2.msra.mxu0 %v834
    %3307 = vmatprep.subr.mxu0 %v827
    %3308 = vmatpush2.msra.mxu0 %v826
    %3309 = vmatprep.subr.mxu0 %v819
    %3310 = vmatpush2.msra.mxu0 %v818
    %3311 = vmatprep.subr.mxu0 %v811
    %3312 = vmatpush2.msra.mxu0 %v810
    %3313 = vmatprep.mubr.f32.mxu0 %v3104
    %3314 = vmatmul.mubr.f32.gmra.mxu0 %v3103
    %v3315 = vpop.f32.mrf.mxu0
    %v3316 = vadd.f32 0.0, %v3315
    %v3317 = vpop.f32.mrf.mxu0
    %v3318 = vadd.f32 0.0, %v3317
    %3319 = vdwg.mxu0
    %3320 = vmatprep.subr.mxu0 %v805
    %3321 = vmatpush1.msra.mxu0 %v804
    %3322 = vmatprep.subr.mxu0 %v797
    %3323 = vmatpush1.msra.mxu0 %v796
    %3324 = vmatprep.subr.mxu0 %v789
    %3325 = vmatpush1.msra.mxu0 %v788
    %3326 = vmatprep.subr.mxu0 %v781
    %3327 = vmatpush1.msra.mxu0 %v780
    %3328 = vmatprep.subr.mxu0 %v773
    %3329 = vmatpush1.msra.mxu0 %v772
    %3330 = vmatprep.subr.mxu0 %v765
    %3331 = vmatpush1.msra.mxu0 %v764
    %3332 = vmatprep.subr.mxu0 %v757
    %3333 = vmatpush1.msra.mxu0 %v756
    %3334 = vmatprep.subr.mxu0 %v749
    %3335 = vmatpush1.msra.mxu0 %v748
    %3336 = vmatprep.subr.mxu0 %v741
    %3337 = vmatpush1.msra.mxu0 %v740
    %3338 = vmatprep.subr.mxu0 %v733
    %3339 = vmatpush1.msra.mxu0 %v732
    %3340 = vmatprep.subr.mxu0 %v725
    %3341 = vmatpush1.msra.mxu0 %v724
    %3342 = vmatprep.subr.mxu0 %v717
    %3343 = vmatpush1.msra.mxu0 %v716
    %3344 = vmatprep.subr.mxu0 %v709
    %3345 = vmatpush1.msra.mxu0 %v708
    %3346 = vmatprep.subr.mxu0 %v701
    %3347 = vmatpush1.msra.mxu0 %v700
    %3348 = vmatprep.subr.mxu0 %v693
    %3349 = vmatpush1.msra.mxu0 %v692
    %3350 = vmatprep.subr.mxu0 %v685
    %3351 = vmatpush1.msra.mxu0 %v684
    %3352 = vmatprep.subr.mxu0 %v933
    %3353 = vmatpush2.msra.mxu0 %v932
    %3354 = vmatprep.subr.mxu0 %v925
    %3355 = vmatpush2.msra.mxu0 %v924
    %3356 = vmatprep.subr.mxu0 %v917
    %3357 = vmatpush2.msra.mxu0 %v916
    %3358 = vmatprep.subr.mxu0 %v909
    %3359 = vmatpush2.msra.mxu0 %v908
    %3360 = vmatprep.subr.mxu0 %v901
    %3361 = vmatpush2.msra.mxu0 %v900
    %3362 = vmatprep.subr.mxu0 %v893
    %3363 = vmatpush2.msra.mxu0 %v892
    %3364 = vmatprep.subr.mxu0 %v885
    %3365 = vmatpush2.msra.mxu0 %v884
    %3366 = vmatprep.subr.mxu0 %v877
    %3367 = vmatpush2.msra.mxu0 %v876
    %3368 = vmatprep.subr.mxu0 %v869
    %3369 = vmatpush2.msra.mxu0 %v868
    %3370 = vmatprep.subr.mxu0 %v861
    %3371 = vmatpush2.msra.mxu0 %v860
    %3372 = vmatprep.subr.mxu0 %v853
    %3373 = vmatpush2.msra.mxu0 %v852
    %3374 = vmatprep.subr.mxu0 %v845
    %3375 = vmatpush2.msra.mxu0 %v844
    %3376 = vmatprep.subr.mxu0 %v837
    %3377 = vmatpush2.msra.mxu0 %v836
    %3378 = vmatprep.subr.mxu0 %v829
    %3379 = vmatpush2.msra.mxu0 %v828
    %3380 = vmatprep.subr.mxu0 %v821
    %3381 = vmatpush2.msra.mxu0 %v820
    %3382 = vmatprep.subr.mxu0 %v813
    %3383 = vmatpush2.msra.mxu0 %v812
    %3384 = vmatprep.mubr.f32.mxu0 %v3104
    %3385 = vmatmul.mubr.f32.gmra.mxu0 %v3103
    %v3386 = vpop.f32.mrf.mxu0
    %v3387 = vadd.f32 0.0, %v3386
    %v3388 = vpop.f32.mrf.mxu0
    %v3389 = vadd.f32 0.0, %v3388
    %3390 = vdwg.mxu0
    %v3399 = vrot.slane %v3174, 2
    %v3400 = vrot.slane %v3176, 2
    %v3401 = vrot.slane %v3245, 2
    %v3402 = vrot.slane %v3247, 2
    %v3403 = vrot.slane %v3316, 2
    %v3404 = vrot.slane %v3318, 2
    %v3405 = vrot.slane %v3387, 2
    %v3406 = vrot.slane %v3389, 2
    %v3415 = vadd.f32 %v461, %v3399
    %v3416 = vadd.f32 %v463, %v3400
    %v3417 = vadd.f32 %v532, %v3401
    %v3418 = vadd.f32 %v534, %v3402
    %v3419 = vadd.f32 %v603, %v3403
    %v3420 = vadd.f32 %v605, %v3404
    %v3421 = vadd.f32 %v674, %v3405
    %v3422 = vadd.f32 %v676, %v3406
    %v3423 = vmul.f32 %v3415, 0.5
    %v3424 = vmul.f32 %v3416, 0.5
    %v3425 = vtanh.pop %v3423
    %v3426 = vtanh.pop %v3424
    %v3427 = vadd.f32 %v3425, 1.0
    %v3428 = vadd.f32 %v3426, 1.0
    %v3429 = vmul.f32 %v3427, 0.5
    %v3430 = vmul.f32 %v3428, 0.5
    %v3431 = vmul.f32 %v3417, 0.5
    %v3432 = vmul.f32 %v3418, 0.5
    %v3433 = vtanh.pop %v3431
    %v3434 = vtanh.pop %v3432
    %v3435 = vadd.f32 %v3433, 1.0
    %v3436 = vadd.f32 %v3434, 1.0
    %v3437 = vmul.f32 %v3435, 0.5
    %v3438 = vmul.f32 %v3436, 0.5
    %v3439 = vtanh.pop %v3419
    %v3440 = vtanh.pop %v3420
    %v3441 = vmul.f32 %v3421, 0.5
    %v3442 = vmul.f32 %v3422, 0.5
    %v3443 = vtanh.pop %v3441
    %v3444 = vtanh.pop %v3442
    %v3445 = vadd.f32 %v3443, 1.0
    %v3446 = vadd.f32 %v3444, 1.0
    %v3447 = vmul.f32 %v3445, 0.5
    %v3448 = vmul.f32 %v3446, 0.5
    %v3451 = vrot.slane %v3095, 7
    %v3452 = vrot.slane %v3096, 7
    %v3455 = vmul.f32 %v3437, %v3451
    %v3456 = vmul.f32 %v3438, %v3452
    %v3457 = vmul.f32 %v3429, %v3439
    %v3458 = vmul.f32 %v3430, %v3440
    %v3459 = vadd.f32 %v3455, %v3457
    %v3460 = vadd.f32 %v3456, %v3458
    %v3461 = vtanh.pop %v3459
    %v3462 = vtanh.pop %v3460
    %v3463 = vmul.f32 %v3447, %v3461
    %v3464 = vmul.f32 %v3448, %v3462
    %v3467 = vrot.slane %v3463, 6
    %v3468 = vrot.slane %v3464, 6
    %3471 = vmatprep.subr.mxu0 %v799
    %3472 = vmatpush1.msra.mxu0 %v798
    %3473 = vmatprep.subr.mxu0 %v791
    %3474 = vmatpush1.msra.mxu0 %v790
    %3475 = vmatprep.subr.mxu0 %v783
    %3476 = vmatpush1.msra.mxu0 %v782
    %3477 = vmatprep.subr.mxu0 %v775
    %3478 = vmatpush1.msra.mxu0 %v774
    %3479 = vmatprep.subr.mxu0 %v767
    %3480 = vmatpush1.msra.mxu0 %v766
    %3481 = vmatprep.subr.mxu0 %v759
    %3482 = vmatpush1.msra.mxu0 %v758
    %3483 = vmatprep.subr.mxu0 %v751
    %3484 = vmatpush1.msra.mxu0 %v750
    %3485 = vmatprep.subr.mxu0 %v743
    %3486 = vmatpush1.msra.mxu0 %v742
    %3487 = vmatprep.subr.mxu0 %v735
    %3488 = vmatpush1.msra.mxu0 %v734
    %3489 = vmatprep.subr.mxu0 %v727
    %3490 = vmatpush1.msra.mxu0 %v726
    %3491 = vmatprep.subr.mxu0 %v719
    %3492 = vmatpush1.msra.mxu0 %v718
    %3493 = vmatprep.subr.mxu0 %v711
    %3494 = vmatpush1.msra.mxu0 %v710
    %3495 = vmatprep.subr.mxu0 %v703
    %3496 = vmatpush1.msra.mxu0 %v702
    %3497 = vmatprep.subr.mxu0 %v695
    %3498 = vmatpush1.msra.mxu0 %v694
    %3499 = vmatprep.subr.mxu0 %v687
    %3500 = vmatpush1.msra.mxu0 %v686
    %3501 = vmatprep.subr.mxu0 %v679
    %3502 = vmatpush1.msra.mxu0 %v678
    %3503 = vmatprep.subr.mxu0 %v927
    %3504 = vmatpush2.msra.mxu0 %v926
    %3505 = vmatprep.subr.mxu0 %v919
    %3506 = vmatpush2.msra.mxu0 %v918
    %3507 = vmatprep.subr.mxu0 %v911
    %3508 = vmatpush2.msra.mxu0 %v910
    %3509 = vmatprep.subr.mxu0 %v903
    %3510 = vmatpush2.msra.mxu0 %v902
    %3511 = vmatprep.subr.mxu0 %v895
    %3512 = vmatpush2.msra.mxu0 %v894
    %3513 = vmatprep.subr.mxu0 %v887
    %3514 = vmatpush2.msra.mxu0 %v886
    %3515 = vmatprep.subr.mxu0 %v879
    %3516 = vmatpush2.msra.mxu0 %v878
    %3517 = vmatprep.subr.mxu0 %v871
    %3518 = vmatpush2.msra.mxu0 %v870
    %3519 = vmatprep.subr.mxu0 %v863
    %3520 = vmatpush2.msra.mxu0 %v862
    %3521 = vmatprep.subr.mxu0 %v855
    %3522 = vmatpush2.msra.mxu0 %v854
    %3523 = vmatprep.subr.mxu0 %v847
    %3524 = vmatpush2.msra.mxu0 %v846
    %3525 = vmatprep.subr.mxu0 %v839
    %3526 = vmatpush2.msra.mxu0 %v838
    %3527 = vmatprep.subr.mxu0 %v831
    %3528 = vmatpush2.msra.mxu0 %v830
    %3529 = vmatprep.subr.mxu0 %v823
    %3530 = vmatpush2.msra.mxu0 %v822
    %3531 = vmatprep.subr.mxu0 %v815
    %3532 = vmatpush2.msra.mxu0 %v814
    %3533 = vmatprep.subr.mxu0 %v807
    %3534 = vmatpush2.msra.mxu0 %v806
    %3535 = vmatprep.mubr.f32.mxu0 %v3468
    %3536 = vmatmul.mubr.f32.gmra.mxu0 %v3467
    %v3537 = vpop.f32.mrf.mxu0
    %v3538 = vadd.f32 0.0, %v3537
    %v3539 = vpop.f32.mrf.mxu0
    %v3540 = vadd.f32 0.0, %v3539
    %3541 = vdwg.mxu0
    %3542 = vmatprep.subr.mxu0 %v801
    %3543 = vmatpush1.msra.mxu0 %v800
    %3544 = vmatprep.subr.mxu0 %v793
    %3545 = vmatpush1.msra.mxu0 %v792
    %3546 = vmatprep.subr.mxu0 %v785
    %3547 = vmatpush1.msra.mxu0 %v784
    %3548 = vmatprep.subr.mxu0 %v777
    %3549 = vmatpush1.msra.mxu0 %v776
    %3550 = vmatprep.subr.mxu0 %v769
    %3551 = vmatpush1.msra.mxu0 %v768
    %3552 = vmatprep.subr.mxu0 %v761
    %3553 = vmatpush1.msra.mxu0 %v760
    %3554 = vmatprep.subr.mxu0 %v753
    %3555 = vmatpush1.msra.mxu0 %v752
    %3556 = vmatprep.subr.mxu0 %v745
    %3557 = vmatpush1.msra.mxu0 %v744
    %3558 = vmatprep.subr.mxu0 %v737
    %3559 = vmatpush1.msra.mxu0 %v736
    %3560 = vmatprep.subr.mxu0 %v729
    %3561 = vmatpush1.msra.mxu0 %v728
    %3562 = vmatprep.subr.mxu0 %v721
    %3563 = vmatpush1.msra.mxu0 %v720
    %3564 = vmatprep.subr.mxu0 %v713
    %3565 = vmatpush1.msra.mxu0 %v712
    %3566 = vmatprep.subr.mxu0 %v705
    %3567 = vmatpush1.msra.mxu0 %v704
    %3568 = vmatprep.subr.mxu0 %v697
    %3569 = vmatpush1.msra.mxu0 %v696
    %3570 = vmatprep.subr.mxu0 %v689
    %3571 = vmatpush1.msra.mxu0 %v688
    %3572 = vmatprep.subr.mxu0 %v681
    %3573 = vmatpush1.msra.mxu0 %v680
    %3574 = vmatprep.subr.mxu0 %v929
    %3575 = vmatpush2.msra.mxu0 %v928
    %3576 = vmatprep.subr.mxu0 %v921
    %3577 = vmatpush2.msra.mxu0 %v920
    %3578 = vmatprep.subr.mxu0 %v913
    %3579 = vmatpush2.msra.mxu0 %v912
    %3580 = vmatprep.subr.mxu0 %v905
    %3581 = vmatpush2.msra.mxu0 %v904
    %3582 = vmatprep.subr.mxu0 %v897
    %3583 = vmatpush2.msra.mxu0 %v896
    %3584 = vmatprep.subr.mxu0 %v889
    %3585 = vmatpush2.msra.mxu0 %v888
    %3586 = vmatprep.subr.mxu0 %v881
    %3587 = vmatpush2.msra.mxu0 %v880
    %3588 = vmatprep.subr.mxu0 %v873
    %3589 = vmatpush2.msra.mxu0 %v872
    %3590 = vmatprep.subr.mxu0 %v865
    %3591 = vmatpush2.msra.mxu0 %v864
    %3592 = vmatprep.subr.mxu0 %v857
    %3593 = vmatpush2.msra.mxu0 %v856
    %3594 = vmatprep.subr.mxu0 %v849
    %3595 = vmatpush2.msra.mxu0 %v848
    %3596 = vmatprep.subr.mxu0 %v841
    %3597 = vmatpush2.msra.mxu0 %v840
    %3598 = vmatprep.subr.mxu0 %v833
    %3599 = vmatpush2.msra.mxu0 %v832
    %3600 = vmatprep.subr.mxu0 %v825
    %3601 = vmatpush2.msra.mxu0 %v824
    %3602 = vmatprep.subr.mxu0 %v817
    %3603 = vmatpush2.msra.mxu0 %v816
    %3604 = vmatprep.subr.mxu0 %v809
    %3605 = vmatpush2.msra.mxu0 %v808
    %3606 = vmatprep.mubr.f32.mxu0 %v3468
    %3607 = vmatmul.mubr.f32.gmra.mxu0 %v3467
    %v3608 = vpop.f32.mrf.mxu0
    %v3609 = vadd.f32 0.0, %v3608
    %v3610 = vpop.f32.mrf.mxu0
    %v3611 = vadd.f32 0.0, %v3610
    %3612 = vdwg.mxu0
    %3613 = vmatprep.subr.mxu0 %v803
    %3614 = vmatpush1.msra.mxu0 %v802
    %3615 = vmatprep.subr.mxu0 %v795
    %3616 = vmatpush1.msra.mxu0 %v794
    %3617 = vmatprep.subr.mxu0 %v787
    %3618 = vmatpush1.msra.mxu0 %v786
    %3619 = vmatprep.subr.mxu0 %v779
    %3620 = vmatpush1.msra.mxu0 %v778
    %3621 = vmatprep.subr.mxu0 %v771
    %3622 = vmatpush1.msra.mxu0 %v770
    %3623 = vmatprep.subr.mxu0 %v763
    %3624 = vmatpush1.msra.mxu0 %v762
    %3625 = vmatprep.subr.mxu0 %v755
    %3626 = vmatpush1.msra.mxu0 %v754
    %3627 = vmatprep.subr.mxu0 %v747
    %3628 = vmatpush1.msra.mxu0 %v746
    %3629 = vmatprep.subr.mxu0 %v739
    %3630 = vmatpush1.msra.mxu0 %v738
    %3631 = vmatprep.subr.mxu0 %v731
    %3632 = vmatpush1.msra.mxu0 %v730
    %3633 = vmatprep.subr.mxu0 %v723
    %3634 = vmatpush1.msra.mxu0 %v722
    %3635 = vmatprep.subr.mxu0 %v715
    %3636 = vmatpush1.msra.mxu0 %v714
    %3637 = vmatprep.subr.mxu0 %v707
    %3638 = vmatpush1.msra.mxu0 %v706
    %3639 = vmatprep.subr.mxu0 %v699
    %3640 = vmatpush1.msra.mxu0 %v698
    %3641 = vmatprep.subr.mxu0 %v691
    %3642 = vmatpush1.msra.mxu0 %v690
    %3643 = vmatprep.subr.mxu0 %v683
    %3644 = vmatpush1.msra.mxu0 %v682
    %3645 = vmatprep.subr.mxu0 %v931
    %3646 = vmatpush2.msra.mxu0 %v930
    %3647 = vmatprep.subr.mxu0 %v923
    %3648 = vmatpush2.msra.mxu0 %v922
    %3649 = vmatprep.subr.mxu0 %v915
    %3650 = vmatpush2.msra.mxu0 %v914
    %3651 = vmatprep.subr.mxu0 %v907
    %3652 = vmatpush2.msra.mxu0 %v906
    %3653 = vmatprep.subr.mxu0 %v899
    %3654 = vmatpush2.msra.mxu0 %v898
    %3655 = vmatprep.subr.mxu0 %v891
    %3656 = vmatpush2.msra.mxu0 %v890
    %3657 = vmatprep.subr.mxu0 %v883
    %3658 = vmatpush2.msra.mxu0 %v882
    %3659 = vmatprep.subr.mxu0 %v875
    %3660 = vmatpush2.msra.mxu0 %v874
    %3661 = vmatprep.subr.mxu0 %v867
    %3662 = vmatpush2.msra.mxu0 %v866
    %3663 = vmatprep.subr.mxu0 %v859
    %3664 = vmatpush2.msra.mxu0 %v858
    %3665 = vmatprep.subr.mxu0 %v851
    %3666 = vmatpush2.msra.mxu0 %v850
    %3667 = vmatprep.subr.mxu0 %v843
    %3668 = vmatpush2.msra.mxu0 %v842
    %3669 = vmatprep.subr.mxu0 %v835
    %3670 = vmatpush2.msra.mxu0 %v834
    %3671 = vmatprep.subr.mxu0 %v827
    %3672 = vmatpush2.msra.mxu0 %v826
    %3673 = vmatprep.subr.mxu0 %v819
    %3674 = vmatpush2.msra.mxu0 %v818
    %3675 = vmatprep.subr.mxu0 %v811
    %3676 = vmatpush2.msra.mxu0 %v810
    %3677 = vmatprep.mubr.f32.mxu0 %v3468
    %3678 = vmatmul.mubr.f32.gmra.mxu0 %v3467
    %v3679 = vpop.f32.mrf.mxu0
    %v3680 = vadd.f32 0.0, %v3679
    %v3681 = vpop.f32.mrf.mxu0
    %v3682 = vadd.f32 0.0, %v3681
    %3683 = vdwg.mxu0
    %3684 = vmatprep.subr.mxu0 %v805
    %3685 = vmatpush1.msra.mxu0 %v804
    %3686 = vmatprep.subr.mxu0 %v797
    %3687 = vmatpush1.msra.mxu0 %v796
    %3688 = vmatprep.subr.mxu0 %v789
    %3689 = vmatpush1.msra.mxu0 %v788
    %3690 = vmatprep.subr.mxu0 %v781
    %3691 = vmatpush1.msra.mxu0 %v780
    %3692 = vmatprep.subr.mxu0 %v773
    %3693 = vmatpush1.msra.mxu0 %v772
    %3694 = vmatprep.subr.mxu0 %v765
    %3695 = vmatpush1.msra.mxu0 %v764
    %3696 = vmatprep.subr.mxu0 %v757
    %3697 = vmatpush1.msra.mxu0 %v756
    %3698 = vmatprep.subr.mxu0 %v749
    %3699 = vmatpush1.msra.mxu0 %v748
    %3700 = vmatprep.subr.mxu0 %v741
    %3701 = vmatpush1.msra.mxu0 %v740
    %3702 = vmatprep.subr.mxu0 %v733
    %3703 = vmatpush1.msra.mxu0 %v732
    %3704 = vmatprep.subr.mxu0 %v725
    %3705 = vmatpush1.msra.mxu0 %v724
    %3706 = vmatprep.subr.mxu0 %v717
    %3707 = vmatpush1.msra.mxu0 %v716
    %3708 = vmatprep.subr.mxu0 %v709
    %3709 = vmatpush1.msra.mxu0 %v708
    %3710 = vmatprep.subr.mxu0 %v701
    %3711 = vmatpush1.msra.mxu0 %v700
    %3712 = vmatprep.subr.mxu0 %v693
    %3713 = vmatpush1.msra.mxu0 %v692
    %3714 = vmatprep.subr.mxu0 %v685
    %3715 = vmatpush1.msra.mxu0 %v684
    %3716 = vmatprep.subr.mxu0 %v933
    %3717 = vmatpush2.msra.mxu0 %v932
    %3718 = vmatprep.subr.mxu0 %v925
    %3719 = vmatpush2.msra.mxu0 %v924
    %3720 = vmatprep.subr.mxu0 %v917
    %3721 = vmatpush2.msra.mxu0 %v916
    %3722 = vmatprep.subr.mxu0 %v909
    %3723 = vmatpush2.msra.mxu0 %v908
    %3724 = vmatprep.subr.mxu0 %v901
    %3725 = vmatpush2.msra.mxu0 %v900
    %3726 = vmatprep.subr.mxu0 %v893
    %3727 = vmatpush2.msra.mxu0 %v892
    %3728 = vmatprep.subr.mxu0 %v885
    %3729 = vmatpush2.msra.mxu0 %v884
    %3730 = vmatprep.subr.mxu0 %v877
    %3731 = vmatpush2.msra.mxu0 %v876
    %3732 = vmatprep.subr.mxu0 %v869
    %3733 = vmatpush2.msra.mxu0 %v868
    %3734 = vmatprep.subr.mxu0 %v861
    %3735 = vmatpush2.msra.mxu0 %v860
    %3736 = vmatprep.subr.mxu0 %v853
    %3737 = vmatpush2.msra.mxu0 %v852
    %3738 = vmatprep.subr.mxu0 %v845
    %3739 = vmatpush2.msra.mxu0 %v844
    %3740 = vmatprep.subr.mxu0 %v837
    %3741 = vmatpush2.msra.mxu0 %v836
    %3742 = vmatprep.subr.mxu0 %v829
    %3743 = vmatpush2.msra.mxu0 %v828
    %3744 = vmatprep.subr.mxu0 %v821
    %3745 = vmatpush2.msra.mxu0 %v820
    %3746 = vmatprep.subr.mxu0 %v813
    %3747 = vmatpush2.msra.mxu0 %v812
    %3748 = vmatprep.mubr.f32.mxu0 %v3468
    %3749 = vmatmul.mubr.f32.gmra.mxu0 %v3467
    %v3750 = vpop.f32.mrf.mxu0
    %v3751 = vadd.f32 0.0, %v3750
    %v3752 = vpop.f32.mrf.mxu0
    %v3753 = vadd.f32 0.0, %v3752
    %3754 = vdwg.mxu0
    %v3763 = vrot.slane %v3538, 1
    %v3764 = vrot.slane %v3540, 1
    %v3765 = vrot.slane %v3609, 1
    %v3766 = vrot.slane %v3611, 1
    %v3767 = vrot.slane %v3680, 1
    %v3768 = vrot.slane %v3682, 1
    %v3769 = vrot.slane %v3751, 1
    %v3770 = vrot.slane %v3753, 1
    %v3779 = vadd.f32 %v461, %v3763
    %v3780 = vadd.f32 %v463, %v3764
    %v3781 = vadd.f32 %v532, %v3765
    %v3782 = vadd.f32 %v534, %v3766
    %v3783 = vadd.f32 %v603, %v3767
    %v3784 = vadd.f32 %v605, %v3768
    %v3785 = vadd.f32 %v674, %v3769
    %v3786 = vadd.f32 %v676, %v3770
    %v3787 = vmul.f32 %v3779, 0.5
    %v3788 = vmul.f32 %v3780, 0.5
    %v3789 = vtanh.pop %v3787
    %v3790 = vtanh.pop %v3788
    %v3791 = vadd.f32 %v3789, 1.0
    %v3792 = vadd.f32 %v3790, 1.0
    %v3793 = vmul.f32 %v3791, 0.5
    %v3794 = vmul.f32 %v3792, 0.5
    %v3795 = vmul.f32 %v3781, 0.5
    %v3796 = vmul.f32 %v3782, 0.5
    %v3797 = vtanh.pop %v3795
    %v3798 = vtanh.pop %v3796
    %v3799 = vadd.f32 %v3797, 1.0
    %v3800 = vadd.f32 %v3798, 1.0
    %v3801 = vmul.f32 %v3799, 0.5
    %v3802 = vmul.f32 %v3800, 0.5
    %v3803 = vtanh.pop %v3783
    %v3804 = vtanh.pop %v3784
    %v3805 = vmul.f32 %v3785, 0.5
    %v3806 = vmul.f32 %v3786, 0.5
    %v3807 = vtanh.pop %v3805
    %v3808 = vtanh.pop %v3806
    %v3809 = vadd.f32 %v3807, 1.0
    %v3810 = vadd.f32 %v3808, 1.0
    %v3811 = vmul.f32 %v3809, 0.5
    %v3812 = vmul.f32 %v3810, 0.5
    %v3815 = vrot.slane %v3459, 7
    %v3816 = vrot.slane %v3460, 7
    %v3819 = vmul.f32 %v3801, %v3815
    %v3820 = vmul.f32 %v3802, %v3816
    %v3821 = vmul.f32 %v3793, %v3803
    %v3822 = vmul.f32 %v3794, %v3804
    %v3823 = vadd.f32 %v3819, %v3821
    %v3824 = vadd.f32 %v3820, %v3822
    %v3825 = vtanh.pop %v3823
    %v3826 = vtanh.pop %v3824
    %v3827 = vmul.f32 %v3811, %v3825
    %v3828 = vmul.f32 %v3812, %v3826
    %vm3829 = vcmask 1040384
    %v3830 = vsel %vm3829, %v1285, %v1643
    %v3831 = vsel %vm3829, %v1286, %v1644
    %vm3832 = vcmask 1041408
    %v3833 = vsel %vm3832, %v3830, %v2007
    %v3834 = vsel %vm3832, %v3831, %v2008
    %vm3835 = vcmask 1042432
    %v3836 = vsel %vm3835, %v3833, %v2371
    %v3837 = vsel %vm3835, %v3834, %v2372
    %vm3838 = vcmask 1043456
    %v3839 = vsel %vm3838, %v3836, %v2735
    %v3840 = vsel %vm3838, %v3837, %v2736
    %vm3841 = vcmask 1044480
    %v3842 = vsel %vm3841, %v3839, %v3099
    %v3843 = vsel %vm3841, %v3840, %v3100
    %vm3844 = vcmask 1045504
    %v3845 = vsel %vm3844, %v3842, %v3463
    %v3846 = vsel %vm3844, %v3843, %v3464
    %vm3847 = vcmask 1046528
    %v3848 = vsel %vm3847, %v3845, %v3827
    %v3849 = vsel %vm3847, %v3846, %v3828
    %3850 = vst [vmem:[#allocation11] sm:$0xff] %v3848
    %3851 = vst [vmem:[#allocation11 + $0x8] sm:$0xff] %v3849
    %v3852 = vld [vmem:[#allocation10] sm:$0xff]
    %v3853 = vld [vmem:[#allocation10 + $0x8] sm:$0xff]
    %v3854 = vld [vmem:[#allocation10 + $0x10] sm:$0xff]
    %v3855 = vld [vmem:[#allocation10 + $0x18] sm:$0xff]
    %v3856 = vld [vmem:[#allocation10 + $0x20] sm:$0xff]
    %v3857 = vld [vmem:[#allocation10 + $0x28] sm:$0xff]
    %v3858 = vld [vmem:[#allocation10 + $0x30] sm:$0xff]
    %v3859 = vld [vmem:[#allocation10 + $0x38] sm:$0xff]
    %v3860 = vld [vmem:[#allocation10 + $0x40] sm:$0xff]
    %v3861 = vld [vmem:[#allocation10 + $0x48] sm:$0xff]
    %v3862 = vld [vmem:[#allocation10 + $0x50] sm:$0xff]
    %v3863 = vld [vmem:[#allocation10 + $0x58] sm:$0xff]
    %v3864 = vld [vmem:[#allocation10 + $0x60] sm:$0xff]
    %v3865 = vld [vmem:[#allocation10 + $0x68] sm:$0xff]
    %v3866 = vld [vmem:[#allocation10 + $0x70] sm:$0xff]
    %v3867 = vld [vmem:[#allocation10 + $0x78] sm:$0xff]
    %v3868 = vld [vmem:[#allocation10 + $0x80] sm:$0xff]
    %v3869 = vld [vmem:[#allocation10 + $0x88] sm:$0xff]
    %v3870 = vld [vmem:[#allocation10 + $0x90] sm:$0xff]
    %v3871 = vld [vmem:[#allocation10 + $0x98] sm:$0xff]
    %v3872 = vld [vmem:[#allocation10 + $0xa0] sm:$0xff]
    %v3873 = vld [vmem:[#allocation10 + $0xa8] sm:$0xff]
    %v3874 = vld [vmem:[#allocation10 + $0xb0] sm:$0xff]
    %v3875 = vld [vmem:[#allocation10 + $0xb8] sm:$0xff]
    %v3876 = vld [vmem:[#allocation10 + $0xc0] sm:$0xff]
    %v3877 = vld [vmem:[#allocation10 + $0xc8] sm:$0xff]
    %v3878 = vld [vmem:[#allocation10 + $0xd0] sm:$0xff]
    %v3879 = vld [vmem:[#allocation10 + $0xd8] sm:$0xff]
    %v3880 = vld [vmem:[#allocation10 + $0xe0] sm:$0xff]
    %v3881 = vld [vmem:[#allocation10 + $0xe8] sm:$0xff]
    %v3882 = vld [vmem:[#allocation10 + $0xf0] sm:$0xff]
    %v3883 = vld [vmem:[#allocation10 + $0xf8] sm:$0xff]
    %v3884 = vld [vmem:[#allocation10 + $0x100] sm:$0xff]
    %v3885 = vld [vmem:[#allocation10 + $0x108] sm:$0xff]
    %v3886 = vld [vmem:[#allocation10 + $0x110] sm:$0xff]
    %v3887 = vld [vmem:[#allocation10 + $0x118] sm:$0xff]
    %v3888 = vld [vmem:[#allocation10 + $0x120] sm:$0xff]
    %v3889 = vld [vmem:[#allocation10 + $0x128] sm:$0xff]
    %v3890 = vld [vmem:[#allocation10 + $0x130] sm:$0xff]
    %v3891 = vld [vmem:[#allocation10 + $0x138] sm:$0xff]
    %v3892 = vld [vmem:[#allocation10 + $0x140] sm:$0xff]
    %v3893 = vld [vmem:[#allocation10 + $0x148] sm:$0xff]
    %v3894 = vld [vmem:[#allocation10 + $0x150] sm:$0xff]
    %v3895 = vld [vmem:[#allocation10 + $0x158] sm:$0xff]
    %v3896 = vld [vmem:[#allocation10 + $0x160] sm:$0xff]
    %v3897 = vld [vmem:[#allocation10 + $0x168] sm:$0xff]
    %v3898 = vld [vmem:[#allocation10 + $0x170] sm:$0xff]
    %v3899 = vld [vmem:[#allocation10 + $0x178] sm:$0xff]
    %v3900 = vld [vmem:[#allocation10 + $0x180] sm:$0xff]
    %v3901 = vld [vmem:[#allocation10 + $0x188] sm:$0xff]
    %v3902 = vld [vmem:[#allocation10 + $0x190] sm:$0xff]
    %v3903 = vld [vmem:[#allocation10 + $0x198] sm:$0xff]
    %v3904 = vld [vmem:[#allocation10 + $0x1a0] sm:$0xff]
    %v3905 = vld [vmem:[#allocation10 + $0x1a8] sm:$0xff]
    %v3906 = vld [vmem:[#allocation10 + $0x1b0] sm:$0xff]
    %v3907 = vld [vmem:[#allocation10 + $0x1b8] sm:$0xff]
    %v3908 = vld [vmem:[#allocation10 + $0x1c0] sm:$0xff]
    %v3909 = vld [vmem:[#allocation10 + $0x1c8] sm:$0xff]
    %v3910 = vld [vmem:[#allocation10 + $0x1d0] sm:$0xff]
    %v3911 = vld [vmem:[#allocation10 + $0x1d8] sm:$0xff]
    %v3912 = vld [vmem:[#allocation10 + $0x1e0] sm:$0xff]
    %v3913 = vld [vmem:[#allocation10 + $0x1e8] sm:$0xff]
    %v3914 = vld [vmem:[#allocation10 + $0x1f0] sm:$0xff]
    %v3915 = vld [vmem:[#allocation10 + $0x1f8] sm:$0xff]
    %v3918 = vrot.slane %v3823, 7
    %v3919 = vrot.slane %v3824, 7
    %3922 = vmatprep.subr.mxu0 0.0
    %3923 = vmatpush1.msra.mxu0 %v3899
    %3924 = vmatprep.subr.mxu0 0.0
    %3925 = vmatpush1.msra.mxu0 %v3898
    %3926 = vmatprep.subr.mxu0 0.0
    %3927 = vmatpush1.msra.mxu0 %v3897
    %3928 = vmatprep.subr.mxu0 0.0
    %3929 = vmatpush1.msra.mxu0 %v3896
    %3930 = vmatprep.subr.mxu0 0.0
    %3931 = vmatpush1.msra.mxu0 %v3895
    %3932 = vmatprep.subr.mxu0 0.0
    %3933 = vmatpush1.msra.mxu0 %v3894
    %3934 = vmatprep.subr.mxu0 0.0
    %3935 = vmatpush1.msra.mxu0 %v3893
    %3936 = vmatprep.subr.mxu0 0.0
    %3937 = vmatpush1.msra.mxu0 %v3892
    %3938 = vmatprep.subr.mxu0 0.0
    %3939 = vmatpush1.msra.mxu0 %v3891
    %3940 = vmatprep.subr.mxu0 0.0
    %3941 = vmatpush1.msra.mxu0 %v3890
    %3942 = vmatprep.subr.mxu0 0.0
    %3943 = vmatpush1.msra.mxu0 %v3889
    %3944 = vmatprep.subr.mxu0 0.0
    %3945 = vmatpush1.msra.mxu0 %v3888
    %3946 = vmatprep.subr.mxu0 0.0
    %3947 = vmatpush1.msra.mxu0 %v3887
    %3948 = vmatprep.subr.mxu0 0.0
    %3949 = vmatpush1.msra.mxu0 %v3886
    %3950 = vmatprep.subr.mxu0 0.0
    %3951 = vmatpush1.msra.mxu0 %v3885
    %3952 = vmatprep.subr.mxu0 0.0
    %3953 = vmatpush1.msra.mxu0 %v3884
    %3954 = vmatprep.subr.mxu0 0.0
    %3955 = vmatpush2.msra.mxu0 %v3915
    %3956 = vmatprep.subr.mxu0 0.0
    %3957 = vmatpush2.msra.mxu0 %v3914
    %3958 = vmatprep.subr.mxu0 0.0
    %3959 = vmatpush2.msra.mxu0 %v3913
    %3960 = vmatprep.subr.mxu0 0.0
    %3961 = vmatpush2.msra.mxu0 %v3912
    %3962 = vmatprep.subr.mxu0 0.0
    %3963 = vmatpush2.msra.mxu0 %v3911
    %3964 = vmatprep.subr.mxu0 0.0
    %3965 = vmatpush2.msra.mxu0 %v3910
    %3966 = vmatprep.subr.mxu0 0.0
    %3967 = vmatpush2.msra.mxu0 %v3909
    %3968 = vmatprep.subr.mxu0 0.0
    %3969 = vmatpush2.msra.mxu0 %v3908
    %3970 = vmatprep.subr.mxu0 0.0
    %3971 = vmatpush2.msra.mxu0 %v3907
    %3972 = vmatprep.subr.mxu0 0.0
    %3973 = vmatpush2.msra.mxu0 %v3906
    %3974 = vmatprep.subr.mxu0 0.0
    %3975 = vmatpush2.msra.mxu0 %v3905
    %3976 = vmatprep.subr.mxu0 0.0
    %3977 = vmatpush2.msra.mxu0 %v3904
    %3978 = vmatprep.subr.mxu0 0.0
    %3979 = vmatpush2.msra.mxu0 %v3903
    %3980 = vmatprep.subr.mxu0 0.0
    %3981 = vmatpush2.msra.mxu0 %v3902
    %3982 = vmatprep.subr.mxu0 0.0
    %3983 = vmatpush2.msra.mxu0 %v3901
    %3984 = vmatprep.subr.mxu0 0.0
    %3985 = vmatpush2.msra.mxu0 %v3900
    %3986 = vmatprep.mubr.f32.mxu0 %v3919
    %3987 = vmatmul.mubr.f32.gmra.mxu0 %v3918
    %v3988 = vpop.f32.mrf.mxu0
    %v3989 = vadd.f32 0.0, %v3988
    %v3990 = vpop.f32.mrf.mxu0
    %3991 = vdwg.mxu0
    %v3994 = vrot.slane %v3827, 7
    %v3995 = vrot.slane %v3828, 7
    %3998 = vmatprep.subr.mxu0 0.0
    %3999 = vmatpush1.msra.mxu0 %v3867
    %4000 = vmatprep.subr.mxu0 0.0
    %4001 = vmatpush1.msra.mxu0 %v3866
    %4002 = vmatprep.subr.mxu0 0.0
    %4003 = vmatpush1.msra.mxu0 %v3865
    %4004 = vmatprep.subr.mxu0 0.0
    %4005 = vmatpush1.msra.mxu0 %v3864
    %4006 = vmatprep.subr.mxu0 0.0
    %4007 = vmatpush1.msra.mxu0 %v3863
    %4008 = vmatprep.subr.mxu0 0.0
    %4009 = vmatpush1.msra.mxu0 %v3862
    %4010 = vmatprep.subr.mxu0 0.0
    %4011 = vmatpush1.msra.mxu0 %v3861
    %4012 = vmatprep.subr.mxu0 0.0
    %4013 = vmatpush1.msra.mxu0 %v3860
    %4014 = vmatprep.subr.mxu0 0.0
    %4015 = vmatpush1.msra.mxu0 %v3859
    %4016 = vmatprep.subr.mxu0 0.0
    %4017 = vmatpush1.msra.mxu0 %v3858
    %4018 = vmatprep.subr.mxu0 0.0
    %4019 = vmatpush1.msra.mxu0 %v3857
    %4020 = vmatprep.subr.mxu0 0.0
    %4021 = vmatpush1.msra.mxu0 %v3856
    %4022 = vmatprep.subr.mxu0 0.0
    %4023 = vmatpush1.msra.mxu0 %v3855
    %4024 = vmatprep.subr.mxu0 0.0
    %4025 = vmatpush1.msra.mxu0 %v3854
    %4026 = vmatprep.subr.mxu0 0.0
    %4027 = vmatpush1.msra.mxu0 %v3853
    %4028 = vmatprep.subr.mxu0 0.0
    %4029 = vmatpush1.msra.mxu0 %v3852
    %4030 = vmatprep.subr.mxu0 0.0
    %4031 = vmatpush2.msra.mxu0 %v3883
    %4032 = vmatprep.subr.mxu0 0.0
    %4033 = vmatpush2.msra.mxu0 %v3882
    %4034 = vmatprep.subr.mxu0 0.0
    %4035 = vmatpush2.msra.mxu0 %v3881
    %4036 = vmatprep.subr.mxu0 0.0
    %4037 = vmatpush2.msra.mxu0 %v3880
    %4038 = vmatprep.subr.mxu0 0.0
    %4039 = vmatpush2.msra.mxu0 %v3879
    %4040 = vmatprep.subr.mxu0 0.0
    %4041 = vmatpush2.msra.mxu0 %v3878
    %4042 = vmatprep.subr.mxu0 0.0
    %4043 = vmatpush2.msra.mxu0 %v3877
    %4044 = vmatprep.subr.mxu0 0.0
    %4045 = vmatpush2.msra.mxu0 %v3876
    %4046 = vmatprep.subr.mxu0 0.0
    %4047 = vmatpush2.msra.mxu0 %v3875
    %4048 = vmatprep.subr.mxu0 0.0
    %4049 = vmatpush2.msra.mxu0 %v3874
    %4050 = vmatprep.subr.mxu0 0.0
    %4051 = vmatpush2.msra.mxu0 %v3873
    %4052 = vmatprep.subr.mxu0 0.0
    %4053 = vmatpush2.msra.mxu0 %v3872
    %4054 = vmatprep.subr.mxu0 0.0
    %4055 = vmatpush2.msra.mxu0 %v3871
    %4056 = vmatprep.subr.mxu0 0.0
    %4057 = vmatpush2.msra.mxu0 %v3870
    %4058 = vmatprep.subr.mxu0 0.0
    %4059 = vmatpush2.msra.mxu0 %v3869
    %4060 = vmatprep.subr.mxu0 0.0
    %4061 = vmatpush2.msra.mxu0 %v3868
    %4062 = vmatprep.mubr.f32.mxu0 %v3995
    %4063 = vmatmul.mubr.f32.gmra.mxu0 %v3994
    %v4064 = vpop.f32.mrf.mxu0
    %v4065 = vadd.f32 %v3989, %v4064
    %v4066 = vpop.f32.mrf.mxu0
    %4067 = vdwg.mxu0
    %v4068 = vld [vmem:[%s5] sm:$0x1]
    %v4069 = vadd.f32 %v4065, %v4068
    %4070 = vst [vmem:[#allocation12] sm:$0x1] %v4069
    // Predicated region
    $region50: #{tpu_custom_call.1} parent=1 // pred_check
      _
    $region51: #{tpu_custom_call.1} parent=1 // pred_check_branch
      %4072 = sbr.rel (0) target = $region53
    $region52: #{tpu_custom_call.1} parent=1 // pred_region
      %s4074 = ssub.s32 256, 256
      %4075 = vsyncadd [#allocation4], %s4074
      %s4077 = sshll.u32 [#allocation11], 4
      %s4078 = int_to_ptr.vmem [resolvable:$true] %s4077
      %4080 = dma.vmem_to_hbm [thread:$0]  %s4078, 256, %s7, [#allocation4]
    $region53: #{tpu_custom_call.1} parent=1 // pred_fallthru
      _
    // Predicated region
    $region54: #{tpu_custom_call.1} parent=1 // pred_check
      _
    $region55: #{tpu_custom_call.1} parent=1 // pred_check_branch
      %4082 = sbr.rel (0) target = $region57
    $region56: #{tpu_custom_call.1} parent=1 // pred_region
      %s4084 = ssub.s32 16, 16
      %4085 = vsyncadd [#allocation13], %s4084
      %s4087 = sshll.u32 [#allocation12], 4
      %s4088 = int_to_ptr.vmem [resolvable:$true] %s4087
      %4090 = dma.vmem_to_hbm [thread:$0]  %s4088, 16, %s8, [#allocation13]
    $region57: #{tpu_custom_call.1} parent=1 // pred_fallthru
      _
    // Predicated region
    $region58: #{tpu_custom_call.1} parent=1 // pred_check
      _
    $region59: #{tpu_custom_call.1} parent=1 // pred_check_branch
      %4092 = sbr.rel (0) target = $region61
    $region60: #{tpu_custom_call.1} parent=1 // pred_region
      %4093 = dma.done [#allocation4], 256
    $region61: #{tpu_custom_call.1} parent=1 // pred_fallthru
      _
    // Predicated region
    $region62: #{tpu_custom_call.1} parent=1 // pred_check
      _
    $region63: #{tpu_custom_call.1} parent=1 // pred_check_branch
      %4095 = sbr.rel (0) target = $region65
    $region64: #{tpu_custom_call.1} parent=1 // pred_region
      %4096 = dma.done [#allocation13], 16
    $region65: #{tpu_custom_call.1} parent=1 // pred_fallthru
      _
    %4097 = vsyncpa [#allocation3], 1
    %4098 = vsyncpa [#allocation6], 1
    %4099 = vsyncpa [#allocation9], 1
    %4100 = vsyncpa [#allocation4], 1
    %4101 = vsyncpa [#allocation13], 1

</llo_original>
